<compile_context>
chip_gen: v5e
topology: v5e:2x2
jax: 0.10.0
libtpu: 0.0.40
codegen_flags: <defaults>
</compile_context>

<pallas_src>
import math
from functools import partial

import jax
import jax.numpy as jnp
from jax import lax
from jax.experimental import pallas as pl
from jax.experimental.pallas import tpu as pltpu


_USE_SINGLE_BUFFER_WEIGHTS = hasattr(pl, "Buffered")


def _encoder_kernel(x_ref, wq_ref, bq_ref, wkv_ref, bkv_ref, wo_ref, bo_ref,
                    g1_ref, b1_ref, w1_ref, c1_ref, w2_ref, c2_ref,
                    g2_ref, b2_ref, o_ref, kv_sc, attn_sc,
                    *, heads, head_dim, seq_tile, num_tiles, eps):
    D = wo_ref.shape[0]
    cdt = wq_ref.dtype                          # MXU operand dtype (f32 or bf16)
    i = pl.program_id(1)                        # query-tile index

    # ---- K|V projection for the whole sequence, once per batch row, chunked over
    # TQ-row slabs so the f32 transient is (TQ, 2D) rather than (S, 2D). -------------
    @pl.when(i == 0)
    def _():
        if num_tiles == 1:                      # static: single full-extent slab
            xc = x_ref[0].astype(cdt)                                      # (S, D)
            kv = jnp.dot(xc, wkv_ref[...],
                         preferred_element_type=jnp.float32) + bkv_ref[...]
            kv_sc[...] = kv.astype(kv_sc.dtype)
        else:
            @pl.loop(0, num_tiles)
            def _(j):
                r0 = pl.multiple_of(j * seq_tile, seq_tile)
                xc = x_ref[0, pl.ds(r0, seq_tile), :].astype(cdt)          # (TQ, D)
                kv = jnp.dot(xc, wkv_ref[...],
                             preferred_element_type=jnp.float32) + bkv_ref[...]
                kv_sc[pl.ds(r0, seq_tile), :] = kv.astype(kv_sc.dtype)

    row0 = pl.multiple_of(i * seq_tile, seq_tile)
    x_tile = x_ref[0, pl.ds(row0, seq_tile), :]                            # (TQ, D)

    # ---- Q projection for this tile only (wq/bq pre-scaled by 1/sqrt(head_dim)) ------
    q = jnp.dot(x_tile.astype(cdt), wq_ref[...],
                preferred_element_type=jnp.float32) + bq_ref[...]
    q = q.astype(cdt)                                                      # (TQ, D)

    # ---- multi-head self-attention for this query tile -------------------------------
    # TODO(synk): for head_dim < 128 the lane sub-slices below force relayouts; a
    # head-major (2H, S, hd) K/V scratch removes them at the cost of lane padding of
    # the resident scratch, and packing 2-4 heads per QK^T matmul would recover MXU
    # contraction depth on v6e/v7x.
    for h in range(heads):                      # static unroll (heads is small)
        lo = h * head_dim
        qh = q[:, lo:lo + head_dim]                                        # (TQ, hd)
        kh = kv_sc[:, lo:lo + head_dim]                                    # (S,  hd)
        vh = kv_sc[:, D + lo:D + lo + head_dim]                            # (S,  hd)
        s = lax.dot_general(qh, kh, (((1,), (1,)), ((), ())),
                            preferred_element_type=jnp.float32)            # (TQ, S)
        s = s - jnp.max(s, axis=-1, keepdims=True)
        # TODO(synk): on v6e/v7x a bf16 exp here roughly doubles EUP throughput; kept
        # f32 for exact parity with the reference and for v5e (no bf16 EUP).
        p = jnp.exp(s)
        l = jnp.sum(p, axis=-1, keepdims=True)                             # (TQ, 1)
        oh = jnp.dot(p.astype(cdt), vh, preferred_element_type=jnp.float32)
        oh = oh / l                       # exact normalization on the small PV output
        attn_sc[:, lo:lo + head_dim] = oh.astype(attn_sc.dtype)

    # concat-then-project: one full-contraction (TQ,D)@(D,D) output projection
    attn = jnp.dot(attn_sc[...], wo_ref[...],
                   preferred_element_type=jnp.float32) + bo_ref[...]

    # ---- residual + LayerNorm 1 (f32 elementwise) -------------------------------------
    h1 = x_tile.astype(jnp.float32) + attn
    mu1 = jnp.mean(h1, axis=-1, keepdims=True)
    var1 = jnp.mean(jnp.square(h1 - mu1), axis=-1, keepdims=True)
    h1n = (h1 - mu1) * lax.rsqrt(var1 + eps) * g1_ref[...] + b1_ref[...]

    # ---- MLP: Linear -> (Dropout=id) -> ReLU -> Linear -> (Dropout=id) ----------------
    m = jnp.dot(h1n.astype(cdt), w1_ref[...],
                preferred_element_type=jnp.float32) + c1_ref[...]
    m = jnp.maximum(m, 0.0)
    m = jnp.dot(m.astype(cdt), w2_ref[...],
                preferred_element_type=jnp.float32) + c2_ref[...]

    # ---- residual + LayerNorm 2 --------------------------------------------------------
    h2 = h1n + m
    mu2 = jnp.mean(h2, axis=-1, keepdims=True)
    var2 = jnp.mean(jnp.square(h2 - mu2), axis=-1, keepdims=True)
    out = (h2 - mu2) * lax.rsqrt(var2 + eps) * g2_ref[...] + b2_ref[...]

    o_ref[...] = out[None, :, :].astype(o_ref.dtype)


def _pick_seq_tile(S, max_tile=256):
    """Largest multiple-of-8 divisor of S in [64, max_tile], else the full S."""
    if S <= max_tile:
        return S
    for t in range(max_tile - max_tile % 8, 63, -8):
        if S % t == 0:
            return t
    # TODO(synk): pad S (with key masking) instead of degrading to one full-S tile
    # for awkward sequence lengths.
    return S


def encoder_block(x, params, *, heads, eps=1e-5, mxu_dtype=None):
    B, S, D = x.shape
    M = params["w1"].shape[1]
    assert D % heads == 0
    head_dim = D // heads
    TQ = _pick_seq_tile(S)
    NQ = S // TQ if S % TQ == 0 else 1

    # MXU operand dtype. Default = activation dtype (exact f32 parity for f32 inputs).
    # TODO(synk): on v6e/v7x pass mxu_dtype=jnp.bfloat16 for f32 inputs to use the
    # bf16 MXU (f32 accumulate) when relaxed tolerances are acceptable.
    cdt = jnp.dtype(mxu_dtype) if mxu_dtype is not None else x.dtype

    f32 = lambda a: a.astype(jnp.float32)
    scale = 1.0 / math.sqrt(head_dim)
    wq = (params["wq"] * scale).astype(cdt)      # fold 1/sqrt(hd) into the Q projection
    bq = f32(params["bq"] * scale)
    wkv = jnp.concatenate([params["wk"], params["wv"]], axis=1).astype(cdt)
    bkv = f32(jnp.concatenate([params["bk"], params["bv"]], axis=1))
    wo = params["wo"].astype(cdt)
    w1 = params["w1"].astype(cdt)
    w2 = params["w2"].astype(cdt)

    def const_spec(shape):
        # Constant-index weights/biases: single-buffer to halve their VMEM footprint.
        if _USE_SINGLE_BUFFER_WEIGHTS:
            return pl.BlockSpec(shape, lambda b, i: (0, 0),
                                pipeline_mode=pl.Buffered(1))
        return pl.BlockSpec(shape, lambda b, i: (0, 0))

    in_specs = [
        pl.BlockSpec((1, S, D), lambda b, i: (b, 0, 0)),   # x: full sequence per batch
        # TODO(synk): if VMEM is tight on v7x, single-buffer the x spec as well.
        const_spec((D, D)), const_spec((1, D)),            # wq (pre-scaled), bq
        const_spec((D, 2 * D)), const_spec((1, 2 * D)),    # wkv, bkv
        const_spec((D, D)), const_spec((1, D)),            # wo, bo
        const_spec((1, D)), const_spec((1, D)),            # ln1 gamma, beta
        const_spec((D, M)), const_spec((1, M)),            # mlp w1, b1
        const_spec((M, D)), const_spec((1, D)),            # mlp w2, b2
        const_spec((1, D)), const_spec((1, D)),            # ln2 gamma, beta
    ]
    out_specs = pl.BlockSpec((1, TQ, D), lambda b, i: (b, i, 0))

    # Scoped-VMEM budget from the actual resident set, clamped to device capacity.
    it_c = jnp.dtype(cdt).itemsize
    it_x = jnp.dtype(x.dtype).itemsize
    weights_b = (4 * D * D + 2 * D * M) * it_c              # single-buffered weights
    small_b = (10 * D + M) * 4 * 2                          # biases / LN params (f32)
    act_b = 2 * S * D * it_x + 2 * TQ * D * it_x            # x + out blocks (2 bufs)
    scratch_b = (2 * S * D + TQ * D) * it_c                 # K|V cache + head concat
    inter_b = (2 * TQ * S + TQ * M + 10 * TQ * D) * 4       # live f32 intermediates
    need = weights_b + small_b + act_b + scratch_b + inter_b + (4 << 20)
    try:
        cap = pltpu.get_tpu_info().vmem_capacity_bytes      # 64 MiB v7x, 128 MiB v5e/v6e
    except Exception:                                       # interpret / non-TPU backend
        cap = 128 << 20
    vmem_limit = int(min(max(need, 16 << 20), cap - (8 << 20)))

    kernel = partial(_encoder_kernel, heads=heads, head_dim=head_dim,
                     seq_tile=TQ, num_tiles=NQ, eps=eps)

    return pl.pallas_call(
        kernel,
        out_shape=jax.ShapeDtypeStruct((B, S, D), x.dtype),
        grid_spec=pltpu.PrefetchScalarGridSpec(
            num_scalar_prefetch=0,
            grid=(B, NQ),
            in_specs=in_specs,
            out_specs=out_specs,
            scratch_shapes=[pltpu.VMEM((S, 2 * D), cdt),    # cached K|V (per batch row)
                            pltpu.VMEM((TQ, D), cdt)],      # per-tile head concat
        ),
        # TODO(synk): for B==1 on v7x, hoist the K|V projection out of the i axis so it
        # can be marked "parallel" and split across the 2 TensorCores.
        compiler_params=pltpu.CompilerParams(
            dimension_semantics=("parallel", "arbitrary"),
            vmem_limit_bytes=vmem_limit),
    )(x, wq, bq, wkv, bkv, wo, f32(params["bo"]),
      f32(params["ln1_g"]), f32(params["ln1_b"]), w1, f32(params["b1"]),
      w2, f32(params["b2"]), f32(params["ln2_g"]), f32(params["ln2_b"]))


def ref_encoder_block(x, p, *, heads, eps=1e-5):
    """Pure-JAX f32 reference with identical semantics."""
    B, S, D = x.shape
    hd = D // heads
    q = x @ p["wq"] + p["bq"]
    k = x @ p["wk"] + p["bk"]
    v = x @ p["wv"] + p["bv"]

    def split(t):
        return t.reshape(B, S, heads, hd).transpose(0, 2, 1, 3)  # (B,H,S,hd)

    qh, kh, vh = split(q), split(k), split(v)
    s = jnp.einsum("bhqe,bhke->bhqk", qh, kh) / math.sqrt(hd)
    a = jax.nn.softmax(s, axis=-1)
    o = jnp.einsum("bhqk,bhke->bhqe", a, vh).transpose(0, 2, 1, 3).reshape(B, S, D)
    attn = o @ p["wo"] + p["bo"]

    def ln(t, g, b):
        mu = jnp.mean(t, axis=-1, keepdims=True)
        var = jnp.mean((t - mu) ** 2, axis=-1, keepdims=True)
        return (t - mu) * jax.lax.rsqrt(var + eps) * g + b

    h1 = ln(x + attn, p["ln1_g"], p["ln1_b"])
    m = jnp.maximum(h1 @ p["w1"] + p["b1"], 0.0) @ p["w2"] + p["b2"]
    return ln(h1 + m, p["ln2_g"], p["ln2_b"])


def make_params(key, D, M):
    ks = jax.random.split(key, 8)
    init = lambda k, shape, fan_in: (jax.random.normal(k, shape, jnp.float32)
                                     / math.sqrt(fan_in))
    return {
        "wq": init(ks[0], (D, D), D), "bq": jnp.zeros((1, D), jnp.float32),
        "wk": init(ks[1], (D, D), D), "bk": jnp.zeros((1, D), jnp.float32),
        "wv": init(ks[2], (D, D), D), "bv": jnp.zeros((1, D), jnp.float32),
        "wo": init(ks[3], (D, D), D), "bo": jnp.zeros((1, D), jnp.float32),
        "ln1_g": jnp.ones((1, D), jnp.float32), "ln1_b": jnp.zeros((1, D), jnp.float32),
        "w1": init(ks[4], (D, M), D), "b1": 0.01 * jnp.ones((1, M), jnp.float32),
        "w2": init(ks[5], (M, D), M), "b2": 0.01 * jnp.ones((1, D), jnp.float32),
        "ln2_g": jnp.ones((1, D), jnp.float32), "ln2_b": jnp.zeros((1, D), jnp.float32),
    }


def _run(fn, *args, **kwargs):
    """Call the kernel; if this jax build rejects single-buffered (Buffered(1)) weight
    specs, fall back to default double-buffering once and retry."""
    global _USE_SINGLE_BUFFER_WEIGHTS
    try:
        return jax.block_until_ready(fn(*args, **kwargs))
    except Exception:
        if not _USE_SINGLE_BUFFER_WEIGHTS:
            raise
        _USE_SINGLE_BUFFER_WEIGHTS = False
        return jax.block_until_ready(fn(*args, **kwargs))


if __name__ == "__main__":
    B, S, D, HEADS, MLP_DIM = 2, 8, 32, 4, 64
    key = jax.random.PRNGKey(0)
    kx, kp = jax.random.split(key)
    x = jax.random.normal(kx, (B, S, D), jnp.float32)
    params = make_params(kp, D, MLP_DIM)

    out = _run(encoder_block, x, params, heads=HEADS)
    ref = ref_encoder_block(x, params, heads=HEADS)
    assert out.shape == (B, S, D)
    err = float(jnp.max(jnp.abs(out - ref)))
    assert jnp.allclose(out, ref, atol=2e-3, rtol=2e-3), f"f32 max abs err {err}"

    # bf16 operand path (feeds the MXU in bf16 on v6e/v7x); loose check vs the f32 ref.
    out_bf = _run(encoder_block, x.astype(jnp.bfloat16), params, heads=HEADS)
    assert out_bf.dtype == jnp.bfloat16
    err_bf = float(jnp.max(jnp.abs(out_bf.astype(jnp.float32) - ref)))
    assert err_bf < 0.2, f"bf16 max abs err {err_bf}"

    print("KERNEL_OK")
</pallas_src>

<mosaic_0001>
module attributes {stable_mosaic.version = 11 : i64} {
  func.func @_encoder_kernel(%arg0: i32, %arg1: i32, %arg2: memref<1x8x32xf32, #tpu.memory_space<vmem>>, %arg3: memref<32x32xf32, #tpu.memory_space<vmem>>, %arg4: memref<1x32xf32, #tpu.memory_space<vmem>>, %arg5: memref<32x64xf32, #tpu.memory_space<vmem>>, %arg6: memref<1x64xf32, #tpu.memory_space<vmem>>, %arg7: memref<32x32xf32, #tpu.memory_space<vmem>>, %arg8: memref<1x32xf32, #tpu.memory_space<vmem>>, %arg9: memref<1x32xf32, #tpu.memory_space<vmem>>, %arg10: memref<1x32xf32, #tpu.memory_space<vmem>>, %arg11: memref<32x64xf32, #tpu.memory_space<vmem>>, %arg12: memref<1x64xf32, #tpu.memory_space<vmem>>, %arg13: memref<64x32xf32, #tpu.memory_space<vmem>>, %arg14: memref<1x32xf32, #tpu.memory_space<vmem>>, %arg15: memref<1x32xf32, #tpu.memory_space<vmem>>, %arg16: memref<1x32xf32, #tpu.memory_space<vmem>>, %arg17: memref<1x8x32xf32, #tpu.memory_space<vmem>>, %arg18: memref<8x64xf32, #tpu.memory_space<vmem>>, %arg19: memref<8x32xf32, #tpu.memory_space<vmem>>) attributes {dimension_semantics = [#tpu.dimension_semantics<parallel>, #tpu.dimension_semantics<arbitrary>], iteration_bounds = array<i64: 2, 1>, scalar_prefetch = 0 : i64, scratch_operands = 2 : i64, tpu.core_type = #tpu.core_type<tc>, window_params = [{transform_indices = @transform_0, window_bounds = array<i64: 1, 8, 32>}, {pipeline_mode = #tpu.pipeline_mode<synchronous>, transform_indices = @transform_1, window_bounds = array<i64: 32, 32>}, {pipeline_mode = #tpu.pipeline_mode<synchronous>, transform_indices = @transform_2, window_bounds = array<i64: 1, 32>}, {pipeline_mode = #tpu.pipeline_mode<synchronous>, transform_indices = @transform_3, window_bounds = array<i64: 32, 64>}, {pipeline_mode = #tpu.pipeline_mode<synchronous>, transform_indices = @transform_4, window_bounds = array<i64: 1, 64>}, {pipeline_mode = #tpu.pipeline_mode<synchronous>, transform_indices = @transform_5, window_bounds = array<i64: 32, 32>}, {pipeline_mode = #tpu.pipeline_mode<synchronous>, transform_indices = @transform_6, window_bounds = array<i64: 1, 32>}, {pipeline_mode = #tpu.pipeline_mode<synchronous>, transform_indices = @transform_7, window_bounds = array<i64: 1, 32>}, {pipeline_mode = #tpu.pipeline_mode<synchronous>, transform_indices = @transform_8, window_bounds = array<i64: 1, 32>}, {pipeline_mode = #tpu.pipeline_mode<synchronous>, transform_indices = @transform_9, window_bounds = array<i64: 32, 64>}, {pipeline_mode = #tpu.pipeline_mode<synchronous>, transform_indices = @transform_10, window_bounds = array<i64: 1, 64>}, {pipeline_mode = #tpu.pipeline_mode<synchronous>, transform_indices = @transform_11, window_bounds = array<i64: 64, 32>}, {pipeline_mode = #tpu.pipeline_mode<synchronous>, transform_indices = @transform_12, window_bounds = array<i64: 1, 32>}, {pipeline_mode = #tpu.pipeline_mode<synchronous>, transform_indices = @transform_13, window_bounds = array<i64: 1, 32>}, {pipeline_mode = #tpu.pipeline_mode<synchronous>, transform_indices = @transform_14, window_bounds = array<i64: 1, 32>}, {transform_indices = @transform_15, window_bounds = array<i64: 1, 8, 32>}]} {
    %c0_i32 = arith.constant 0 : i32
    %0 = arith.cmpi eq, %arg1, %c0_i32 : i32
    %1 = arith.extui %0 : i1 to i32
    %c0_i32_0 = arith.constant 0 : i32
    %2 = arith.cmpi ne, %1, %c0_i32_0 : i32
    scf.if %2 {
      %c0_78 = arith.constant 0 : index
      %c0_79 = arith.constant 0 : index
      %c0_80 = arith.constant 0 : index
      %143 = vector.load %arg2[%c0_78, %c0_79, %c0_80] : memref<1x8x32xf32, #tpu.memory_space<vmem>>, vector<1x8x32xf32>
      %144 = vector.shape_cast %143 : vector<1x8x32xf32> to vector<8x32xf32>
      %c0_81 = arith.constant 0 : index
      %c0_82 = arith.constant 0 : index
      %145 = vector.load %arg5[%c0_81, %c0_82] : memref<32x64xf32, #tpu.memory_space<vmem>>, vector<32x64xf32>
      %cst_83 = arith.constant dense<0.000000e+00> : vector<8x64xf32>
      %146 = tpu.matmul %144, %145, %cst_83 {dimension_numbers = #tpu.dot_dimension_numbers<[1], [0], [0], [1], [0, 0, 1, 1], [], []>} : vector<8x32xf32>, vector<32x64xf32>, vector<8x64xf32> -> vector<8x64xf32>
      %c0_84 = arith.constant 0 : index
      %c0_85 = arith.constant 0 : index
      %147 = vector.load %arg6[%c0_84, %c0_85] : memref<1x64xf32, #tpu.memory_space<vmem>>, vector<1x64xf32>
      %148 = vector.broadcast %147 : vector<1x64xf32> to vector<8x64xf32>
      %149 = arith.addf %146, %148 : vector<8x64xf32>
      %c0_86 = arith.constant 0 : index
      %c0_87 = arith.constant 0 : index
      %150 = vector.load %arg18[%c0_86, %c0_87] : memref<8x64xf32, #tpu.memory_space<vmem>>, vector<8x64xf32>
      tpu.vector_store %arg18[%c0_86, %c0_87], %149 {strides = array<i32>} : memref<8x64xf32, #tpu.memory_space<vmem>>, vector<8x64xf32>,
    } else {
    }
    %c8_i32 = arith.constant 8 : i32
    %3 = arith.muli %arg1, %c8_i32 : i32
    %4 = tpu.assume_multiple %3, 8 : i32
    %c0 = arith.constant 0 : index
    %5 = arith.index_cast %4 : i32 to index
    %c0_1 = arith.constant 0 : index
    %6 = vector.load %arg2[%c0, %5, %c0_1] : memref<1x8x32xf32, #tpu.memory_space<vmem>>, vector<1x8x32xf32>
    %7 = vector.shape_cast %6 : vector<1x8x32xf32> to vector<8x32xf32>
    %c0_2 = arith.constant 0 : index
    %c0_3 = arith.constant 0 : index
    %8 = vector.load %arg3[%c0_2, %c0_3] : memref<32x32xf32, #tpu.memory_space<vmem>>, vector<32x32xf32>
    %cst = arith.constant dense<0.000000e+00> : vector<8x32xf32>
    %9 = tpu.matmul %7, %8, %cst {dimension_numbers = #tpu.dot_dimension_numbers<[1], [0], [0], [1], [0, 0, 1, 1], [], []>} : vector<8x32xf32>, vector<32x32xf32>, vector<8x32xf32> -> vector<8x32xf32>
    %c0_4 = arith.constant 0 : index
    %c0_5 = arith.constant 0 : index
    %10 = vector.load %arg4[%c0_4, %c0_5] : memref<1x32xf32, #tpu.memory_space<vmem>>, vector<1x32xf32>
    %11 = vector.broadcast %10 : vector<1x32xf32> to vector<8x32xf32>
    %12 = arith.addf %9, %11 : vector<8x32xf32>
    %13 = vector.extract_strided_slice %12 {offsets = [0, 0], sizes = [8, 8], strides = [1, 1]} : vector<8x32xf32> to vector<8x8xf32>
    %c0_6 = arith.constant 0 : index
    %c0_7 = arith.constant 0 : index
    %14 = vector.load %arg18[%c0_6, %c0_7] : memref<8x64xf32, #tpu.memory_space<vmem>>, vector<8x8xf32>
    %c0_8 = arith.constant 0 : index
    %c32 = arith.constant 32 : index
    %15 = vector.load %arg18[%c0_8, %c32] : memref<8x64xf32, #tpu.memory_space<vmem>>, vector<8x8xf32>
    %cst_9 = arith.constant dense<0.000000e+00> : vector<8x8xf32>
    %16 = tpu.matmul %13, %14, %cst_9 {dimension_numbers = #tpu.dot_dimension_numbers<[1], [1], [0], [0], [0, 0, 1, 0], [], []>} : vector<8x8xf32>, vector<8x8xf32>, vector<8x8xf32> -> vector<8x8xf32>
    %cst_10 = arith.constant dense<0xFF800000> : vector<8xf32>
    %17 = vector.multi_reduction <maximumf>, %16, %cst_10 [1] : vector<8x8xf32> to vector<8xf32>
    %18 = vector.shape_cast %17 : vector<8xf32> to vector<8x1xf32>
    %19 = vector.broadcast %18 : vector<8x1xf32> to vector<8x8xf32>
    %20 = arith.subf %16, %19 : vector<8x8xf32>
    %21 = math.exp %20 : vector<8x8xf32>
    %cst_11 = arith.constant dense<0.000000e+00> : vector<8xf32>
    %22 = vector.multi_reduction <add>, %21, %cst_11 [1] : vector<8x8xf32> to vector<8xf32>
    %23 = vector.shape_cast %22 : vector<8xf32> to vector<8x1xf32>
    %cst_12 = arith.constant dense<0.000000e+00> : vector<8x8xf32>
    %24 = tpu.matmul %21, %15, %cst_12 {dimension_numbers = #tpu.dot_dimension_numbers<[1], [0], [0], [1], [0, 0, 1, 1], [], []>} : vector<8x8xf32>, vector<8x8xf32>, vector<8x8xf32> -> vector<8x8xf32>
    %25 = vector.broadcast %23 : vector<8x1xf32> to vector<8x8xf32>
    %26 = arith.divf %24, %25 : vector<8x8xf32>
    %c0_13 = arith.constant 0 : index
    %c0_14 = arith.constant 0 : index
    %27 = vector.load %arg19[%c0_13, %c0_14] : memref<8x32xf32, #tpu.memory_space<vmem>>, vector<8x8xf32>
    tpu.vector_store %arg19[%c0_13, %c0_14], %26 {strides = array<i32>} : memref<8x32xf32, #tpu.memory_space<vmem>>, vector<8x8xf32>,
    %28 = vector.extract_strided_slice %12 {offsets = [0, 8], sizes = [8, 8], strides = [1, 1]} : vector<8x32xf32> to vector<8x8xf32>
    %c0_15 = arith.constant 0 : index
    %c8 = arith.constant 8 : index
    %29 = vector.load %arg18[%c0_15, %c8] : memref<8x64xf32, #tpu.memory_space<vmem>>, vector<8x8xf32>
    %c0_16 = arith.constant 0 : index
    %c40 = arith.constant 40 : index
    %30 = vector.load %arg18[%c0_16, %c40] : memref<8x64xf32, #tpu.memory_space<vmem>>, vector<8x8xf32>
    %cst_17 = arith.constant dense<0.000000e+00> : vector<8x8xf32>
    %31 = tpu.matmul %28, %29, %cst_17 {dimension_numbers = #tpu.dot_dimension_numbers<[1], [1], [0], [0], [0, 0, 1, 0], [], []>} : vector<8x8xf32>, vector<8x8xf32>, vector<8x8xf32> -> vector<8x8xf32>
    %cst_18 = arith.constant dense<0xFF800000> : vector<8xf32>
    %32 = vector.multi_reduction <maximumf>, %31, %cst_18 [1] : vector<8x8xf32> to vector<8xf32>
    %33 = vector.shape_cast %32 : vector<8xf32> to vector<8x1xf32>
    %34 = vector.broadcast %33 : vector<8x1xf32> to vector<8x8xf32>
    %35 = arith.subf %31, %34 : vector<8x8xf32>
    %36 = math.exp %35 : vector<8x8xf32>
    %cst_19 = arith.constant dense<0.000000e+00> : vector<8xf32>
    %37 = vector.multi_reduction <add>, %36, %cst_19 [1] : vector<8x8xf32> to vector<8xf32>
    %38 = vector.shape_cast %37 : vector<8xf32> to vector<8x1xf32>
    %cst_20 = arith.constant dense<0.000000e+00> : vector<8x8xf32>
    %39 = tpu.matmul %36, %30, %cst_20 {dimension_numbers = #tpu.dot_dimension_numbers<[1], [0], [0], [1], [0, 0, 1, 1], [], []>} : vector<8x8xf32>, vector<8x8xf32>, vector<8x8xf32> -> vector<8x8xf32>
    %40 = vector.broadcast %38 : vector<8x1xf32> to vector<8x8xf32>
    %41 = arith.divf %39, %40 : vector<8x8xf32>
    %c0_21 = arith.constant 0 : index
    %c8_22 = arith.constant 8 : index
    %42 = vector.load %arg19[%c0_21, %c8_22] : memref<8x32xf32, #tpu.memory_space<vmem>>, vector<8x8xf32>
    tpu.vector_store %arg19[%c0_21, %c8_22], %41 {strides = array<i32>} : memref<8x32xf32, #tpu.memory_space<vmem>>, vector<8x8xf32>,
    %43 = vector.extract_strided_slice %12 {offsets = [0, 16], sizes = [8, 8], strides = [1, 1]} : vector<8x32xf32> to vector<8x8xf32>
    %c0_23 = arith.constant 0 : index
    %c16 = arith.constant 16 : index
    %44 = vector.load %arg18[%c0_23, %c16] : memref<8x64xf32, #tpu.memory_space<vmem>>, vector<8x8xf32>
    %c0_24 = arith.constant 0 : index
    %c48 = arith.constant 48 : index
    %45 = vector.load %arg18[%c0_24, %c48] : memref<8x64xf32, #tpu.memory_space<vmem>>, vector<8x8xf32>
    %cst_25 = arith.constant dense<0.000000e+00> : vector<8x8xf32>
    %46 = tpu.matmul %43, %44, %cst_25 {dimension_numbers = #tpu.dot_dimension_numbers<[1], [1], [0], [0], [0, 0, 1, 0], [], []>} : vector<8x8xf32>, vector<8x8xf32>, vector<8x8xf32> -> vector<8x8xf32>
    %cst_26 = arith.constant dense<0xFF800000> : vector<8xf32>
    %47 = vector.multi_reduction <maximumf>, %46, %cst_26 [1] : vector<8x8xf32> to vector<8xf32>
    %48 = vector.shape_cast %47 : vector<8xf32> to vector<8x1xf32>
    %49 = vector.broadcast %48 : vector<8x1xf32> to vector<8x8xf32>
    %50 = arith.subf %46, %49 : vector<8x8xf32>
    %51 = math.exp %50 : vector<8x8xf32>
    %cst_27 = arith.constant dense<0.000000e+00> : vector<8xf32>
    %52 = vector.multi_reduction <add>, %51, %cst_27 [1] : vector<8x8xf32> to vector<8xf32>
    %53 = vector.shape_cast %52 : vector<8xf32> to vector<8x1xf32>
    %cst_28 = arith.constant dense<0.000000e+00> : vector<8x8xf32>
    %54 = tpu.matmul %51, %45, %cst_28 {dimension_numbers = #tpu.dot_dimension_numbers<[1], [0], [0], [1], [0, 0, 1, 1], [], []>} : vector<8x8xf32>, vector<8x8xf32>, vector<8x8xf32> -> vector<8x8xf32>
    %55 = vector.broadcast %53 : vector<8x1xf32> to vector<8x8xf32>
    %56 = arith.divf %54, %55 : vector<8x8xf32>
    %c0_29 = arith.constant 0 : index
    %c16_30 = arith.constant 16 : index
    %57 = vector.load %arg19[%c0_29, %c16_30] : memref<8x32xf32, #tpu.memory_space<vmem>>, vector<8x8xf32>
    tpu.vector_store %arg19[%c0_29, %c16_30], %56 {strides = array<i32>} : memref<8x32xf32, #tpu.memory_space<vmem>>, vector<8x8xf32>,
    %58 = vector.extract_strided_slice %12 {offsets = [0, 24], sizes = [8, 8], strides = [1, 1]} : vector<8x32xf32> to vector<8x8xf32>
    %c0_31 = arith.constant 0 : index
    %c24 = arith.constant 24 : index
    %59 = vector.load %arg18[%c0_31, %c24] : memref<8x64xf32, #tpu.memory_space<vmem>>, vector<8x8xf32>
    %c0_32 = arith.constant 0 : index
    %c56 = arith.constant 56 : index
    %60 = vector.load %arg18[%c0_32, %c56] : memref<8x64xf32, #tpu.memory_space<vmem>>, vector<8x8xf32>
    %cst_33 = arith.constant dense<0.000000e+00> : vector<8x8xf32>
    %61 = tpu.matmul %58, %59, %cst_33 {dimension_numbers = #tpu.dot_dimension_numbers<[1], [1], [0], [0], [0, 0, 1, 0], [], []>} : vector<8x8xf32>, vector<8x8xf32>, vector<8x8xf32> -> vector<8x8xf32>
    %cst_34 = arith.constant dense<0xFF800000> : vector<8xf32>
    %62 = vector.multi_reduction <maximumf>, %61, %cst_34 [1] : vector<8x8xf32> to vector<8xf32>
    %63 = vector.shape_cast %62 : vector<8xf32> to vector<8x1xf32>
    %64 = vector.broadcast %63 : vector<8x1xf32> to vector<8x8xf32>
    %65 = arith.subf %61, %64 : vector<8x8xf32>
    %66 = math.exp %65 : vector<8x8xf32>
    %cst_35 = arith.constant dense<0.000000e+00> : vector<8xf32>
    %67 = vector.multi_reduction <add>, %66, %cst_35 [1] : vector<8x8xf32> to vector<8xf32>
    %68 = vector.shape_cast %67 : vector<8xf32> to vector<8x1xf32>
    %cst_36 = arith.constant dense<0.000000e+00> : vector<8x8xf32>
    %69 = tpu.matmul %66, %60, %cst_36 {dimension_numbers = #tpu.dot_dimension_numbers<[1], [0], [0], [1], [0, 0, 1, 1], [], []>} : vector<8x8xf32>, vector<8x8xf32>, vector<8x8xf32> -> vector<8x8xf32>
    %70 = vector.broadcast %68 : vector<8x1xf32> to vector<8x8xf32>
    %71 = arith.divf %69, %70 : vector<8x8xf32>
    %c0_37 = arith.constant 0 : index
    %c24_38 = arith.constant 24 : index
    %72 = vector.load %arg19[%c0_37, %c24_38] : memref<8x32xf32, #tpu.memory_space<vmem>>, vector<8x8xf32>
    tpu.vector_store %arg19[%c0_37, %c24_38], %71 {strides = array<i32>} : memref<8x32xf32, #tpu.memory_space<vmem>>, vector<8x8xf32>,
    %c0_39 = arith.constant 0 : index
    %c0_40 = arith.constant 0 : index
    %73 = vector.load %arg19[%c0_39, %c0_40] : memref<8x32xf32, #tpu.memory_space<vmem>>, vector<8x32xf32>
    %c0_41 = arith.constant 0 : index
    %c0_42 = arith.constant 0 : index
    %74 = vector.load %arg7[%c0_41, %c0_42] : memref<32x32xf32, #tpu.memory_space<vmem>>, vector<32x32xf32>
    %cst_43 = arith.constant dense<0.000000e+00> : vector<8x32xf32>
    %75 = tpu.matmul %73, %74, %cst_43 {dimension_numbers = #tpu.dot_dimension_numbers<[1], [0], [0], [1], [0, 0, 1, 1], [], []>} : vector<8x32xf32>, vector<32x32xf32>, vector<8x32xf32> -> vector<8x32xf32>
    %c0_44 = arith.constant 0 : index
    %c0_45 = arith.constant 0 : index
    %76 = vector.load %arg8[%c0_44, %c0_45] : memref<1x32xf32, #tpu.memory_space<vmem>>, vector<1x32xf32>
    %77 = vector.broadcast %76 : vector<1x32xf32> to vector<8x32xf32>
    %78 = arith.addf %75, %77 : vector<8x32xf32>
    %79 = arith.addf %7, %78 : vector<8x32xf32>
    %cst_46 = arith.constant dense<0.000000e+00> : vector<8xf32>
    %80 = vector.multi_reduction <add>, %79, %cst_46 [1] : vector<8x32xf32> to vector<8xf32>
    %81 = vector.shape_cast %80 : vector<8xf32> to vector<8x1xf32>
    %cst_47 = arith.constant 3.200000e+01 : f32
    %82 = vector.broadcast %cst_47 : f32 to vector<8x1xf32>
    %83 = arith.divf %81, %82 : vector<8x1xf32>
    %84 = vector.broadcast %83 : vector<8x1xf32> to vector<8x32xf32>
    %85 = arith.subf %79, %84 : vector<8x32xf32>
    %86 = arith.mulf %85, %85 : vector<8x32xf32>
    %cst_48 = arith.constant dense<0.000000e+00> : vector<8xf32>
    %87 = vector.multi_reduction <add>, %86, %cst_48 [1] : vector<8x32xf32> to vector<8xf32>
    %88 = vector.shape_cast %87 : vector<8xf32> to vector<8x1xf32>
    %cst_49 = arith.constant 3.200000e+01 : f32
    %89 = vector.broadcast %cst_49 : f32 to vector<8x1xf32>
    %90 = arith.divf %88, %89 : vector<8x1xf32>
    %91 = vector.broadcast %83 : vector<8x1xf32> to vector<8x32xf32>
    %92 = arith.subf %79, %91 : vector<8x32xf32>
    %cst_50 = arith.constant 9.99999974E-6 : f32
    %93 = vector.broadcast %cst_50 : f32 to vector<8x1xf32>
    %94 = arith.addf %90, %93 : vector<8x1xf32>
    %95 = math.rsqrt %94 : vector<8x1xf32>
    %96 = vector.broadcast %95 : vector<8x1xf32> to vector<8x32xf32>
    %97 = arith.mulf %92, %96 : vector<8x32xf32>
    %c0_51 = arith.constant 0 : index
    %c0_52 = arith.constant 0 : index
    %98 = vector.load %arg9[%c0_51, %c0_52] : memref<1x32xf32, #tpu.memory_space<vmem>>, vector<1x32xf32>
    %99 = vector.broadcast %98 : vector<1x32xf32> to vector<8x32xf32>
    %100 = arith.mulf %97, %99 : vector<8x32xf32>
    %c0_53 = arith.constant 0 : index
    %c0_54 = arith.constant 0 : index
    %101 = vector.load %arg10[%c0_53, %c0_54] : memref<1x32xf32, #tpu.memory_space<vmem>>, vector<1x32xf32>
    %102 = vector.broadcast %101 : vector<1x32xf32> to vector<8x32xf32>
    %103 = arith.addf %100, %102 : vector<8x32xf32>
    %c0_55 = arith.constant 0 : index
    %c0_56 = arith.constant 0 : index
    %104 = vector.load %arg11[%c0_55, %c0_56] : memref<32x64xf32, #tpu.memory_space<vmem>>, vector<32x64xf32>
    %cst_57 = arith.constant dense<0.000000e+00> : vector<8x64xf32>
    %105 = tpu.matmul %103, %104, %cst_57 {dimension_numbers = #tpu.dot_dimension_numbers<[1], [0], [0], [1], [0, 0, 1, 1], [], []>} : vector<8x32xf32>, vector<32x64xf32>, vector<8x64xf32> -> vector<8x64xf32>
    %c0_58 = arith.constant 0 : index
    %c0_59 = arith.constant 0 : index
    %106 = vector.load %arg12[%c0_58, %c0_59] : memref<1x64xf32, #tpu.memory_space<vmem>>, vector<1x64xf32>
    %107 = vector.broadcast %106 : vector<1x64xf32> to vector<8x64xf32>
    %108 = arith.addf %105, %107 : vector<8x64xf32>
    %cst_60 = arith.constant 0.000000e+00 : f32
    %109 = vector.broadcast %cst_60 : f32 to vector<8x64xf32>
    %110 = arith.maximumf %108, %109 : vector<8x64xf32>
    %c0_61 = arith.constant 0 : index
    %c0_62 = arith.constant 0 : index
    %111 = vector.load %arg13[%c0_61, %c0_62] : memref<64x32xf32, #tpu.memory_space<vmem>>, vector<64x32xf32>
    %cst_63 = arith.constant dense<0.000000e+00> : vector<8x32xf32>
    %112 = tpu.matmul %110, %111, %cst_63 {dimension_numbers = #tpu.dot_dimension_numbers<[1], [0], [0], [1], [0, 0, 1, 1], [], []>} : vector<8x64xf32>, vector<64x32xf32>, vector<8x32xf32> -> vector<8x32xf32>
    %c0_64 = arith.constant 0 : index
    %c0_65 = arith.constant 0 : index
    %113 = vector.load %arg14[%c0_64, %c0_65] : memref<1x32xf32, #tpu.memory_space<vmem>>, vector<1x32xf32>
    %114 = vector.broadcast %113 : vector<1x32xf32> to vector<8x32xf32>
    %115 = arith.addf %112, %114 : vector<8x32xf32>
    %116 = arith.addf %103, %115 : vector<8x32xf32>
    %cst_66 = arith.constant dense<0.000000e+00> : vector<8xf32>
    %117 = vector.multi_reduction <add>, %116, %cst_66 [1] : vector<8x32xf32> to vector<8xf32>
    %118 = vector.shape_cast %117 : vector<8xf32> to vector<8x1xf32>
    %cst_67 = arith.constant 3.200000e+01 : f32
    %119 = vector.broadcast %cst_67 : f32 to vector<8x1xf32>
    %120 = arith.divf %118, %119 : vector<8x1xf32>
    %121 = vector.broadcast %120 : vector<8x1xf32> to vector<8x32xf32>
    %122 = arith.subf %116, %121 : vector<8x32xf32>
    %123 = arith.mulf %122, %122 : vector<8x32xf32>
    %cst_68 = arith.constant dense<0.000000e+00> : vector<8xf32>
    %124 = vector.multi_reduction <add>, %123, %cst_68 [1] : vector<8x32xf32> to vector<8xf32>
    %125 = vector.shape_cast %124 : vector<8xf32> to vector<8x1xf32>
    %cst_69 = arith.constant 3.200000e+01 : f32
    %126 = vector.broadcast %cst_69 : f32 to vector<8x1xf32>
    %127 = arith.divf %125, %126 : vector<8x1xf32>
    %128 = vector.broadcast %120 : vector<8x1xf32> to vector<8x32xf32>
    %129 = arith.subf %116, %128 : vector<8x32xf32>
    %cst_70 = arith.constant 9.99999974E-6 : f32
    %130 = vector.broadcast %cst_70 : f32 to vector<8x1xf32>
    %131 = arith.addf %127, %130 : vector<8x1xf32>
    %132 = math.rsqrt %131 : vector<8x1xf32>
    %133 = vector.broadcast %132 : vector<8x1xf32> to vector<8x32xf32>
    %134 = arith.mulf %129, %133 : vector<8x32xf32>
    %c0_71 = arith.constant 0 : index
    %c0_72 = arith.constant 0 : index
    %135 = vector.load %arg15[%c0_71, %c0_72] : memref<1x32xf32, #tpu.memory_space<vmem>>, vector<1x32xf32>
    %136 = vector.broadcast %135 : vector<1x32xf32> to vector<8x32xf32>
    %137 = arith.mulf %134, %136 : vector<8x32xf32>
    %c0_73 = arith.constant 0 : index
    %c0_74 = arith.constant 0 : index
    %138 = vector.load %arg16[%c0_73, %c0_74] : memref<1x32xf32, #tpu.memory_space<vmem>>, vector<1x32xf32>
    %139 = vector.broadcast %138 : vector<1x32xf32> to vector<8x32xf32>
    %140 = arith.addf %137, %139 : vector<8x32xf32>
    %141 = vector.shape_cast %140 : vector<8x32xf32> to vector<1x8x32xf32>
    %c0_75 = arith.constant 0 : index
    %c0_76 = arith.constant 0 : index
    %c0_77 = arith.constant 0 : index
    %142 = vector.load %arg17[%c0_75, %c0_76, %c0_77] : memref<1x8x32xf32, #tpu.memory_space<vmem>>, vector<1x8x32xf32>
    tpu.vector_store %arg17[%c0_75, %c0_76, %c0_77], %141 {strides = array<i32>} : memref<1x8x32xf32, #tpu.memory_space<vmem>>, vector<1x8x32xf32>,
    return
  }
  func.func @transform_0(%arg0: i32, %arg1: i32) -> (i32, i32, i32) {
    %c0_i32 = arith.constant 0 : i32
    %c0_i32_0 = arith.constant 0 : i32
    %c0_i32_1 = arith.constant 0 : i32
    return %arg0, %c0_i32, %c0_i32_0 : i32, i32, i32
  }
  func.func @transform_1(%arg0: i32, %arg1: i32) -> (i32, i32) {
    %c0_i32 = arith.constant 0 : i32
    %c0_i32_0 = arith.constant 0 : i32
    %c0_i32_1 = arith.constant 0 : i32
    return %c0_i32, %c0_i32_0 : i32, i32
  }
  func.func @transform_2(%arg0: i32, %arg1: i32) -> (i32, i32) {
    %c0_i32 = arith.constant 0 : i32
    %c0_i32_0 = arith.constant 0 : i32
    %c0_i32_1 = arith.constant 0 : i32
    return %c0_i32, %c0_i32_0 : i32, i32
  }
  func.func @transform_3(%arg0: i32, %arg1: i32) -> (i32, i32) {
    %c0_i32 = arith.constant 0 : i32
    %c0_i32_0 = arith.constant 0 : i32
    %c0_i32_1 = arith.constant 0 : i32
    return %c0_i32, %c0_i32_0 : i32, i32
  }
  func.func @transform_4(%arg0: i32, %arg1: i32) -> (i32, i32) {
    %c0_i32 = arith.constant 0 : i32
    %c0_i32_0 = arith.constant 0 : i32
    %c0_i32_1 = arith.constant 0 : i32
    return %c0_i32, %c0_i32_0 : i32, i32
  }
  func.func @transform_5(%arg0: i32, %arg1: i32) -> (i32, i32) {
    %c0_i32 = arith.constant 0 : i32
    %c0_i32_0 = arith.constant 0 : i32
    %c0_i32_1 = arith.constant 0 : i32
    return %c0_i32, %c0_i32_0 : i32, i32
  }
  func.func @transform_6(%arg0: i32, %arg1: i32) -> (i32, i32) {
    %c0_i32 = arith.constant 0 : i32
    %c0_i32_0 = arith.constant 0 : i32
    %c0_i32_1 = arith.constant 0 : i32
    return %c0_i32, %c0_i32_0 : i32, i32
  }
  func.func @transform_7(%arg0: i32, %arg1: i32) -> (i32, i32) {
    %c0_i32 = arith.constant 0 : i32
    %c0_i32_0 = arith.constant 0 : i32
    %c0_i32_1 = arith.constant 0 : i32
    return %c0_i32, %c0_i32_0 : i32, i32
  }
  func.func @transform_8(%arg0: i32, %arg1: i32) -> (i32, i32) {
    %c0_i32 = arith.constant 0 : i32
    %c0_i32_0 = arith.constant 0 : i32
    %c0_i32_1 = arith.constant 0 : i32
    return %c0_i32, %c0_i32_0 : i32, i32
  }
  func.func @transform_9(%arg0: i32, %arg1: i32) -> (i32, i32) {
    %c0_i32 = arith.constant 0 : i32
    %c0_i32_0 = arith.constant 0 : i32
    %c0_i32_1 = arith.constant 0 : i32
    return %c0_i32, %c0_i32_0 : i32, i32
  }
  func.func @transform_10(%arg0: i32, %arg1: i32) -> (i32, i32) {
    %c0_i32 = arith.constant 0 : i32
    %c0_i32_0 = arith.constant 0 : i32
    %c0_i32_1 = arith.constant 0 : i32
    return %c0_i32, %c0_i32_0 : i32, i32
  }
  func.func @transform_11(%arg0: i32, %arg1: i32) -> (i32, i32) {
    %c0_i32 = arith.constant 0 : i32
    %c0_i32_0 = arith.constant 0 : i32
    %c0_i32_1 = arith.constant 0 : i32
    return %c0_i32, %c0_i32_0 : i32, i32
  }
  func.func @transform_12(%arg0: i32, %arg1: i32) -> (i32, i32) {
    %c0_i32 = arith.constant 0 : i32
    %c0_i32_0 = arith.constant 0 : i32
    %c0_i32_1 = arith.constant 0 : i32
    return %c0_i32, %c0_i32_0 : i32, i32
  }
  func.func @transform_13(%arg0: i32, %arg1: i32) -> (i32, i32) {
    %c0_i32 = arith.constant 0 : i32
    %c0_i32_0 = arith.constant 0 : i32
    %c0_i32_1 = arith.constant 0 : i32
    return %c0_i32, %c0_i32_0 : i32, i32
  }
  func.func @transform_14(%arg0: i32, %arg1: i32) -> (i32, i32) {
    %c0_i32 = arith.constant 0 : i32
    %c0_i32_0 = arith.constant 0 : i32
    %c0_i32_1 = arith.constant 0 : i32
    return %c0_i32, %c0_i32_0 : i32, i32
  }
  func.func @transform_15(%arg0: i32, %arg1: i32) -> (i32, i32, i32) {
    %c0_i32 = arith.constant 0 : i32
    %c0_i32_0 = arith.constant 0 : i32
    return %arg0, %arg1, %c0_i32 : i32, i32, i32
  }
}

module attributes {stable_mosaic.version = 11 : i64} {
  func.func @_encoder_kernel(%arg0: i32, %arg1: i32, %arg2: memref<1x8x32xf32, #tpu.memory_space<vmem>>, %arg3: memref<32x32xf32, #tpu.memory_space<vmem>>, %arg4: memref<1x32xf32, #tpu.memory_space<vmem>>, %arg5: memref<32x64xf32, #tpu.memory_space<vmem>>, %arg6: memref<1x64xf32, #tpu.memory_space<vmem>>, %arg7: memref<32x32xf32, #tpu.memory_space<vmem>>, %arg8: memref<1x32xf32, #tpu.memory_space<vmem>>, %arg9: memref<1x32xf32, #tpu.memory_space<vmem>>, %arg10: memref<1x32xf32, #tpu.memory_space<vmem>>, %arg11: memref<32x64xf32, #tpu.memory_space<vmem>>, %arg12: memref<1x64xf32, #tpu.memory_space<vmem>>, %arg13: memref<64x32xf32, #tpu.memory_space<vmem>>, %arg14: memref<1x32xf32, #tpu.memory_space<vmem>>, %arg15: memref<1x32xf32, #tpu.memory_space<vmem>>, %arg16: memref<1x32xf32, #tpu.memory_space<vmem>>, %arg17: memref<1x8x32xf32, #tpu.memory_space<vmem>>, %arg18: memref<8x64xf32, #tpu.memory_space<vmem>>, %arg19: memref<8x32xf32, #tpu.memory_space<vmem>>) attributes {dimension_semantics = [#tpu.dimension_semantics<parallel>, #tpu.dimension_semantics<arbitrary>], iteration_bounds = array<i64: 2, 1>, scalar_prefetch = 0 : i64, scratch_operands = 2 : i64, tpu.core_type = #tpu.core_type<tc>, window_params = [{transform_indices = @transform_0, window_bounds = array<i64: 1, 8, 32>}, {pipeline_mode = #tpu.pipeline_mode<synchronous>, transform_indices = @transform_1, window_bounds = array<i64: 32, 32>}, {pipeline_mode = #tpu.pipeline_mode<synchronous>, transform_indices = @transform_2, window_bounds = array<i64: 1, 32>}, {pipeline_mode = #tpu.pipeline_mode<synchronous>, transform_indices = @transform_3, window_bounds = array<i64: 32, 64>}, {pipeline_mode = #tpu.pipeline_mode<synchronous>, transform_indices = @transform_4, window_bounds = array<i64: 1, 64>}, {pipeline_mode = #tpu.pipeline_mode<synchronous>, transform_indices = @transform_5, window_bounds = array<i64: 32, 32>}, {pipeline_mode = #tpu.pipeline_mode<synchronous>, transform_indices = @transform_6, window_bounds = array<i64: 1, 32>}, {pipeline_mode = #tpu.pipeline_mode<synchronous>, transform_indices = @transform_7, window_bounds = array<i64: 1, 32>}, {pipeline_mode = #tpu.pipeline_mode<synchronous>, transform_indices = @transform_8, window_bounds = array<i64: 1, 32>}, {pipeline_mode = #tpu.pipeline_mode<synchronous>, transform_indices = @transform_9, window_bounds = array<i64: 32, 64>}, {pipeline_mode = #tpu.pipeline_mode<synchronous>, transform_indices = @transform_10, window_bounds = array<i64: 1, 64>}, {pipeline_mode = #tpu.pipeline_mode<synchronous>, transform_indices = @transform_11, window_bounds = array<i64: 64, 32>}, {pipeline_mode = #tpu.pipeline_mode<synchronous>, transform_indices = @transform_12, window_bounds = array<i64: 1, 32>}, {pipeline_mode = #tpu.pipeline_mode<synchronous>, transform_indices = @transform_13, window_bounds = array<i64: 1, 32>}, {pipeline_mode = #tpu.pipeline_mode<synchronous>, transform_indices = @transform_14, window_bounds = array<i64: 1, 32>}, {transform_indices = @transform_15, window_bounds = array<i64: 1, 8, 32>}]} {
    %c0_i32 = arith.constant 0 : i32
    %0 = arith.cmpi eq, %arg1, %c0_i32 : i32
    %1 = arith.extui %0 : i1 to i32
    %c0_i32_0 = arith.constant 0 : i32
    %2 = arith.cmpi ne, %1, %c0_i32_0 : i32
    scf.if %2 {
      %c0_78 = arith.constant 0 : index
      %c0_79 = arith.constant 0 : index
      %c0_80 = arith.constant 0 : index
      %143 = vector.load %arg2[%c0_78, %c0_79, %c0_80] : memref<1x8x32xf32, #tpu.memory_space<vmem>>, vector<1x8x32xf32>
      %144 = vector.shape_cast %143 : vector<1x8x32xf32> to vector<8x32xf32>
      %c0_81 = arith.constant 0 : index
      %c0_82 = arith.constant 0 : index
      %145 = vector.load %arg5[%c0_81, %c0_82] : memref<32x64xf32, #tpu.memory_space<vmem>>, vector<32x64xf32>
      %cst_83 = arith.constant dense<0.000000e+00> : vector<8x64xf32>
      %146 = tpu.matmul %144, %145, %cst_83 {dimension_numbers = #tpu.dot_dimension_numbers<[1], [0], [0], [1], [0, 0, 1, 1], [], []>} : vector<8x32xf32>, vector<32x64xf32>, vector<8x64xf32> -> vector<8x64xf32>
      %c0_84 = arith.constant 0 : index
      %c0_85 = arith.constant 0 : index
      %147 = vector.load %arg6[%c0_84, %c0_85] : memref<1x64xf32, #tpu.memory_space<vmem>>, vector<1x64xf32>
      %148 = vector.broadcast %147 : vector<1x64xf32> to vector<8x64xf32>
      %149 = arith.addf %146, %148 : vector<8x64xf32>
      %c0_86 = arith.constant 0 : index
      %c0_87 = arith.constant 0 : index
      %150 = vector.load %arg18[%c0_86, %c0_87] : memref<8x64xf32, #tpu.memory_space<vmem>>, vector<8x64xf32>
      tpu.vector_store %arg18[%c0_86, %c0_87], %149 {strides = array<i32>} : memref<8x64xf32, #tpu.memory_space<vmem>>, vector<8x64xf32>,
    } else {
    }
    %c8_i32 = arith.constant 8 : i32
    %3 = arith.muli %arg1, %c8_i32 : i32
    %4 = tpu.assume_multiple %3, 8 : i32
    %c0 = arith.constant 0 : index
    %5 = arith.index_cast %4 : i32 to index
    %c0_1 = arith.constant 0 : index
    %6 = vector.load %arg2[%c0, %5, %c0_1] : memref<1x8x32xf32, #tpu.memory_space<vmem>>, vector<1x8x32xf32>
    %7 = vector.shape_cast %6 : vector<1x8x32xf32> to vector<8x32xf32>
    %c0_2 = arith.constant 0 : index
    %c0_3 = arith.constant 0 : index
    %8 = vector.load %arg3[%c0_2, %c0_3] : memref<32x32xf32, #tpu.memory_space<vmem>>, vector<32x32xf32>
    %cst = arith.constant dense<0.000000e+00> : vector<8x32xf32>
    %9 = tpu.matmul %7, %8, %cst {dimension_numbers = #tpu.dot_dimension_numbers<[1], [0], [0], [1], [0, 0, 1, 1], [], []>} : vector<8x32xf32>, vector<32x32xf32>, vector<8x32xf32> -> vector<8x32xf32>
    %c0_4 = arith.constant 0 : index
    %c0_5 = arith.constant 0 : index
    %10 = vector.load %arg4[%c0_4, %c0_5] : memref<1x32xf32, #tpu.memory_space<vmem>>, vector<1x32xf32>
    %11 = vector.broadcast %10 : vector<1x32xf32> to vector<8x32xf32>
    %12 = arith.addf %9, %11 : vector<8x32xf32>
    %13 = vector.extract_strided_slice %12 {offsets = [0, 0], sizes = [8, 8], strides = [1, 1]} : vector<8x32xf32> to vector<8x8xf32>
    %c0_6 = arith.constant 0 : index
    %c0_7 = arith.constant 0 : index
    %14 = vector.load %arg18[%c0_6, %c0_7] : memref<8x64xf32, #tpu.memory_space<vmem>>, vector<8x8xf32>
    %c0_8 = arith.constant 0 : index
    %c32 = arith.constant 32 : index
    %15 = vector.load %arg18[%c0_8, %c32] : memref<8x64xf32, #tpu.memory_space<vmem>>, vector<8x8xf32>
    %cst_9 = arith.constant dense<0.000000e+00> : vector<8x8xf32>
    %16 = tpu.matmul %13, %14, %cst_9 {dimension_numbers = #tpu.dot_dimension_numbers<[1], [1], [0], [0], [0, 0, 1, 0], [], []>} : vector<8x8xf32>, vector<8x8xf32>, vector<8x8xf32> -> vector<8x8xf32>
    %cst_10 = arith.constant dense<0xFF800000> : vector<8xf32>
    %17 = vector.multi_reduction <maximumf>, %16, %cst_10 [1] : vector<8x8xf32> to vector<8xf32>
    %18 = vector.shape_cast %17 : vector<8xf32> to vector<8x1xf32>
    %19 = vector.broadcast %18 : vector<8x1xf32> to vector<8x8xf32>
    %20 = arith.subf %16, %19 : vector<8x8xf32>
    %21 = math.exp %20 : vector<8x8xf32>
    %cst_11 = arith.constant dense<0.000000e+00> : vector<8xf32>
    %22 = vector.multi_reduction <add>, %21, %cst_11 [1] : vector<8x8xf32> to vector<8xf32>
    %23 = vector.shape_cast %22 : vector<8xf32> to vector<8x1xf32>
    %cst_12 = arith.constant dense<0.000000e+00> : vector<8x8xf32>
    %24 = tpu.matmul %21, %15, %cst_12 {dimension_numbers = #tpu.dot_dimension_numbers<[1], [0], [0], [1], [0, 0, 1, 1], [], []>} : vector<8x8xf32>, vector<8x8xf32>, vector<8x8xf32> -> vector<8x8xf32>
    %25 = vector.broadcast %23 : vector<8x1xf32> to vector<8x8xf32>
    %26 = arith.divf %24, %25 : vector<8x8xf32>
    %c0_13 = arith.constant 0 : index
    %c0_14 = arith.constant 0 : index
    %27 = vector.load %arg19[%c0_13, %c0_14] : memref<8x32xf32, #tpu.memory_space<vmem>>, vector<8x8xf32>
    tpu.vector_store %arg19[%c0_13, %c0_14], %26 {strides = array<i32>} : memref<8x32xf32, #tpu.memory_space<vmem>>, vector<8x8xf32>,
    %28 = vector.extract_strided_slice %12 {offsets = [0, 8], sizes = [8, 8], strides = [1, 1]} : vector<8x32xf32> to vector<8x8xf32>
    %c0_15 = arith.constant 0 : index
    %c8 = arith.constant 8 : index
    %29 = vector.load %arg18[%c0_15, %c8] : memref<8x64xf32, #tpu.memory_space<vmem>>, vector<8x8xf32>
    %c0_16 = arith.constant 0 : index
    %c40 = arith.constant 40 : index
    %30 = vector.load %arg18[%c0_16, %c40] : memref<8x64xf32, #tpu.memory_space<vmem>>, vector<8x8xf32>
    %cst_17 = arith.constant dense<0.000000e+00> : vector<8x8xf32>
    %31 = tpu.matmul %28, %29, %cst_17 {dimension_numbers = #tpu.dot_dimension_numbers<[1], [1], [0], [0], [0, 0, 1, 0], [], []>} : vector<8x8xf32>, vector<8x8xf32>, vector<8x8xf32> -> vector<8x8xf32>
    %cst_18 = arith.constant dense<0xFF800000> : vector<8xf32>
    %32 = vector.multi_reduction <maximumf>, %31, %cst_18 [1] : vector<8x8xf32> to vector<8xf32>
    %33 = vector.shape_cast %32 : vector<8xf32> to vector<8x1xf32>
    %34 = vector.broadcast %33 : vector<8x1xf32> to vector<8x8xf32>
    %35 = arith.subf %31, %34 : vector<8x8xf32>
    %36 = math.exp %35 : vector<8x8xf32>
    %cst_19 = arith.constant dense<0.000000e+00> : vector<8xf32>
    %37 = vector.multi_reduction <add>, %36, %cst_19 [1] : vector<8x8xf32> to vector<8xf32>
    %38 = vector.shape_cast %37 : vector<8xf32> to vector<8x1xf32>
    %cst_20 = arith.constant dense<0.000000e+00> : vector<8x8xf32>
    %39 = tpu.matmul %36, %30, %cst_20 {dimension_numbers = #tpu.dot_dimension_numbers<[1], [0], [0], [1], [0, 0, 1, 1], [], []>} : vector<8x8xf32>, vector<8x8xf32>, vector<8x8xf32> -> vector<8x8xf32>
    %40 = vector.broadcast %38 : vector<8x1xf32> to vector<8x8xf32>
    %41 = arith.divf %39, %40 : vector<8x8xf32>
    %c0_21 = arith.constant 0 : index
    %c8_22 = arith.constant 8 : index
    %42 = vector.load %arg19[%c0_21, %c8_22] : memref<8x32xf32, #tpu.memory_space<vmem>>, vector<8x8xf32>
    tpu.vector_store %arg19[%c0_21, %c8_22], %41 {strides = array<i32>} : memref<8x32xf32, #tpu.memory_space<vmem>>, vector<8x8xf32>,
    %43 = vector.extract_strided_slice %12 {offsets = [0, 16], sizes = [8, 8], strides = [1, 1]} : vector<8x32xf32> to vector<8x8xf32>
    %c0_23 = arith.constant 0 : index
    %c16 = arith.constant 16 : index
    %44 = vector.load %arg18[%c0_23, %c16] : memref<8x64xf32, #tpu.memory_space<vmem>>, vector<8x8xf32>
    %c0_24 = arith.constant 0 : index
    %c48 = arith.constant 48 : index
    %45 = vector.load %arg18[%c0_24, %c48] : memref<8x64xf32, #tpu.memory_space<vmem>>, vector<8x8xf32>
    %cst_25 = arith.constant dense<0.000000e+00> : vector<8x8xf32>
    %46 = tpu.matmul %43, %44, %cst_25 {dimension_numbers = #tpu.dot_dimension_numbers<[1], [1], [0], [0], [0, 0, 1, 0], [], []>} : vector<8x8xf32>, vector<8x8xf32>, vector<8x8xf32> -> vector<8x8xf32>
    %cst_26 = arith.constant dense<0xFF800000> : vector<8xf32>
    %47 = vector.multi_reduction <maximumf>, %46, %cst_26 [1] : vector<8x8xf32> to vector<8xf32>
    %48 = vector.shape_cast %47 : vector<8xf32> to vector<8x1xf32>
    %49 = vector.broadcast %48 : vector<8x1xf32> to vector<8x8xf32>
    %50 = arith.subf %46, %49 : vector<8x8xf32>
    %51 = math.exp %50 : vector<8x8xf32>
    %cst_27 = arith.constant dense<0.000000e+00> : vector<8xf32>
    %52 = vector.multi_reduction <add>, %51, %cst_27 [1] : vector<8x8xf32> to vector<8xf32>
    %53 = vector.shape_cast %52 : vector<8xf32> to vector<8x1xf32>
    %cst_28 = arith.constant dense<0.000000e+00> : vector<8x8xf32>
    %54 = tpu.matmul %51, %45, %cst_28 {dimension_numbers = #tpu.dot_dimension_numbers<[1], [0], [0], [1], [0, 0, 1, 1], [], []>} : vector<8x8xf32>, vector<8x8xf32>, vector<8x8xf32> -> vector<8x8xf32>
    %55 = vector.broadcast %53 : vector<8x1xf32> to vector<8x8xf32>
    %56 = arith.divf %54, %55 : vector<8x8xf32>
    %c0_29 = arith.constant 0 : index
    %c16_30 = arith.constant 16 : index
    %57 = vector.load %arg19[%c0_29, %c16_30] : memref<8x32xf32, #tpu.memory_space<vmem>>, vector<8x8xf32>
    tpu.vector_store %arg19[%c0_29, %c16_30], %56 {strides = array<i32>} : memref<8x32xf32, #tpu.memory_space<vmem>>, vector<8x8xf32>,
    %58 = vector.extract_strided_slice %12 {offsets = [0, 24], sizes = [8, 8], strides = [1, 1]} : vector<8x32xf32> to vector<8x8xf32>
    %c0_31 = arith.constant 0 : index
    %c24 = arith.constant 24 : index
    %59 = vector.load %arg18[%c0_31, %c24] : memref<8x64xf32, #tpu.memory_space<vmem>>, vector<8x8xf32>
    %c0_32 = arith.constant 0 : index
    %c56 = arith.constant 56 : index
    %60 = vector.load %arg18[%c0_32, %c56] : memref<8x64xf32, #tpu.memory_space<vmem>>, vector<8x8xf32>
    %cst_33 = arith.constant dense<0.000000e+00> : vector<8x8xf32>
    %61 = tpu.matmul %58, %59, %cst_33 {dimension_numbers = #tpu.dot_dimension_numbers<[1], [1], [0], [0], [0, 0, 1, 0], [], []>} : vector<8x8xf32>, vector<8x8xf32>, vector<8x8xf32> -> vector<8x8xf32>
    %cst_34 = arith.constant dense<0xFF800000> : vector<8xf32>
    %62 = vector.multi_reduction <maximumf>, %61, %cst_34 [1] : vector<8x8xf32> to vector<8xf32>
    %63 = vector.shape_cast %62 : vector<8xf32> to vector<8x1xf32>
    %64 = vector.broadcast %63 : vector<8x1xf32> to vector<8x8xf32>
    %65 = arith.subf %61, %64 : vector<8x8xf32>
    %66 = math.exp %65 : vector<8x8xf32>
    %cst_35 = arith.constant dense<0.000000e+00> : vector<8xf32>
    %67 = vector.multi_reduction <add>, %66, %cst_35 [1] : vector<8x8xf32> to vector<8xf32>
    %68 = vector.shape_cast %67 : vector<8xf32> to vector<8x1xf32>
    %cst_36 = arith.constant dense<0.000000e+00> : vector<8x8xf32>
    %69 = tpu.matmul %66, %60, %cst_36 {dimension_numbers = #tpu.dot_dimension_numbers<[1], [0], [0], [1], [0, 0, 1, 1], [], []>} : vector<8x8xf32>, vector<8x8xf32>, vector<8x8xf32> -> vector<8x8xf32>
    %70 = vector.broadcast %68 : vector<8x1xf32> to vector<8x8xf32>
    %71 = arith.divf %69, %70 : vector<8x8xf32>
    %c0_37 = arith.constant 0 : index
    %c24_38 = arith.constant 24 : index
    %72 = vector.load %arg19[%c0_37, %c24_38] : memref<8x32xf32, #tpu.memory_space<vmem>>, vector<8x8xf32>
    tpu.vector_store %arg19[%c0_37, %c24_38], %71 {strides = array<i32>} : memref<8x32xf32, #tpu.memory_space<vmem>>, vector<8x8xf32>,
    %c0_39 = arith.constant 0 : index
    %c0_40 = arith.constant 0 : index
    %73 = vector.load %arg19[%c0_39, %c0_40] : memref<8x32xf32, #tpu.memory_space<vmem>>, vector<8x32xf32>
    %c0_41 = arith.constant 0 : index
    %c0_42 = arith.constant 0 : index
    %74 = vector.load %arg7[%c0_41, %c0_42] : memref<32x32xf32, #tpu.memory_space<vmem>>, vector<32x32xf32>
    %cst_43 = arith.constant dense<0.000000e+00> : vector<8x32xf32>
    %75 = tpu.matmul %73, %74, %cst_43 {dimension_numbers = #tpu.dot_dimension_numbers<[1], [0], [0], [1], [0, 0, 1, 1], [], []>} : vector<8x32xf32>, vector<32x32xf32>, vector<8x32xf32> -> vector<8x32xf32>
    %c0_44 = arith.constant 0 : index
    %c0_45 = arith.constant 0 : index
    %76 = vector.load %arg8[%c0_44, %c0_45] : memref<1x32xf32, #tpu.memory_space<vmem>>, vector<1x32xf32>
    %77 = vector.broadcast %76 : vector<1x32xf32> to vector<8x32xf32>
    %78 = arith.addf %75, %77 : vector<8x32xf32>
    %79 = arith.addf %7, %78 : vector<8x32xf32>
    %cst_46 = arith.constant dense<0.000000e+00> : vector<8xf32>
    %80 = vector.multi_reduction <add>, %79, %cst_46 [1] : vector<8x32xf32> to vector<8xf32>
    %81 = vector.shape_cast %80 : vector<8xf32> to vector<8x1xf32>
    %cst_47 = arith.constant 3.200000e+01 : f32
    %82 = vector.broadcast %cst_47 : f32 to vector<8x1xf32>
    %83 = arith.divf %81, %82 : vector<8x1xf32>
    %84 = vector.broadcast %83 : vector<8x1xf32> to vector<8x32xf32>
    %85 = arith.subf %79, %84 : vector<8x32xf32>
    %86 = arith.mulf %85, %85 : vector<8x32xf32>
    %cst_48 = arith.constant dense<0.000000e+00> : vector<8xf32>
    %87 = vector.multi_reduction <add>, %86, %cst_48 [1] : vector<8x32xf32> to vector<8xf32>
    %88 = vector.shape_cast %87 : vector<8xf32> to vector<8x1xf32>
    %cst_49 = arith.constant 3.200000e+01 : f32
    %89 = vector.broadcast %cst_49 : f32 to vector<8x1xf32>
    %90 = arith.divf %88, %89 : vector<8x1xf32>
    %91 = vector.broadcast %83 : vector<8x1xf32> to vector<8x32xf32>
    %92 = arith.subf %79, %91 : vector<8x32xf32>
    %cst_50 = arith.constant 9.99999974E-6 : f32
    %93 = vector.broadcast %cst_50 : f32 to vector<8x1xf32>
    %94 = arith.addf %90, %93 : vector<8x1xf32>
    %95 = math.rsqrt %94 : vector<8x1xf32>
    %96 = vector.broadcast %95 : vector<8x1xf32> to vector<8x32xf32>
    %97 = arith.mulf %92, %96 : vector<8x32xf32>
    %c0_51 = arith.constant 0 : index
    %c0_52 = arith.constant 0 : index
    %98 = vector.load %arg9[%c0_51, %c0_52] : memref<1x32xf32, #tpu.memory_space<vmem>>, vector<1x32xf32>
    %99 = vector.broadcast %98 : vector<1x32xf32> to vector<8x32xf32>
    %100 = arith.mulf %97, %99 : vector<8x32xf32>
    %c0_53 = arith.constant 0 : index
    %c0_54 = arith.constant 0 : index
    %101 = vector.load %arg10[%c0_53, %c0_54] : memref<1x32xf32, #tpu.memory_space<vmem>>, vector<1x32xf32>
    %102 = vector.broadcast %101 : vector<1x32xf32> to vector<8x32xf32>
    %103 = arith.addf %100, %102 : vector<8x32xf32>
    %c0_55 = arith.constant 0 : index
    %c0_56 = arith.constant 0 : index
    %104 = vector.load %arg11[%c0_55, %c0_56] : memref<32x64xf32, #tpu.memory_space<vmem>>, vector<32x64xf32>
    %cst_57 = arith.constant dense<0.000000e+00> : vector<8x64xf32>
    %105 = tpu.matmul %103, %104, %cst_57 {dimension_numbers = #tpu.dot_dimension_numbers<[1], [0], [0], [1], [0, 0, 1, 1], [], []>} : vector<8x32xf32>, vector<32x64xf32>, vector<8x64xf32> -> vector<8x64xf32>
    %c0_58 = arith.constant 0 : index
    %c0_59 = arith.constant 0 : index
    %106 = vector.load %arg12[%c0_58, %c0_59] : memref<1x64xf32, #tpu.memory_space<vmem>>, vector<1x64xf32>
    %107 = vector.broadcast %106 : vector<1x64xf32> to vector<8x64xf32>
    %108 = arith.addf %105, %107 : vector<8x64xf32>
    %cst_60 = arith.constant 0.000000e+00 : f32
    %109 = vector.broadcast %cst_60 : f32 to vector<8x64xf32>
    %110 = arith.maximumf %108, %109 : vector<8x64xf32>
    %c0_61 = arith.constant 0 : index
    %c0_62 = arith.constant 0 : index
    %111 = vector.load %arg13[%c0_61, %c0_62] : memref<64x32xf32, #tpu.memory_space<vmem>>, vector<64x32xf32>
    %cst_63 = arith.constant dense<0.000000e+00> : vector<8x32xf32>
    %112 = tpu.matmul %110, %111, %cst_63 {dimension_numbers = #tpu.dot_dimension_numbers<[1], [0], [0], [1], [0, 0, 1, 1], [], []>} : vector<8x64xf32>, vector<64x32xf32>, vector<8x32xf32> -> vector<8x32xf32>
    %c0_64 = arith.constant 0 : index
    %c0_65 = arith.constant 0 : index
    %113 = vector.load %arg14[%c0_64, %c0_65] : memref<1x32xf32, #tpu.memory_space<vmem>>, vector<1x32xf32>
    %114 = vector.broadcast %113 : vector<1x32xf32> to vector<8x32xf32>
    %115 = arith.addf %112, %114 : vector<8x32xf32>
    %116 = arith.addf %103, %115 : vector<8x32xf32>
    %cst_66 = arith.constant dense<0.000000e+00> : vector<8xf32>
    %117 = vector.multi_reduction <add>, %116, %cst_66 [1] : vector<8x32xf32> to vector<8xf32>
    %118 = vector.shape_cast %117 : vector<8xf32> to vector<8x1xf32>
    %cst_67 = arith.constant 3.200000e+01 : f32
    %119 = vector.broadcast %cst_67 : f32 to vector<8x1xf32>
    %120 = arith.divf %118, %119 : vector<8x1xf32>
    %121 = vector.broadcast %120 : vector<8x1xf32> to vector<8x32xf32>
    %122 = arith.subf %116, %121 : vector<8x32xf32>
    %123 = arith.mulf %122, %122 : vector<8x32xf32>
    %cst_68 = arith.constant dense<0.000000e+00> : vector<8xf32>
    %124 = vector.multi_reduction <add>, %123, %cst_68 [1] : vector<8x32xf32> to vector<8xf32>
    %125 = vector.shape_cast %124 : vector<8xf32> to vector<8x1xf32>
    %cst_69 = arith.constant 3.200000e+01 : f32
    %126 = vector.broadcast %cst_69 : f32 to vector<8x1xf32>
    %127 = arith.divf %125, %126 : vector<8x1xf32>
    %128 = vector.broadcast %120 : vector<8x1xf32> to vector<8x32xf32>
    %129 = arith.subf %116, %128 : vector<8x32xf32>
    %cst_70 = arith.constant 9.99999974E-6 : f32
    %130 = vector.broadcast %cst_70 : f32 to vector<8x1xf32>
    %131 = arith.addf %127, %130 : vector<8x1xf32>
    %132 = math.rsqrt %131 : vector<8x1xf32>
    %133 = vector.broadcast %132 : vector<8x1xf32> to vector<8x32xf32>
    %134 = arith.mulf %129, %133 : vector<8x32xf32>
    %c0_71 = arith.constant 0 : index
    %c0_72 = arith.constant 0 : index
    %135 = vector.load %arg15[%c0_71, %c0_72] : memref<1x32xf32, #tpu.memory_space<vmem>>, vector<1x32xf32>
    %136 = vector.broadcast %135 : vector<1x32xf32> to vector<8x32xf32>
    %137 = arith.mulf %134, %136 : vector<8x32xf32>
    %c0_73 = arith.constant 0 : index
    %c0_74 = arith.constant 0 : index
    %138 = vector.load %arg16[%c0_73, %c0_74] : memref<1x32xf32, #tpu.memory_space<vmem>>, vector<1x32xf32>
    %139 = vector.broadcast %138 : vector<1x32xf32> to vector<8x32xf32>
    %140 = arith.addf %137, %139 : vector<8x32xf32>
    %141 = vector.shape_cast %140 : vector<8x32xf32> to vector<1x8x32xf32>
    %c0_75 = arith.constant 0 : index
    %c0_76 = arith.constant 0 : index
    %c0_77 = arith.constant 0 : index
    %142 = vector.load %arg17[%c0_75, %c0_76, %c0_77] : memref<1x8x32xf32, #tpu.memory_space<vmem>>, vector<1x8x32xf32>
    tpu.vector_store %arg17[%c0_75, %c0_76, %c0_77], %141 {strides = array<i32>} : memref<1x8x32xf32, #tpu.memory_space<vmem>>, vector<1x8x32xf32>,
    return
  }
  func.func @transform_0(%arg0: i32, %arg1: i32) -> (i32, i32, i32) {
    %c0_i32 = arith.constant 0 : i32
    %c0_i32_0 = arith.constant 0 : i32
    %c0_i32_1 = arith.constant 0 : i32
    return %arg0, %c0_i32, %c0_i32_0 : i32, i32, i32
  }
  func.func @transform_1(%arg0: i32, %arg1: i32) -> (i32, i32) {
    %c0_i32 = arith.constant 0 : i32
    %c0_i32_0 = arith.constant 0 : i32
    %c0_i32_1 = arith.constant 0 : i32
    return %c0_i32, %c0_i32_0 : i32, i32
  }
  func.func @transform_2(%arg0: i32, %arg1: i32) -> (i32, i32) {
    %c0_i32 = arith.constant 0 : i32
    %c0_i32_0 = arith.constant 0 : i32
    %c0_i32_1 = arith.constant 0 : i32
    return %c0_i32, %c0_i32_0 : i32, i32
  }
  func.func @transform_3(%arg0: i32, %arg1: i32) -> (i32, i32) {
    %c0_i32 = arith.constant 0 : i32
    %c0_i32_0 = arith.constant 0 : i32
    %c0_i32_1 = arith.constant 0 : i32
    return %c0_i32, %c0_i32_0 : i32, i32
  }
  func.func @transform_4(%arg0: i32, %arg1: i32) -> (i32, i32) {
    %c0_i32 = arith.constant 0 : i32
    %c0_i32_0 = arith.constant 0 : i32
    %c0_i32_1 = arith.constant 0 : i32
    return %c0_i32, %c0_i32_0 : i32, i32
  }
  func.func @transform_5(%arg0: i32, %arg1: i32) -> (i32, i32) {
    %c0_i32 = arith.constant 0 : i32
    %c0_i32_0 = arith.constant 0 : i32
    %c0_i32_1 = arith.constant 0 : i32
    return %c0_i32, %c0_i32_0 : i32, i32
  }
  func.func @transform_6(%arg0: i32, %arg1: i32) -> (i32, i32) {
    %c0_i32 = arith.constant 0 : i32
    %c0_i32_0 = arith.constant 0 : i32
    %c0_i32_1 = arith.constant 0 : i32
    return %c0_i32, %c0_i32_0 : i32, i32
  }
  func.func @transform_7(%arg0: i32, %arg1: i32) -> (i32, i32) {
    %c0_i32 = arith.constant 0 : i32
    %c0_i32_0 = arith.constant 0 : i32
    %c0_i32_1 = arith.constant 0 : i32
    return %c0_i32, %c0_i32_0 : i32, i32
  }
  func.func @transform_8(%arg0: i32, %arg1: i32) -> (i32, i32) {
    %c0_i32 = arith.constant 0 : i32
    %c0_i32_0 = arith.constant 0 : i32
    %c0_i32_1 = arith.constant 0 : i32
    return %c0_i32, %c0_i32_0 : i32, i32
  }
  func.func @transform_9(%arg0: i32, %arg1: i32) -> (i32, i32) {
    %c0_i32 = arith.constant 0 : i32
    %c0_i32_0 = arith.constant 0 : i32
    %c0_i32_1 = arith.constant 0 : i32
    return %c0_i32, %c0_i32_0 : i32, i32
  }
  func.func @transform_10(%arg0: i32, %arg1: i32) -> (i32, i32) {
    %c0_i32 = arith.constant 0 : i32
    %c0_i32_0 = arith.constant 0 : i32
    %c0_i32_1 = arith.constant 0 : i32
    return %c0_i32, %c0_i32_0 : i32, i32
  }
  func.func @transform_11(%arg0: i32, %arg1: i32) -> (i32, i32) {
    %c0_i32 = arith.constant 0 : i32
    %c0_i32_0 = arith.constant 0 : i32
    %c0_i32_1 = arith.constant 0 : i32
    return %c0_i32, %c0_i32_0 : i32, i32
  }
  func.func @transform_12(%arg0: i32, %arg1: i32) -> (i32, i32) {
    %c0_i32 = arith.constant 0 : i32
    %c0_i32_0 = arith.constant 0 : i32
    %c0_i32_1 = arith.constant 0 : i32
    return %c0_i32, %c0_i32_0 : i32, i32
  }
  func.func @transform_13(%arg0: i32, %arg1: i32) -> (i32, i32) {
    %c0_i32 = arith.constant 0 : i32
    %c0_i32_0 = arith.constant 0 : i32
    %c0_i32_1 = arith.constant 0 : i32
    return %c0_i32, %c0_i32_0 : i32, i32
  }
  func.func @transform_14(%arg0: i32, %arg1: i32) -> (i32, i32) {
    %c0_i32 = arith.constant 0 : i32
    %c0_i32_0 = arith.constant 0 : i32
    %c0_i32_1 = arith.constant 0 : i32
    return %c0_i32, %c0_i32_0 : i32, i32
  }
  func.func @transform_15(%arg0: i32, %arg1: i32) -> (i32, i32, i32) {
    %c0_i32 = arith.constant 0 : i32
    %c0_i32_0 = arith.constant 0 : i32
    return %arg0, %arg1, %c0_i32 : i32, i32, i32
  }
}

</mosaic_0001>

<llo_original>
// kernel: tpu_custom_call.1
$region0: #{tpu_custom_call.1}
  #allocation0 [shape = 'u32[]', space=smem, size = 0x4, offset = 0x4, fixed_abs, tag = 'smem constant byte address 0x4 - core index']
  #allocation1 [shape = 'u32[72,128]{1,0:T(1,128)}', space=vmem, size = 0x9000, scoped, tag = 'internal scratch']
  #allocation2 [shape = 'f32[8,64]{1,0:T(8,128)}', space=vmem, size = 0x1000, scoped, tag = 'scratch operand']
  #allocation3 [shape = 'f32[8,32]{1,0:T(8,128)}', space=vmem, size = 0x1000, scoped, tag = 'scratch operand']
  %s0 = inlined_call_operand.hbm [shape: f32[2,8,32], index: 0, kind: input, shape index: {}]
  %s1 = inlined_call_operand.vmem [shape: f32[32,32], index: 1, kind: input, shape index: {}]
  %s2 = inlined_call_operand.vmem [shape: f32[1,32], index: 2, kind: input, shape index: {}]
  %s3 = inlined_call_operand.vmem [shape: f32[32,64], index: 3, kind: input, shape index: {}]
  %s4 = inlined_call_operand.vmem [shape: f32[1,64], index: 4, kind: input, shape index: {}]
  %s5 = inlined_call_operand.vmem [shape: f32[32,32], index: 5, kind: input, shape index: {}]
  %s6 = inlined_call_operand.vmem [shape: f32[1,32], index: 6, kind: input, shape index: {}]
  %s7 = inlined_call_operand.vmem [shape: f32[1,32], index: 7, kind: input, shape index: {}]
  %s8 = inlined_call_operand.vmem [shape: f32[1,32], index: 8, kind: input, shape index: {}]
  %s9 = inlined_call_operand.hbm [shape: f32[32,64], index: 9, kind: input, shape index: {}]
  %s10 = inlined_call_operand.vmem [shape: f32[1,64], index: 10, kind: input, shape index: {}]
  %s11 = inlined_call_operand.vmem [shape: f32[64,32], index: 11, kind: input, shape index: {}]
  %s12 = inlined_call_operand.vmem [shape: f32[1,32], index: 12, kind: input, shape index: {}]
  %s13 = inlined_call_operand.vmem [shape: f32[1,32], index: 13, kind: input, shape index: {}]
  %s14 = inlined_call_operand.vmem [shape: f32[1,32], index: 14, kind: input, shape index: {}]
  %s15 = inlined_call_operand.hbm [shape: f32[2,8,32], index: 15, kind: output, shape index: {}]
  %s16 = sld [smem:[#allocation0]]
  $region105: #{tpu_custom_call.1} parent=0
    _
  %s18 = ssub.s32 1, %s16
  %s19 = scalar_select 0, %s18, %s16
  $region1: #{tpu_custom_call.1} parent=0
    #allocation4 [shape = 'u8[8192]{0}', space=vmem, size = 0x2000, scoped, tag = 'input window, operand 0']
    #allocation5 [shape = 's32[2]{0}', space=sflag, size = 0x8, scoped, tag = 'scoped memory for tpu_custom_call.1']
    #allocation6 [shape = 's32[2]{0}', space=sflag, size = 0x8, scoped, tag = 'scoped memory for tpu_custom_call.1']
    #allocation7 [shape = 'u8[16384]{0}', space=vmem, size = 0x4000, scoped, tag = 'input window, operand 9, single buffered']
    #allocation8 [shape = 's32[1]{0}', space=sflag, size = 0x4, scoped, tag = 'scoped memory for tpu_custom_call.1']
    #allocation9 [shape = 'u8[8192]{0}', space=vmem, size = 0x2000, scoped, tag = 'output window, operand 0']
    %20 = vsyncpa [#allocation5], 0
    %s21 = scalar_lea.sflag [#allocation5], 1
    %22 = vsyncpa %s21, 0
    %23 = vsyncpa [#allocation8], 0
    %24 = vsyncpa [#allocation6], 0
    %s25 = scalar_lea.sflag [#allocation6], 1
    %26 = vsyncpa %s25, 0
    loop: start=0, step=1, limit=4
    $region2: #{tpu_custom_call.1} parent=1 // loop_pre_header
      _
    $region3: #{tpu_custom_call.1} parent=1 // loop_header
      %s28 = sphi 0, %s32
      %p29 = scmp.ge.s32.totalorder %s28, 4
      %s35 = sphi 0, %s47
      %s36 = sphi 0, %s43
      %s37 = sphi 0, %s35
      %s38 = sphi 0, %s36
      %s39 = sphi 0, %s37
      %s40 = sphi 0, %s38
      %s50 = sphi 0, %s52
      %s53 = sphi 0, %s50
      %s54 = sphi 0, %s53
      %s70 = sphi 0, %s54
      %s74 = sphi 0, %s74
      %s76 = sphi 0, %s74
      %s77 = sphi 0, %s76
      %s91 = sphi 0, %s77
      %s95 = sphi 0, %s95
      %s97 = sphi 0, %s95
      %s98 = sphi 0, %s97
      %s112 = sphi 0, %s98
      %s116 = sphi 0, %s116
      %s118 = sphi 0, %s116
      %s119 = sphi 0, %s118
      %s133 = sphi 0, %s119
      %s137 = sphi 0, %s137
      %s139 = sphi 0, %s137
      %s140 = sphi 0, %s139
      %s154 = sphi 0, %s140
      %s158 = sphi 0, %s158
      %s160 = sphi 0, %s158
      %s161 = sphi 0, %s160
      %s175 = sphi 0, %s161
      %s179 = sphi 0, %s179
      %s181 = sphi 0, %s179
      %s182 = sphi 0, %s181
      %s196 = sphi 0, %s182
      %s200 = sphi 0, %s200
      %s202 = sphi 0, %s200
      %s203 = sphi 0, %s202
      %s217 = sphi 0, %s203
      %s221 = sphi 0, %s221
      %s223 = sphi 0, %s221
      %s224 = sphi 0, %s223
      %s238 = sphi 0, %s224
      %s242 = sphi 0, %s242
      %s244 = sphi 0, %s242
      %s245 = sphi 0, %s244
      %s259 = sphi 0, %s245
      %s263 = sphi 0, %s263
      %s265 = sphi 0, %s263
      %s266 = sphi 0, %s265
      %s280 = sphi 0, %s266
      %s284 = sphi 0, %s284
      %s286 = sphi 0, %s284
      %s287 = sphi 0, %s286
      %s301 = sphi 0, %s287
      %s305 = sphi 0, %s305
      %s307 = sphi 0, %s305
      %s308 = sphi 0, %s307
      %s322 = sphi 0, %s308
      %s326 = sphi 0, %s326
      %s328 = sphi 0, %s326
      %s329 = sphi 0, %s328
      %s343 = sphi 0, %s329
      %s347 = sphi 0, %s347
      %s349 = sphi 0, %s347
      %s350 = sphi 0, %s349
      %s364 = sphi 0, %s350
      %s372 = sphi 0, %s374
      %s375 = sphi 0, %s372
      %s376 = sphi 0, %s375
      %s392 = sphi 0, %s376
    $region4: #{tpu_custom_call.1} parent=1 // loop_header_branch
      %31 = sbr.rel (%p29) target = $region8
    $region5: #{tpu_custom_call.1} parent=1 // loop_body
      %s33 = ssub.s32 %s28, 1
      %s34 = ssub.s32 %s28, 2
      %s41 = sadd.s32 1, %s36
      %p42 = scmp.ge.s32.totalorder %s41, 1
      %s43 = scalar_select %p42, 0, %s41
      %s44 = sadd.s32 1, %s35
      %s45 = scalar_select %p42, %s44, %s35
      %p46 = scmp.ge.s32.totalorder %s45, 2
      %s47 = scalar_select %p46, 0, %s45
      %s48 = ssub.s32 %s35, %s47
      %p49 = scmp.eq.s32.totalorder %s48, 0
      %s51 = sadd.s32 %s50, 1
      %s52 = scalar_select %p49, %s50, %s51
      %p55 = pneg %p49
      %p56 = scmp.eq.s32.totalorder %s28, 1
      %p57 = por %p55, %p56
      %p58 = scmp.ne.s32.totalorder %s50, %s53
      %p59 = scmp.eq.s32.totalorder %s28, 0
      %p60 = por %p58, %p59
      %p61 = scmp.ne.s32.totalorder %s50, %s53
      %p62 = scmp.eq.s32.totalorder %s33, 1
      %p63 = por %p61, %p62
      %p64 = scmp.ne.s32.totalorder %s53, %s54
      %p65 = scmp.eq.s32.totalorder %s33, 0
      %p66 = por %p64, %p65
      %p67 = scmp.ne.s32.totalorder %s53, %s54
      %p68 = scmp.eq.s32.totalorder %s34, 1
      %p69 = por %p67, %p68
      %p71 = scmp.ne.s32.totalorder %s54, %s70
      %p72 = scmp.eq.s32.totalorder %s34, 0
      %p73 = por %p71, %p72
      %s75 = sadd.s32 %s74, 1
      %p78 = scmp.eq.s32.totalorder %s28, 1
      %p79 = scmp.ne.s32.totalorder %s74, %s76
      %p80 = scmp.eq.s32.totalorder %s28, 0
      %p81 = por %p79, %p80
      %p82 = scmp.ne.s32.totalorder %s74, %s76
      %p83 = scmp.eq.s32.totalorder %s33, 1
      %p84 = por %p82, %p83
      %p85 = scmp.ne.s32.totalorder %s76, %s77
      %p86 = scmp.eq.s32.totalorder %s33, 0
      %p87 = por %p85, %p86
      %p88 = scmp.ne.s32.totalorder %s76, %s77
      %p89 = scmp.eq.s32.totalorder %s34, 1
      %p90 = por %p88, %p89
      %p92 = scmp.ne.s32.totalorder %s77, %s91
      %p93 = scmp.eq.s32.totalorder %s34, 0
      %p94 = por %p92, %p93
      %s96 = sadd.s32 %s95, 1
      %p99 = scmp.eq.s32.totalorder %s28, 1
      %p100 = scmp.ne.s32.totalorder %s95, %s97
      %p101 = scmp.eq.s32.totalorder %s28, 0
      %p102 = por %p100, %p101
      %p103 = scmp.ne.s32.totalorder %s95, %s97
      %p104 = scmp.eq.s32.totalorder %s33, 1
      %p105 = por %p103, %p104
      %p106 = scmp.ne.s32.totalorder %s97, %s98
      %p107 = scmp.eq.s32.totalorder %s33, 0
      %p108 = por %p106, %p107
      %p109 = scmp.ne.s32.totalorder %s97, %s98
      %p110 = scmp.eq.s32.totalorder %s34, 1
      %p111 = por %p109, %p110
      %p113 = scmp.ne.s32.totalorder %s98, %s112
      %p114 = scmp.eq.s32.totalorder %s34, 0
      %p115 = por %p113, %p114
      %s117 = sadd.s32 %s116, 1
      %p120 = scmp.eq.s32.totalorder %s28, 1
      %p121 = scmp.ne.s32.totalorder %s116, %s118
      %p122 = scmp.eq.s32.totalorder %s28, 0
      %p123 = por %p121, %p122
      %p124 = scmp.ne.s32.totalorder %s116, %s118
      %p125 = scmp.eq.s32.totalorder %s33, 1
      %p126 = por %p124, %p125
      %p127 = scmp.ne.s32.totalorder %s118, %s119
      %p128 = scmp.eq.s32.totalorder %s33, 0
      %p129 = por %p127, %p128
      %p130 = scmp.ne.s32.totalorder %s118, %s119
      %p131 = scmp.eq.s32.totalorder %s34, 1
      %p132 = por %p130, %p131
      %p134 = scmp.ne.s32.totalorder %s119, %s133
      %p135 = scmp.eq.s32.totalorder %s34, 0
      %p136 = por %p134, %p135
      %s138 = sadd.s32 %s137, 1
      %p141 = scmp.eq.s32.totalorder %s28, 1
      %p142 = scmp.ne.s32.totalorder %s137, %s139
      %p143 = scmp.eq.s32.totalorder %s28, 0
      %p144 = por %p142, %p143
      %p145 = scmp.ne.s32.totalorder %s137, %s139
      %p146 = scmp.eq.s32.totalorder %s33, 1
      %p147 = por %p145, %p146
      %p148 = scmp.ne.s32.totalorder %s139, %s140
      %p149 = scmp.eq.s32.totalorder %s33, 0
      %p150 = por %p148, %p149
      %p151 = scmp.ne.s32.totalorder %s139, %s140
      %p152 = scmp.eq.s32.totalorder %s34, 1
      %p153 = por %p151, %p152
      %p155 = scmp.ne.s32.totalorder %s140, %s154
      %p156 = scmp.eq.s32.totalorder %s34, 0
      %p157 = por %p155, %p156
      %s159 = sadd.s32 %s158, 1
      %p162 = scmp.eq.s32.totalorder %s28, 1
      %p163 = scmp.ne.s32.totalorder %s158, %s160
      %p164 = scmp.eq.s32.totalorder %s28, 0
      %p165 = por %p163, %p164
      %p166 = scmp.ne.s32.totalorder %s158, %s160
      %p167 = scmp.eq.s32.totalorder %s33, 1
      %p168 = por %p166, %p167
      %p169 = scmp.ne.s32.totalorder %s160, %s161
      %p170 = scmp.eq.s32.totalorder %s33, 0
      %p171 = por %p169, %p170
      %p172 = scmp.ne.s32.totalorder %s160, %s161
      %p173 = scmp.eq.s32.totalorder %s34, 1
      %p174 = por %p172, %p173
      %p176 = scmp.ne.s32.totalorder %s161, %s175
      %p177 = scmp.eq.s32.totalorder %s34, 0
      %p178 = por %p176, %p177
      %s180 = sadd.s32 %s179, 1
      %p183 = scmp.eq.s32.totalorder %s28, 1
      %p184 = scmp.ne.s32.totalorder %s179, %s181
      %p185 = scmp.eq.s32.totalorder %s28, 0
      %p186 = por %p184, %p185
      %p187 = scmp.ne.s32.totalorder %s179, %s181
      %p188 = scmp.eq.s32.totalorder %s33, 1
      %p189 = por %p187, %p188
      %p190 = scmp.ne.s32.totalorder %s181, %s182
      %p191 = scmp.eq.s32.totalorder %s33, 0
      %p192 = por %p190, %p191
      %p193 = scmp.ne.s32.totalorder %s181, %s182
      %p194 = scmp.eq.s32.totalorder %s34, 1
      %p195 = por %p193, %p194
      %p197 = scmp.ne.s32.totalorder %s182, %s196
      %p198 = scmp.eq.s32.totalorder %s34, 0
      %p199 = por %p197, %p198
      %s201 = sadd.s32 %s200, 1
      %p204 = scmp.eq.s32.totalorder %s28, 1
      %p205 = scmp.ne.s32.totalorder %s200, %s202
      %p206 = scmp.eq.s32.totalorder %s28, 0
      %p207 = por %p205, %p206
      %p208 = scmp.ne.s32.totalorder %s200, %s202
      %p209 = scmp.eq.s32.totalorder %s33, 1
      %p210 = por %p208, %p209
      %p211 = scmp.ne.s32.totalorder %s202, %s203
      %p212 = scmp.eq.s32.totalorder %s33, 0
      %p213 = por %p211, %p212
      %p214 = scmp.ne.s32.totalorder %s202, %s203
      %p215 = scmp.eq.s32.totalorder %s34, 1
      %p216 = por %p214, %p215
      %p218 = scmp.ne.s32.totalorder %s203, %s217
      %p219 = scmp.eq.s32.totalorder %s34, 0
      %p220 = por %p218, %p219
      %s222 = sadd.s32 %s221, 1
      %p225 = scmp.eq.s32.totalorder %s28, 1
      %p226 = scmp.ne.s32.totalorder %s221, %s223
      %p227 = scmp.eq.s32.totalorder %s28, 0
      %p228 = por %p226, %p227
      %p229 = scmp.ne.s32.totalorder %s221, %s223
      %p230 = scmp.eq.s32.totalorder %s33, 1
      %p231 = por %p229, %p230
      %p232 = scmp.ne.s32.totalorder %s223, %s224
      %p233 = scmp.eq.s32.totalorder %s33, 0
      %p234 = por %p232, %p233
      %p235 = scmp.ne.s32.totalorder %s223, %s224
      %p236 = scmp.eq.s32.totalorder %s34, 1
      %p237 = por %p235, %p236
      %p239 = scmp.ne.s32.totalorder %s224, %s238
      %p240 = scmp.eq.s32.totalorder %s34, 0
      %p241 = por %p239, %p240
      %s243 = sadd.s32 %s242, 1
      %p246 = scmp.eq.s32.totalorder %s28, 1
      %p247 = scmp.ne.s32.totalorder %s242, %s244
      %p248 = scmp.eq.s32.totalorder %s28, 0
      %p249 = por %p247, %p248
      %p250 = scmp.ne.s32.totalorder %s242, %s244
      %p251 = scmp.eq.s32.totalorder %s33, 1
      %p252 = por %p250, %p251
      %p253 = scmp.ne.s32.totalorder %s244, %s245
      %p254 = scmp.eq.s32.totalorder %s33, 0
      %p255 = por %p253, %p254
      %p256 = scmp.ne.s32.totalorder %s244, %s245
      %p257 = scmp.eq.s32.totalorder %s34, 1
      %p258 = por %p256, %p257
      %p260 = scmp.ne.s32.totalorder %s245, %s259
      %p261 = scmp.eq.s32.totalorder %s34, 0
      %p262 = por %p260, %p261
      %s264 = sadd.s32 %s263, 1
      %p267 = scmp.eq.s32.totalorder %s28, 1
      %p268 = scmp.ne.s32.totalorder %s263, %s265
      %p269 = scmp.eq.s32.totalorder %s28, 0
      %p270 = por %p268, %p269
      %p271 = scmp.ne.s32.totalorder %s263, %s265
      %p272 = scmp.eq.s32.totalorder %s33, 1
      %p273 = por %p271, %p272
      %p274 = scmp.ne.s32.totalorder %s265, %s266
      %p275 = scmp.eq.s32.totalorder %s33, 0
      %p276 = por %p274, %p275
      %p277 = scmp.ne.s32.totalorder %s265, %s266
      %p278 = scmp.eq.s32.totalorder %s34, 1
      %p279 = por %p277, %p278
      %p281 = scmp.ne.s32.totalorder %s266, %s280
      %p282 = scmp.eq.s32.totalorder %s34, 0
      %p283 = por %p281, %p282
      %s285 = sadd.s32 %s284, 1
      %p288 = scmp.eq.s32.totalorder %s28, 1
      %p289 = scmp.ne.s32.totalorder %s284, %s286
      %p290 = scmp.eq.s32.totalorder %s28, 0
      %p291 = por %p289, %p290
      %p292 = scmp.ne.s32.totalorder %s284, %s286
      %p293 = scmp.eq.s32.totalorder %s33, 1
      %p294 = por %p292, %p293
      %p295 = scmp.ne.s32.totalorder %s286, %s287
      %p296 = scmp.eq.s32.totalorder %s33, 0
      %p297 = por %p295, %p296
      %p298 = scmp.ne.s32.totalorder %s286, %s287
      %p299 = scmp.eq.s32.totalorder %s34, 1
      %p300 = por %p298, %p299
      %p302 = scmp.ne.s32.totalorder %s287, %s301
      %p303 = scmp.eq.s32.totalorder %s34, 0
      %p304 = por %p302, %p303
      %s306 = sadd.s32 %s305, 1
      %p309 = scmp.eq.s32.totalorder %s28, 1
      %p310 = scmp.ne.s32.totalorder %s305, %s307
      %p311 = scmp.eq.s32.totalorder %s28, 0
      %p312 = por %p310, %p311
      %p313 = scmp.ne.s32.totalorder %s305, %s307
      %p314 = scmp.eq.s32.totalorder %s33, 1
      %p315 = por %p313, %p314
      %p316 = scmp.ne.s32.totalorder %s307, %s308
      %p317 = scmp.eq.s32.totalorder %s33, 0
      %p318 = por %p316, %p317
      %p319 = scmp.ne.s32.totalorder %s307, %s308
      %p320 = scmp.eq.s32.totalorder %s34, 1
      %p321 = por %p319, %p320
      %p323 = scmp.ne.s32.totalorder %s308, %s322
      %p324 = scmp.eq.s32.totalorder %s34, 0
      %p325 = por %p323, %p324
      %s327 = sadd.s32 %s326, 1
      %p330 = scmp.eq.s32.totalorder %s28, 1
      %p331 = scmp.ne.s32.totalorder %s326, %s328
      %p332 = scmp.eq.s32.totalorder %s28, 0
      %p333 = por %p331, %p332
      %p334 = scmp.ne.s32.totalorder %s326, %s328
      %p335 = scmp.eq.s32.totalorder %s33, 1
      %p336 = por %p334, %p335
      %p337 = scmp.ne.s32.totalorder %s328, %s329
      %p338 = scmp.eq.s32.totalorder %s33, 0
      %p339 = por %p337, %p338
      %p340 = scmp.ne.s32.totalorder %s328, %s329
      %p341 = scmp.eq.s32.totalorder %s34, 1
      %p342 = por %p340, %p341
      %p344 = scmp.ne.s32.totalorder %s329, %s343
      %p345 = scmp.eq.s32.totalorder %s34, 0
      %p346 = por %p344, %p345
      %s348 = sadd.s32 %s347, 1
      %p351 = scmp.eq.s32.totalorder %s28, 1
      %p352 = scmp.ne.s32.totalorder %s347, %s349
      %p353 = scmp.eq.s32.totalorder %s28, 0
      %p354 = por %p352, %p353
      %p355 = scmp.ne.s32.totalorder %s347, %s349
      %p356 = scmp.eq.s32.totalorder %s33, 1
      %p357 = por %p355, %p356
      %p358 = scmp.ne.s32.totalorder %s349, %s350
      %p359 = scmp.eq.s32.totalorder %s33, 0
      %p360 = por %p358, %p359
      %p361 = scmp.ne.s32.totalorder %s349, %s350
      %p362 = scmp.eq.s32.totalorder %s34, 1
      %p363 = por %p361, %p362
      %p365 = scmp.ne.s32.totalorder %s350, %s364
      %p366 = scmp.eq.s32.totalorder %s34, 0
      %p367 = por %p365, %p366
      %s368 = ssub.s32 %s35, %s47
      %s369 = ssub.s32 %s36, %s43
      %s370 = sor.u32 %s368, %s369
      %p371 = scmp.eq.s32.totalorder %s370, 0
      %s373 = sadd.s32 %s372, 1
      %s374 = scalar_select %p371, %s372, %s373
      %p377 = pneg %p371
      %p378 = scmp.eq.s32.totalorder %s28, 1
      %p379 = por %p377, %p378
      %p380 = scmp.ne.s32.totalorder %s372, %s375
      %p381 = scmp.eq.s32.totalorder %s28, 0
      %p382 = por %p380, %p381
      %p383 = scmp.ne.s32.totalorder %s372, %s375
      %p384 = scmp.eq.s32.totalorder %s33, 1
      %p385 = por %p383, %p384
      %p386 = scmp.ne.s32.totalorder %s375, %s376
      %p387 = scmp.eq.s32.totalorder %s33, 0
      %p388 = por %p386, %p387
      %p389 = scmp.ne.s32.totalorder %s375, %s376
      %p390 = scmp.eq.s32.totalorder %s34, 1
      %p391 = por %p389, %p390
      %p393 = scmp.ne.s32.totalorder %s376, %s392
      %p394 = scmp.eq.s32.totalorder %s34, 0
      %p395 = por %p393, %p394
      %p396 = scmp.le.s32.totalorder 1, %s28
      %p397 = scmp.lt.s32.totalorder %s28, 3
      %p398 = pnand %p396, %p397
      %p399 = pneg %p398
      // Predicated region
      $region9: #{tpu_custom_call.1} parent=5 // pred_check
        _
      $region10: #{tpu_custom_call.1} parent=5 // pred_check_branch
        %401 = sbr.rel (%p398) target = $region12
      $region11: #{tpu_custom_call.1} parent=5 // pred_region
        %s402 = ssub.s32 %s28, 1
        // Predicated region
        $region13: #{tpu_custom_call.1} parent=11 // pred_check
          %p403 = pneg %p87
        $region14: #{tpu_custom_call.1} parent=11 // pred_check_branch
          %405 = sbr.rel (%p403) target = $region16
        $region15: #{tpu_custom_call.1} parent=11 // pred_region
          _
        $region16: #{tpu_custom_call.1} parent=11 // pred_fallthru
          _
        // Predicated region
        $region17: #{tpu_custom_call.1} parent=11 // pred_check
          %p406 = pneg %p108
        $region18: #{tpu_custom_call.1} parent=11 // pred_check_branch
          %408 = sbr.rel (%p406) target = $region20
        $region19: #{tpu_custom_call.1} parent=11 // pred_region
          _
        $region20: #{tpu_custom_call.1} parent=11 // pred_fallthru
          _
        // Predicated region
        $region21: #{tpu_custom_call.1} parent=11 // pred_check
          %p409 = pneg %p129
        $region22: #{tpu_custom_call.1} parent=11 // pred_check_branch
          %411 = sbr.rel (%p409) target = $region24
        $region23: #{tpu_custom_call.1} parent=11 // pred_region
          _
        $region24: #{tpu_custom_call.1} parent=11 // pred_fallthru
          _
        // Predicated region
        $region25: #{tpu_custom_call.1} parent=11 // pred_check
          %p412 = pneg %p150
        $region26: #{tpu_custom_call.1} parent=11 // pred_check_branch
          %414 = sbr.rel (%p412) target = $region28
        $region27: #{tpu_custom_call.1} parent=11 // pred_region
          _
        $region28: #{tpu_custom_call.1} parent=11 // pred_fallthru
          _
        // Predicated region
        $region29: #{tpu_custom_call.1} parent=11 // pred_check
          %p415 = pneg %p171
        $region30: #{tpu_custom_call.1} parent=11 // pred_check_branch
          %417 = sbr.rel (%p415) target = $region32
        $region31: #{tpu_custom_call.1} parent=11 // pred_region
          _
        $region32: #{tpu_custom_call.1} parent=11 // pred_fallthru
          _
        // Predicated region
        $region33: #{tpu_custom_call.1} parent=11 // pred_check
          %p418 = pneg %p192
        $region34: #{tpu_custom_call.1} parent=11 // pred_check_branch
          %420 = sbr.rel (%p418) target = $region36
        $region35: #{tpu_custom_call.1} parent=11 // pred_region
          _
        $region36: #{tpu_custom_call.1} parent=11 // pred_fallthru
          _
        // Predicated region
        $region37: #{tpu_custom_call.1} parent=11 // pred_check
          %p421 = pneg %p213
        $region38: #{tpu_custom_call.1} parent=11 // pred_check_branch
          %423 = sbr.rel (%p421) target = $region40
        $region39: #{tpu_custom_call.1} parent=11 // pred_region
          _
        $region40: #{tpu_custom_call.1} parent=11 // pred_fallthru
          _
        // Predicated region
        $region41: #{tpu_custom_call.1} parent=11 // pred_check
          %p424 = pneg %p234
        $region42: #{tpu_custom_call.1} parent=11 // pred_check_branch
          %426 = sbr.rel (%p424) target = $region44
        $region43: #{tpu_custom_call.1} parent=11 // pred_region
          _
        $region44: #{tpu_custom_call.1} parent=11 // pred_fallthru
          _
        // Predicated region
        $region45: #{tpu_custom_call.1} parent=11 // pred_check
          %p427 = pneg %p255
        $region46: #{tpu_custom_call.1} parent=11 // pred_check_branch
          %429 = sbr.rel (%p427) target = $region48
        $region47: #{tpu_custom_call.1} parent=11 // pred_region
          %431 = vsyncadd [#allocation8], 0
          %s432 = sshll.u32 %s9, 4
          %s433 = int_to_ptr.hbm [resolvable:$true] %s432
          %s434 = sshll.u32 [#allocation7], 4
          %s435 = int_to_ptr.vmem [resolvable:$true] %s434
          %440 = dma.hbm_to_vmem [thread:$0]  %s433, 512, %s435, [#allocation8], 128, 128, 8
        $region48: #{tpu_custom_call.1} parent=11 // pred_fallthru
          _
        // Predicated region
        $region49: #{tpu_custom_call.1} parent=11 // pred_check
          %p441 = pneg %p276
        $region50: #{tpu_custom_call.1} parent=11 // pred_check_branch
          %443 = sbr.rel (%p441) target = $region52
        $region51: #{tpu_custom_call.1} parent=11 // pred_region
          _
        $region52: #{tpu_custom_call.1} parent=11 // pred_fallthru
          _
        // Predicated region
        $region53: #{tpu_custom_call.1} parent=11 // pred_check
          %p444 = pneg %p297
        $region54: #{tpu_custom_call.1} parent=11 // pred_check_branch
          %446 = sbr.rel (%p444) target = $region56
        $region55: #{tpu_custom_call.1} parent=11 // pred_region
          _
        $region56: #{tpu_custom_call.1} parent=11 // pred_fallthru
          _
        // Predicated region
        $region57: #{tpu_custom_call.1} parent=11 // pred_check
          %p447 = pneg %p318
        $region58: #{tpu_custom_call.1} parent=11 // pred_check_branch
          %449 = sbr.rel (%p447) target = $region60
        $region59: #{tpu_custom_call.1} parent=11 // pred_region
          _
        $region60: #{tpu_custom_call.1} parent=11 // pred_fallthru
          _
        // Predicated region
        $region61: #{tpu_custom_call.1} parent=11 // pred_check
          %p450 = pneg %p339
        $region62: #{tpu_custom_call.1} parent=11 // pred_check_branch
          %452 = sbr.rel (%p450) target = $region64
        $region63: #{tpu_custom_call.1} parent=11 // pred_region
          _
        $region64: #{tpu_custom_call.1} parent=11 // pred_fallthru
          _
        // Predicated region
        $region65: #{tpu_custom_call.1} parent=11 // pred_check
          %p453 = pneg %p360
        $region66: #{tpu_custom_call.1} parent=11 // pred_check_branch
          %455 = sbr.rel (%p453) target = $region68
        $region67: #{tpu_custom_call.1} parent=11 // pred_region
          _
        $region68: #{tpu_custom_call.1} parent=11 // pred_fallthru
          _
      $region12: #{tpu_custom_call.1} parent=5 // pred_fallthru
        _
      %p456 = scmp.lt.s32.totalorder %s28, 2
      // Predicated region
      $region69: #{tpu_custom_call.1} parent=5 // pred_check
        %p457 = pneg %p456
      $region70: #{tpu_custom_call.1} parent=5 // pred_check_branch
        %459 = sbr.rel (%p457) target = $region72
      $region71: #{tpu_custom_call.1} parent=5 // pred_region
        // Predicated region
        $region73: #{tpu_custom_call.1} parent=71 // pred_check
          %p460 = pneg %p60
        $region74: #{tpu_custom_call.1} parent=71 // pred_check_branch
          %462 = sbr.rel (%p460) target = $region76
        $region75: #{tpu_custom_call.1} parent=71 // pred_region
          %s463 = sand.u32 %s50, 1
          %s464 = scalar_lea.sflag [#allocation5], %s463
          %s465 = sand.u32 %s50, 1
          %s466 = smul.addr %s465, 8
          %s467 = scalar_lea.vmem [#allocation4], %s466
          %469 = vsyncadd %s464, 0
          %s470 = smul.addr %s35, 8
          %s471 = scalar_lea.hbm %s0, %s470
          %s473 = sshll.u32 %s471, 4
          %s474 = int_to_ptr.hbm [resolvable:$true] %s473
          %s475 = sshll.u32 %s467, 4
          %s476 = int_to_ptr.vmem [resolvable:$true] %s475
          %478 = dma.hbm_to_vmem [thread:$0]  %s474, 128, %s476, %s464
        $region76: #{tpu_custom_call.1} parent=71 // pred_fallthru
          _
      $region72: #{tpu_custom_call.1} parent=5 // pred_fallthru
        _
      %p479 = scmp.le.s32.totalorder 1, %s28
      %p480 = scmp.lt.s32.totalorder %s28, 3
      %p481 = pnand %p479, %p480
      %p482 = pneg %p481
      // Predicated region
      $region77: #{tpu_custom_call.1} parent=5 // pred_check
        _
      $region78: #{tpu_custom_call.1} parent=5 // pred_check_branch
        %484 = sbr.rel (%p481) target = $region80
      $region79: #{tpu_custom_call.1} parent=5 // pred_region
        %s485 = ssub.s32 %s28, 1
        %s486 = sand.u32 %s53, 1
        %s487 = scalar_lea.sflag [#allocation5], %s486
        %s488 = sand.u32 %s53, 1
        %s489 = smul.addr %s488, 8
        %s490 = scalar_lea.vmem [#allocation4], %s489
        // Predicated region
        $region81: #{tpu_custom_call.1} parent=79 // pred_check
          %p491 = pneg %p66
        $region82: #{tpu_custom_call.1} parent=79 // pred_check_branch
          %493 = sbr.rel (%p491) target = $region84
        $region83: #{tpu_custom_call.1} parent=79 // pred_region
          %495 = dma.done %s487, 128
        $region84: #{tpu_custom_call.1} parent=79 // pred_fallthru
          _
        // Predicated region
        $region85: #{tpu_custom_call.1} parent=79 // pred_check
          %p496 = pneg %p255
        $region86: #{tpu_custom_call.1} parent=79 // pred_check_branch
          %498 = sbr.rel (%p496) target = $region88
        $region87: #{tpu_custom_call.1} parent=79 // pred_region
          %500 = dma.done [#allocation8], 512
        $region88: #{tpu_custom_call.1} parent=79 // pred_fallthru
          _
        %s501 = sand.u32 %s53, 1
        %s502 = scalar_lea.sflag [#allocation5], %s501
        %s503 = sand.u32 %s53, 1
        %s504 = smul.addr %s503, 8
        %s505 = scalar_lea.vmem [#allocation4], %s504
        %p506 = pneg %p66
        %p507 = pneg %p63
        %p508 = pneg %p87
        %p509 = pneg %p84
        %p510 = pneg %p108
        %p511 = pneg %p105
        %p512 = pneg %p129
        %p513 = pneg %p126
        %p514 = pneg %p150
        %p515 = pneg %p147
        %p516 = pneg %p171
        %p517 = pneg %p168
        %p518 = pneg %p192
        %p519 = pneg %p189
        %p520 = pneg %p213
        %p521 = pneg %p210
        %p522 = pneg %p234
        %p523 = pneg %p231
        %p524 = pneg %p255
        %p525 = pneg %p252
        %p526 = pneg %p276
        %p527 = pneg %p273
        %p528 = pneg %p297
        %p529 = pneg %p294
        %p530 = pneg %p318
        %p531 = pneg %p315
        %p532 = pneg %p339
        %p533 = pneg %p336
        %p534 = pneg %p360
        %p535 = pneg %p357
        %p536 = pneg %p388
        %p537 = pneg %p385
        %s538 = sand.u32 %s375, 1
        %s539 = scalar_lea.sflag [#allocation6], %s538
        %s540 = sand.u32 %s375, 1
        %s541 = smul.addr %s540, 8
        %s542 = scalar_lea.vmem [#allocation9], %s541
        %p543 = scmp.eq.s32.totalorder %s38, 0
        // Predicated region
        $region89: #{tpu_custom_call.1} parent=79 // pred_check
          %p544 = pneg %p543
        $region90: #{tpu_custom_call.1} parent=79 // pred_check_branch
          %546 = sbr.rel (%p544) target = $region92
        $region91: #{tpu_custom_call.1} parent=79 // pred_region
          %v547 = vld [vmem:[%s490] sm:$0xff]
          %v548 = vld [vmem:[%s3] sm:$0xff]
          %v549 = vld [vmem:[%s3 + $0x8] sm:$0xff]
          %v550 = vld [vmem:[%s3 + $0x10] sm:$0xff]
          %v551 = vld [vmem:[%s3 + $0x18] sm:$0xff]
          %v552 = vld [vmem:[%s4] sm:$0x1]
          %v554 = vperm.slane %v552, 0
          %vm556 = vcmask 261120
          %v558 = vsel %vm556, %v547, 0
          %560 = vmatpush.msra.mxu0 0.0
          %561 = vmatpush.msra.mxu0 0.0
          %562 = vmatpush.msra.mxu0 0.0
          %563 = vmatpush.msra.mxu0 0.0
          %564 = vmatpush.msra.mxu0 0.0
          %565 = vmatpush.msra.mxu0 0.0
          %566 = vmatpush.msra.mxu0 0.0
          %567 = vmatpush.msra.mxu0 0.0
          %568 = vmatpush.msra.mxu0 0.0
          %569 = vmatpush.msra.mxu0 0.0
          %570 = vmatpush.msra.mxu0 0.0
          %571 = vmatpush.msra.mxu0 0.0
          %572 = vmatpush.msra.mxu0 %v551
          %573 = vmatpush.msra.mxu0 %v550
          %574 = vmatpush.msra.mxu0 %v549
          %575 = vmatpush.msra.mxu0 %v548
          %576 = vmatmul.f32.gmra.mxu0 %v558
          %v577 = vpop.f32.mrf.mxu0
          %v578 = vadd.f32 %v554, %v577
          %579 = vdwg.mxu0
          %vm580 = vcmask 523264
          %581 = vst.msk [vmem:[#allocation2] sm:$0xff] %vm580, %v578
        $region92: #{tpu_custom_call.1} parent=79 // pred_fallthru
          _
        %s582 = smul.u32 %s38, 8
        %s583 = scalar_lea.vmem %s490, %s582 [#allocation4]
        %v584 = vld [vmem:[%s583] sm:$0xff]
        %v585 = vld [vmem:[%s1] sm:$0xff]
        %v586 = vld [vmem:[%s1 + $0x8] sm:$0xff]
        %v587 = vld [vmem:[%s1 + $0x10] sm:$0xff]
        %v588 = vld [vmem:[%s1 + $0x18] sm:$0xff]
        %v589 = vld [vmem:[%s2] sm:$0x1]
        %v591 = vperm.slane %v589, 0
        %vm593 = vcmask 261120
        %v595 = vsel %vm593, %v584, 0
        %597 = vmatpush.msra.mxu0 0.0
        %598 = vmatpush.msra.mxu0 0.0
        %599 = vmatpush.msra.mxu0 0.0
        %600 = vmatpush.msra.mxu0 0.0
        %601 = vmatpush.msra.mxu0 0.0
        %602 = vmatpush.msra.mxu0 0.0
        %603 = vmatpush.msra.mxu0 0.0
        %604 = vmatpush.msra.mxu0 0.0
        %605 = vmatpush.msra.mxu0 0.0
        %606 = vmatpush.msra.mxu0 0.0
        %607 = vmatpush.msra.mxu0 0.0
        %608 = vmatpush.msra.mxu0 0.0
        %609 = vmatpush.msra.mxu0 %v588
        %610 = vmatpush.msra.mxu0 %v587
        %611 = vmatpush.msra.mxu0 %v586
        %612 = vmatpush.msra.mxu0 %v585
        %613 = vmatmul.f32.gmra.mxu0 %v595
        %v614 = vpop.f32.mrf.mxu0
        %v615 = vadd.f32 %v591, %v614
        %616 = vdwg.mxu0
        %v617 = vld [vmem:[#allocation2] sm:$0xff]
        %vm618 = vcmask 64512
        %v620 = vsel %vm618, %v615, 0
        %v623 = vsel %vm618, %v617, 0
        %625 = vmatpush.xpose.msra.mxu0 0.0
        %626 = vmatpush.xpose.msra.mxu0 0.0
        %627 = vmatpush.xpose.msra.mxu0 0.0
        %628 = vmatpush.xpose.msra.mxu0 0.0
        %629 = vmatpush.xpose.msra.mxu0 0.0
        %630 = vmatpush.xpose.msra.mxu0 0.0
        %631 = vmatpush.xpose.msra.mxu0 0.0
        %632 = vmatpush.xpose.msra.mxu0 0.0
        %633 = vmatpush.xpose.msra.mxu0 0.0
        %634 = vmatpush.xpose.msra.mxu0 0.0
        %635 = vmatpush.xpose.msra.mxu0 0.0
        %636 = vmatpush.xpose.msra.mxu0 0.0
        %637 = vmatpush.xpose.msra.mxu0 0.0
        %638 = vmatpush.xpose.msra.mxu0 0.0
        %639 = vmatpush.xpose.msra.mxu0 0.0
        %640 = vmatpush.xpose.msra.mxu0 %v623
        %641 = vmatmul.f32.gmra.mxu0 %v620
        %v642 = vpop.f32.mrf.mxu0
        %v643 = vadd.f32 0.0, %v642
        %644 = vdwg.mxu0
        %v645 = vsel %vm618, %v643, -inf
        %646 = vmax.xlane.f32.xlu0 %v645
        %v647 = vpop.xlane.xlu0 %646
        %v648 = vsub.f32 %v643, %v647
        %v649 = vmul.f32 %v648, 1.442695
        %v650 = vpow.pop %v649
        %v651 = vsel %vm618, %v650, 0.0
        %652 = vadd.xlane.f32.xlu0 %v651
        %v653 = vpop.xlane.xlu0 %652
        %654 = vrot.lane.b32.xlu0 %v617, 96
        %v655 = vpop.permute.xlu0 %654
        %v658 = vsel %vm618, %v650, 0
        %660 = vmatpush.msra.mxu0 0.0
        %661 = vmatpush.msra.mxu0 0.0
        %662 = vmatpush.msra.mxu0 0.0
        %663 = vmatpush.msra.mxu0 0.0
        %664 = vmatpush.msra.mxu0 0.0
        %665 = vmatpush.msra.mxu0 0.0
        %666 = vmatpush.msra.mxu0 0.0
        %667 = vmatpush.msra.mxu0 0.0
        %668 = vmatpush.msra.mxu0 0.0
        %669 = vmatpush.msra.mxu0 0.0
        %670 = vmatpush.msra.mxu0 0.0
        %671 = vmatpush.msra.mxu0 0.0
        %672 = vmatpush.msra.mxu0 0.0
        %673 = vmatpush.msra.mxu0 0.0
        %674 = vmatpush.msra.mxu0 0.0
        %675 = vmatpush.msra.mxu0 %v655
        %676 = vmatmul.f32.gmra.mxu0 %v658
        %v677 = vpop.f32.mrf.mxu0
        %v678 = vadd.f32 0.0, %v677
        %679 = vdwg.mxu0
        %v680 = vrcp.pop %v653
        %v681 = vmul.f32 %v653, %v680
        %v682 = vsub.f32 1.0, %v681
        %v683 = vmul.f32 %v680, %v682
        %v684 = vadd.f32 %v680, %v683
        %vm685 = vweird.f32 %v653
        %vm686 = vweird.f32 %v680
        %vm687 = vmor %vm685, %vm686
        %v688 = vsel %vm687, %v680, %v684
        %v689 = vand.u32 2147483647, %v653
        %vm690 = vcmp.eq.f32.partialorder %v689, 8.507059e+37
        %v691 = vand.u32 %v653, 2147483648
        %v692 = vor.u32 1.1754944e-38, %v691
        %v693 = vsel %vm690, %v692, %v688
        %v694 = vmul.f32 %v678, %v693
        %695 = vst.msk [vmem:[#allocation3] sm:$0xff] %vm618, %v694
        %v696 = vld [vmem:[#allocation2] sm:$0xff]
        %697 = vrot.lane.b32.xlu0 %v615, 120
        %v698 = vpop.permute.xlu0 %697
        %700 = vrot.lane.b32.xlu0 %v696, 120
        %v701 = vpop.permute.xlu0 %700
        %v702 = vsel %vm618, %v698, 0
        %v704 = vsel %vm618, %v701, 0
        %706 = vmatpush.xpose.msra.mxu0 0.0
        %707 = vmatpush.xpose.msra.mxu0 0.0
        %708 = vmatpush.xpose.msra.mxu0 0.0
        %709 = vmatpush.xpose.msra.mxu0 0.0
        %710 = vmatpush.xpose.msra.mxu0 0.0
        %711 = vmatpush.xpose.msra.mxu0 0.0
        %712 = vmatpush.xpose.msra.mxu0 0.0
        %713 = vmatpush.xpose.msra.mxu0 0.0
        %714 = vmatpush.xpose.msra.mxu0 0.0
        %715 = vmatpush.xpose.msra.mxu0 0.0
        %716 = vmatpush.xpose.msra.mxu0 0.0
        %717 = vmatpush.xpose.msra.mxu0 0.0
        %718 = vmatpush.xpose.msra.mxu0 0.0
        %719 = vmatpush.xpose.msra.mxu0 0.0
        %720 = vmatpush.xpose.msra.mxu0 0.0
        %721 = vmatpush.xpose.msra.mxu0 %v704
        %722 = vmatmul.f32.gmra.mxu0 %v702
        %v723 = vpop.f32.mrf.mxu0
        %v724 = vadd.f32 0.0, %v723
        %725 = vdwg.mxu0
        %v726 = vsel %vm618, %v724, -inf
        %727 = vmax.xlane.f32.xlu0 %v726
        %v728 = vpop.xlane.xlu0 %727
        %v729 = vsub.f32 %v724, %v728
        %v730 = vmul.f32 %v729, 1.442695
        %v731 = vpow.pop %v730
        %v732 = vsel %vm618, %v731, 0.0
        %733 = vadd.xlane.f32.xlu0 %v732
        %v734 = vpop.xlane.xlu0 %733
        %735 = vrot.lane.b32.xlu0 %v696, 88
        %v736 = vpop.permute.xlu0 %735
        %v739 = vsel %vm618, %v731, 0
        %741 = vmatpush.msra.mxu0 0.0
        %742 = vmatpush.msra.mxu0 0.0
        %743 = vmatpush.msra.mxu0 0.0
        %744 = vmatpush.msra.mxu0 0.0
        %745 = vmatpush.msra.mxu0 0.0
        %746 = vmatpush.msra.mxu0 0.0
        %747 = vmatpush.msra.mxu0 0.0
        %748 = vmatpush.msra.mxu0 0.0
        %749 = vmatpush.msra.mxu0 0.0
        %750 = vmatpush.msra.mxu0 0.0
        %751 = vmatpush.msra.mxu0 0.0
        %752 = vmatpush.msra.mxu0 0.0
        %753 = vmatpush.msra.mxu0 0.0
        %754 = vmatpush.msra.mxu0 0.0
        %755 = vmatpush.msra.mxu0 0.0
        %756 = vmatpush.msra.mxu0 %v736
        %757 = vmatmul.f32.gmra.mxu0 %v739
        %v758 = vpop.f32.mrf.mxu0
        %v759 = vadd.f32 0.0, %v758
        %760 = vdwg.mxu0
        %v761 = vrcp.pop %v734
        %v762 = vmul.f32 %v734, %v761
        %v763 = vsub.f32 1.0, %v762
        %v764 = vmul.f32 %v761, %v763
        %v765 = vadd.f32 %v761, %v764
        %vm766 = vweird.f32 %v734
        %vm767 = vweird.f32 %v761
        %vm768 = vmor %vm766, %vm767
        %v769 = vsel %vm768, %v761, %v765
        %v770 = vand.u32 2147483647, %v734
        %vm771 = vcmp.eq.f32.partialorder %v770, 8.507059e+37
        %v772 = vand.u32 %v734, 2147483648
        %v773 = vor.u32 1.1754944e-38, %v772
        %v774 = vsel %vm771, %v773, %v769
        %v775 = vmul.f32 %v759, %v774
        %777 = vrot.lane.b32.xlu0 %v775, 8
        %v778 = vpop.permute.xlu0 %777
        %vm780 = vcmask 130112
        %781 = vst.msk [vmem:[#allocation3] sm:$0xff] %vm780, %v778
        %v782 = vld [vmem:[#allocation2] sm:$0xff]
        %783 = vrot.lane.b32.xlu0 %v615, 112
        %v784 = vpop.permute.xlu0 %783
        %786 = vrot.lane.b32.xlu0 %v782, 112
        %v787 = vpop.permute.xlu0 %786
        %v788 = vsel %vm618, %v784, 0
        %v790 = vsel %vm618, %v787, 0
        %792 = vmatpush.xpose.msra.mxu0 0.0
        %793 = vmatpush.xpose.msra.mxu0 0.0
        %794 = vmatpush.xpose.msra.mxu0 0.0
        %795 = vmatpush.xpose.msra.mxu0 0.0
        %796 = vmatpush.xpose.msra.mxu0 0.0
        %797 = vmatpush.xpose.msra.mxu0 0.0
        %798 = vmatpush.xpose.msra.mxu0 0.0
        %799 = vmatpush.xpose.msra.mxu0 0.0
        %800 = vmatpush.xpose.msra.mxu0 0.0
        %801 = vmatpush.xpose.msra.mxu0 0.0
        %802 = vmatpush.xpose.msra.mxu0 0.0
        %803 = vmatpush.xpose.msra.mxu0 0.0
        %804 = vmatpush.xpose.msra.mxu0 0.0
        %805 = vmatpush.xpose.msra.mxu0 0.0
        %806 = vmatpush.xpose.msra.mxu0 0.0
        %807 = vmatpush.xpose.msra.mxu0 %v790
        %808 = vmatmul.f32.gmra.mxu0 %v788
        %v809 = vpop.f32.mrf.mxu0
        %v810 = vadd.f32 0.0, %v809
        %811 = vdwg.mxu0
        %v812 = vsel %vm618, %v810, -inf
        %813 = vmax.xlane.f32.xlu0 %v812
        %v814 = vpop.xlane.xlu0 %813
        %v815 = vsub.f32 %v810, %v814
        %v816 = vmul.f32 %v815, 1.442695
        %v817 = vpow.pop %v816
        %v818 = vsel %vm618, %v817, 0.0
        %819 = vadd.xlane.f32.xlu0 %v818
        %v820 = vpop.xlane.xlu0 %819
        %821 = vrot.lane.b32.xlu0 %v782, 80
        %v822 = vpop.permute.xlu0 %821
        %v825 = vsel %vm618, %v817, 0
        %827 = vmatpush.msra.mxu0 0.0
        %828 = vmatpush.msra.mxu0 0.0
        %829 = vmatpush.msra.mxu0 0.0
        %830 = vmatpush.msra.mxu0 0.0
        %831 = vmatpush.msra.mxu0 0.0
        %832 = vmatpush.msra.mxu0 0.0
        %833 = vmatpush.msra.mxu0 0.0
        %834 = vmatpush.msra.mxu0 0.0
        %835 = vmatpush.msra.mxu0 0.0
        %836 = vmatpush.msra.mxu0 0.0
        %837 = vmatpush.msra.mxu0 0.0
        %838 = vmatpush.msra.mxu0 0.0
        %839 = vmatpush.msra.mxu0 0.0
        %840 = vmatpush.msra.mxu0 0.0
        %841 = vmatpush.msra.mxu0 0.0
        %842 = vmatpush.msra.mxu0 %v822
        %843 = vmatmul.f32.gmra.mxu0 %v825
        %v844 = vpop.f32.mrf.mxu0
        %v845 = vadd.f32 0.0, %v844
        %846 = vdwg.mxu0
        %v847 = vrcp.pop %v820
        %v848 = vmul.f32 %v820, %v847
        %v849 = vsub.f32 1.0, %v848
        %v850 = vmul.f32 %v847, %v849
        %v851 = vadd.f32 %v847, %v850
        %vm852 = vweird.f32 %v820
        %vm853 = vweird.f32 %v847
        %vm854 = vmor %vm852, %vm853
        %v855 = vsel %vm854, %v847, %v851
        %v856 = vand.u32 2147483647, %v820
        %vm857 = vcmp.eq.f32.partialorder %v856, 8.507059e+37
        %v858 = vand.u32 %v820, 2147483648
        %v859 = vor.u32 1.1754944e-38, %v858
        %v860 = vsel %vm857, %v859, %v855
        %v861 = vmul.f32 %v845, %v860
        %863 = vrot.lane.b32.xlu0 %v861, 16
        %v864 = vpop.permute.xlu0 %863
        %vm866 = vcmask 195712
        %867 = vst.msk [vmem:[#allocation3] sm:$0xff] %vm866, %v864
        %v868 = vld [vmem:[#allocation2] sm:$0xff]
        %869 = vrot.lane.b32.xlu0 %v615, 104
        %v870 = vpop.permute.xlu0 %869
        %872 = vrot.lane.b32.xlu0 %v868, 104
        %v873 = vpop.permute.xlu0 %872
        %v874 = vsel %vm618, %v870, 0
        %v876 = vsel %vm618, %v873, 0
        %878 = vmatpush.xpose.msra.mxu0 0.0
        %879 = vmatpush.xpose.msra.mxu0 0.0
        %880 = vmatpush.xpose.msra.mxu0 0.0
        %881 = vmatpush.xpose.msra.mxu0 0.0
        %882 = vmatpush.xpose.msra.mxu0 0.0
        %883 = vmatpush.xpose.msra.mxu0 0.0
        %884 = vmatpush.xpose.msra.mxu0 0.0
        %885 = vmatpush.xpose.msra.mxu0 0.0
        %886 = vmatpush.xpose.msra.mxu0 0.0
        %887 = vmatpush.xpose.msra.mxu0 0.0
        %888 = vmatpush.xpose.msra.mxu0 0.0
        %889 = vmatpush.xpose.msra.mxu0 0.0
        %890 = vmatpush.xpose.msra.mxu0 0.0
        %891 = vmatpush.xpose.msra.mxu0 0.0
        %892 = vmatpush.xpose.msra.mxu0 0.0
        %893 = vmatpush.xpose.msra.mxu0 %v876
        %894 = vmatmul.f32.gmra.mxu0 %v874
        %v895 = vpop.f32.mrf.mxu0
        %v896 = vadd.f32 0.0, %v895
        %897 = vdwg.mxu0
        %v898 = vsel %vm618, %v896, -inf
        %899 = vmax.xlane.f32.xlu0 %v898
        %v900 = vpop.xlane.xlu0 %899
        %v901 = vsub.f32 %v896, %v900
        %v902 = vmul.f32 %v901, 1.442695
        %v903 = vpow.pop %v902
        %v904 = vsel %vm618, %v903, 0.0
        %905 = vadd.xlane.f32.xlu0 %v904
        %v906 = vpop.xlane.xlu0 %905
        %907 = vrot.lane.b32.xlu0 %v868, 72
        %v908 = vpop.permute.xlu0 %907
        %v911 = vsel %vm618, %v903, 0
        %913 = vmatpush.msra.mxu0 0.0
        %914 = vmatpush.msra.mxu0 0.0
        %915 = vmatpush.msra.mxu0 0.0
        %916 = vmatpush.msra.mxu0 0.0
        %917 = vmatpush.msra.mxu0 0.0
        %918 = vmatpush.msra.mxu0 0.0
        %919 = vmatpush.msra.mxu0 0.0
        %920 = vmatpush.msra.mxu0 0.0
        %921 = vmatpush.msra.mxu0 0.0
        %922 = vmatpush.msra.mxu0 0.0
        %923 = vmatpush.msra.mxu0 0.0
        %924 = vmatpush.msra.mxu0 0.0
        %925 = vmatpush.msra.mxu0 0.0
        %926 = vmatpush.msra.mxu0 0.0
        %927 = vmatpush.msra.mxu0 0.0
        %928 = vmatpush.msra.mxu0 %v908
        %929 = vmatmul.f32.gmra.mxu0 %v911
        %v930 = vpop.f32.mrf.mxu0
        %v931 = vadd.f32 0.0, %v930
        %932 = vdwg.mxu0
        %v933 = vrcp.pop %v906
        %v934 = vmul.f32 %v906, %v933
        %v935 = vsub.f32 1.0, %v934
        %v936 = vmul.f32 %v933, %v935
        %v937 = vadd.f32 %v933, %v936
        %vm938 = vweird.f32 %v906
        %vm939 = vweird.f32 %v933
        %vm940 = vmor %vm938, %vm939
        %v941 = vsel %vm940, %v933, %v937
        %v942 = vand.u32 2147483647, %v906
        %vm943 = vcmp.eq.f32.partialorder %v942, 8.507059e+37
        %v944 = vand.u32 %v906, 2147483648
        %v945 = vor.u32 1.1754944e-38, %v944
        %v946 = vsel %vm943, %v945, %v941
        %v947 = vmul.f32 %v931, %v946
        %949 = vrot.lane.b32.xlu0 %v947, 24
        %v950 = vpop.permute.xlu0 %949
        %vm952 = vcmask 261312
        %953 = vst.msk [vmem:[#allocation3] sm:$0xff] %vm952, %v950
        %v954 = vld [vmem:[#allocation3] sm:$0xff]
        %v955 = vld [vmem:[%s5] sm:$0xff]
        %v956 = vld [vmem:[%s5 + $0x8] sm:$0xff]
        %v957 = vld [vmem:[%s5 + $0x10] sm:$0xff]
        %v958 = vld [vmem:[%s5 + $0x18] sm:$0xff]
        %v959 = vld [vmem:[%s6] sm:$0x1]
        %v961 = vperm.slane %v959, 0
        %v964 = vsel %vm593, %v954, 0
        %966 = vmatpush.msra.mxu0 0.0
        %967 = vmatpush.msra.mxu0 0.0
        %968 = vmatpush.msra.mxu0 0.0
        %969 = vmatpush.msra.mxu0 0.0
        %970 = vmatpush.msra.mxu0 0.0
        %971 = vmatpush.msra.mxu0 0.0
        %972 = vmatpush.msra.mxu0 0.0
        %973 = vmatpush.msra.mxu0 0.0
        %974 = vmatpush.msra.mxu0 0.0
        %975 = vmatpush.msra.mxu0 0.0
        %976 = vmatpush.msra.mxu0 0.0
        %977 = vmatpush.msra.mxu0 0.0
        %978 = vmatpush.msra.mxu0 %v958
        %979 = vmatpush.msra.mxu0 %v957
        %980 = vmatpush.msra.mxu0 %v956
        %981 = vmatpush.msra.mxu0 %v955
        %982 = vmatmul.f32.gmra.mxu0 %v964
        %v983 = vpop.f32.mrf.mxu0
        %v984 = vadd.f32 %v961, %v983
        %985 = vdwg.mxu0
        %v986 = vadd.f32 %v584, %v984
        %v987 = vsel %vm593, %v986, 0.0
        %988 = vadd.xlane.f32.xlu0 %v987
        %v989 = vpop.xlane.xlu0 %988
        %v990 = vrcp.pop 32.0
        %v991 = vmul.f32 32.0, %v990
        %v992 = vsub.f32 1.0, %v991
        %v993 = vmul.f32 %v990, %v992
        %v994 = vadd.f32 %v990, %v993
        %vm995 = vweird.f32 %v990
        %v996 = vsel %vm995, %v990, %v994
        %v997 = vmul.f32 %v989, %v996
        %v998 = vsub.f32 %v986, %v997
        %v999 = vmul.f32 %v998, %v998
        %v1000 = vsel %vm593, %v999, 0.0
        %1001 = vadd.xlane.f32.xlu0 %v1000
        %v1002 = vpop.xlane.xlu0 %1001
        %v1003 = vmul.f32 %v1002, %v996
        %v1004 = vadd.f32 %v1003, 1e-05
        %v1005 = vrsqrt.pop %v1004
        %v1006 = vmul.f32 %v1005, %v1004
        %v1007 = vmul.f32 %v1006, %v1005
        %v1008 = vmul.f32 0.5, %v1007
        %v1009 = vsub.f32 1.5, %v1008
        %v1010 = vmul.f32 %v1005, %v1009
        %vm1011 = vweird.f32 %v1004
        %vm1012 = vweird.f32 %v1005
        %vm1013 = vmor %vm1011, %vm1012
        %v1014 = vsel %vm1013, %v1005, %v1010
        %v1015 = vmul.f32 %v998, %v1014
        %v1016 = vld [vmem:[%s7] sm:$0x1]
        %v1018 = vperm.slane %v1016, 0
        %v1020 = vmul.f32 %v1015, %v1018
        %v1021 = vld [vmem:[%s8] sm:$0x1]
        %v1023 = vperm.slane %v1021, 0
        %v1025 = vadd.f32 %v1020, %v1023
        %v1026 = vld [vmem:[#allocation7] sm:$0xff]
        %v1027 = vld [vmem:[#allocation7 + $0x8] sm:$0xff]
        %v1028 = vld [vmem:[#allocation7 + $0x10] sm:$0xff]
        %v1029 = vld [vmem:[#allocation7 + $0x18] sm:$0xff]
        %v1030 = vld [vmem:[%s10] sm:$0x1]
        %v1032 = vperm.slane %v1030, 0
        %v1035 = vsel %vm593, %v1025, 0
        %1037 = vmatpush.msra.mxu0 0.0
        %1038 = vmatpush.msra.mxu0 0.0
        %1039 = vmatpush.msra.mxu0 0.0
        %1040 = vmatpush.msra.mxu0 0.0
        %1041 = vmatpush.msra.mxu0 0.0
        %1042 = vmatpush.msra.mxu0 0.0
        %1043 = vmatpush.msra.mxu0 0.0
        %1044 = vmatpush.msra.mxu0 0.0
        %1045 = vmatpush.msra.mxu0 0.0
        %1046 = vmatpush.msra.mxu0 0.0
        %1047 = vmatpush.msra.mxu0 0.0
        %1048 = vmatpush.msra.mxu0 0.0
        %1049 = vmatpush.msra.mxu0 %v1029
        %1050 = vmatpush.msra.mxu0 %v1028
        %1051 = vmatpush.msra.mxu0 %v1027
        %1052 = vmatpush.msra.mxu0 %v1026
        %1053 = vmatmul.f32.gmra.mxu0 %v1035
        %v1054 = vpop.f32.mrf.mxu0
        %v1055 = vadd.f32 %v1032, %v1054
        %1056 = vdwg.mxu0
        %v1057 = vmax.f32 %v1055, 0.0
        %v1058 = vld [vmem:[%s11] sm:$0xff]
        %v1059 = vld [vmem:[%s11 + $0x8] sm:$0xff]
        %v1060 = vld [vmem:[%s11 + $0x10] sm:$0xff]
        %v1061 = vld [vmem:[%s11 + $0x18] sm:$0xff]
        %v1062 = vld [vmem:[%s11 + $0x20] sm:$0xff]
        %v1063 = vld [vmem:[%s11 + $0x28] sm:$0xff]
        %v1064 = vld [vmem:[%s11 + $0x30] sm:$0xff]
        %v1065 = vld [vmem:[%s11 + $0x38] sm:$0xff]
        %v1066 = vld [vmem:[%s12] sm:$0x1]
        %v1068 = vperm.slane %v1066, 0
        %vm1070 = vcmask 523264
        %v1072 = vsel %vm1070, %v1057, 0
        %1074 = vmatpush.msra.mxu0 0.0
        %1075 = vmatpush.msra.mxu0 0.0
        %1076 = vmatpush.msra.mxu0 0.0
        %1077 = vmatpush.msra.mxu0 0.0
        %1078 = vmatpush.msra.mxu0 0.0
        %1079 = vmatpush.msra.mxu0 0.0
        %1080 = vmatpush.msra.mxu0 0.0
        %1081 = vmatpush.msra.mxu0 0.0
        %1082 = vmatpush.msra.mxu0 %v1065
        %1083 = vmatpush.msra.mxu0 %v1064
        %1084 = vmatpush.msra.mxu0 %v1063
        %1085 = vmatpush.msra.mxu0 %v1062
        %1086 = vmatpush.msra.mxu0 %v1061
        %1087 = vmatpush.msra.mxu0 %v1060
        %1088 = vmatpush.msra.mxu0 %v1059
        %1089 = vmatpush.msra.mxu0 %v1058
        %1090 = vmatmul.f32.gmra.mxu0 %v1072
        %v1091 = vpop.f32.mrf.mxu0
        %v1092 = vadd.f32 %v1068, %v1091
        %1093 = vdwg.mxu0
        %v1094 = vadd.f32 %v1025, %v1092
        %v1095 = vsel %vm593, %v1094, 0.0
        %1096 = vadd.xlane.f32.xlu0 %v1095
        %v1097 = vpop.xlane.xlu0 %1096
        %v1098 = vmul.f32 %v1097, %v996
        %v1099 = vsub.f32 %v1094, %v1098
        %v1100 = vmul.f32 %v1099, %v1099
        %v1101 = vsel %vm593, %v1100, 0.0
        %1102 = vadd.xlane.f32.xlu0 %v1101
        %v1103 = vpop.xlane.xlu0 %1102
        %v1104 = vmul.f32 %v1103, %v996
        %v1105 = vadd.f32 %v1104, 1e-05
        %v1106 = vrsqrt.pop %v1105
        %v1107 = vmul.f32 %v1106, %v1105
        %v1108 = vmul.f32 %v1107, %v1106
        %v1109 = vmul.f32 0.5, %v1108
        %v1110 = vsub.f32 1.5, %v1109
        %v1111 = vmul.f32 %v1106, %v1110
        %vm1112 = vweird.f32 %v1105
        %vm1113 = vweird.f32 %v1106
        %vm1114 = vmor %vm1112, %vm1113
        %v1115 = vsel %vm1114, %v1106, %v1111
        %v1116 = vmul.f32 %v1099, %v1115
        %v1117 = vld [vmem:[%s13] sm:$0x1]
        %v1119 = vperm.slane %v1117, 0
        %v1121 = vmul.f32 %v1116, %v1119
        %v1122 = vld [vmem:[%s14] sm:$0x1]
        %v1124 = vperm.slane %v1122, 0
        %v1126 = vadd.f32 %v1121, %v1124
        %1127 = vst.msk [vmem:[%s542] sm:$0xff] %vm593, %v1126
        %s1128 = sand.u32 %s375, 1
        %s1129 = scalar_lea.sflag [#allocation6], %s1128
        %s1130 = sand.u32 %s375, 1
        %s1131 = smul.addr %s1130, 8
        %s1132 = scalar_lea.vmem [#allocation9], %s1131
        // Predicated region
        $region93: #{tpu_custom_call.1} parent=79 // pred_check
          %p1133 = pneg %p385
        $region94: #{tpu_custom_call.1} parent=79 // pred_check_branch
          %1135 = sbr.rel (%p1133) target = $region96
        $region95: #{tpu_custom_call.1} parent=79 // pred_region
          %1137 = vsyncadd %s1129, 0
          %s1138 = sadd.s32 %s38, %s37
          %s1139 = smul.addr %s1138, 8
          %s1140 = scalar_lea.hbm %s15, %s1139
          %s1142 = sshll.u32 %s1132, 4
          %s1143 = int_to_ptr.vmem [resolvable:$true] %s1142
          %s1144 = sshll.u32 %s1140, 4
          %s1145 = int_to_ptr.hbm [resolvable:$true] %s1144
          %1147 = dma.vmem_to_hbm [thread:$0]  %s1143, 128, %s1145, %s1129
        $region96: #{tpu_custom_call.1} parent=79 // pred_fallthru
          _
      $region80: #{tpu_custom_call.1} parent=5 // pred_fallthru
        _
      %p1148 = scmp.le.s32.totalorder 2, %s28
      // Predicated region
      $region97: #{tpu_custom_call.1} parent=5 // pred_check
        %p1149 = pneg %p1148
      $region98: #{tpu_custom_call.1} parent=5 // pred_check_branch
        %1151 = sbr.rel (%p1149) target = $region100
      $region99: #{tpu_custom_call.1} parent=5 // pred_region
        %s1152 = ssub.s32 %s28, 2
        // Predicated region
        $region101: #{tpu_custom_call.1} parent=99 // pred_check
          %p1153 = pneg %p391
        $region102: #{tpu_custom_call.1} parent=99 // pred_check_branch
          %1155 = sbr.rel (%p1153) target = $region104
        $region103: #{tpu_custom_call.1} parent=99 // pred_region
          %s1156 = sand.u32 %s376, 1
          %s1157 = scalar_lea.sflag [#allocation6], %s1156
          %s1158 = sand.u32 %s376, 1
          %s1159 = smul.addr %s1158, 8
          %s1160 = scalar_lea.vmem [#allocation9], %s1159
          %1162 = dma.done %s1157, 128
        $region104: #{tpu_custom_call.1} parent=99 // pred_fallthru
          _
      $region100: #{tpu_custom_call.1} parent=5 // pred_fallthru
        _
    $region6: #{tpu_custom_call.1} parent=1 // loop_footer
      %s32 = sadd.s32 1, %s28
    $region7: #{tpu_custom_call.1} parent=1 // loop_footer_branch
      %27 = sbr.rel target = $region3
    $region8: #{tpu_custom_call.1} parent=1 // loop_exit
      _
    %1163 = vsyncpa [#allocation5], 1
    %s1164 = scalar_lea.sflag [#allocation5], 1
    %1165 = vsyncpa %s1164, 1
    %1166 = vsyncpa [#allocation8], 1
    %1167 = vsyncpa [#allocation6], 1
    %s1168 = scalar_lea.sflag [#allocation6], 1
    %1169 = vsyncpa %s1168, 1

// kernel: tpu_custom_call.1
$region0: #{tpu_custom_call.1}
  #allocation0 [shape = 'u32[]', space=smem, size = 0x4, offset = 0x4, fixed_abs, tag = 'smem constant byte address 0x4 - core index']
  #allocation1 [shape = 'u32[72,128]{1,0:T(1,128)}', space=vmem, size = 0x9000, scoped, tag = 'internal scratch']
  #allocation2 [shape = 'f32[8,64]{1,0:T(8,128)}', space=vmem, size = 0x1000, scoped, tag = 'scratch operand']
  #allocation3 [shape = 'f32[8,32]{1,0:T(8,128)}', space=vmem, size = 0x1000, scoped, tag = 'scratch operand']
  %s0 = inlined_call_operand.hbm [shape: f32[2,8,32], index: 0, kind: input, shape index: {}]
  %s1 = inlined_call_operand.vmem [shape: f32[32,32], index: 1, kind: input, shape index: {}]
  %s2 = inlined_call_operand.vmem [shape: f32[1,32], index: 2, kind: input, shape index: {}]
  %s3 = inlined_call_operand.vmem [shape: f32[32,64], index: 3, kind: input, shape index: {}]
  %s4 = inlined_call_operand.vmem [shape: f32[1,64], index: 4, kind: input, shape index: {}]
  %s5 = inlined_call_operand.vmem [shape: f32[32,32], index: 5, kind: input, shape index: {}]
  %s6 = inlined_call_operand.vmem [shape: f32[1,32], index: 6, kind: input, shape index: {}]
  %s7 = inlined_call_operand.vmem [shape: f32[1,32], index: 7, kind: input, shape index: {}]
  %s8 = inlined_call_operand.vmem [shape: f32[1,32], index: 8, kind: input, shape index: {}]
  %s9 = inlined_call_operand.hbm [shape: f32[32,64], index: 9, kind: input, shape index: {}]
  %s10 = inlined_call_operand.vmem [shape: f32[1,64], index: 10, kind: input, shape index: {}]
  %s11 = inlined_call_operand.vmem [shape: f32[64,32], index: 11, kind: input, shape index: {}]
  %s12 = inlined_call_operand.vmem [shape: f32[1,32], index: 12, kind: input, shape index: {}]
  %s13 = inlined_call_operand.vmem [shape: f32[1,32], index: 13, kind: input, shape index: {}]
  %s14 = inlined_call_operand.vmem [shape: f32[1,32], index: 14, kind: input, shape index: {}]
  %s15 = inlined_call_operand.hbm [shape: f32[2,8,32], index: 15, kind: output, shape index: {}]
  %s16 = sld [smem:[#allocation0]]
  $region105: #{tpu_custom_call.1} parent=0
    _
  %s18 = ssub.s32 1, %s16
  %s19 = scalar_select 0, %s18, %s16
  $region1: #{tpu_custom_call.1} parent=0
    #allocation4 [shape = 'u8[8192]{0}', space=vmem, size = 0x2000, scoped, tag = 'input window, operand 0']
    #allocation5 [shape = 's32[2]{0}', space=sflag, size = 0x8, scoped, tag = 'scoped memory for tpu_custom_call.1']
    #allocation6 [shape = 's32[2]{0}', space=sflag, size = 0x8, scoped, tag = 'scoped memory for tpu_custom_call.1']
    #allocation7 [shape = 'u8[16384]{0}', space=vmem, size = 0x4000, scoped, tag = 'input window, operand 9, single buffered']
    #allocation8 [shape = 's32[1]{0}', space=sflag, size = 0x4, scoped, tag = 'scoped memory for tpu_custom_call.1']
    #allocation9 [shape = 'u8[8192]{0}', space=vmem, size = 0x2000, scoped, tag = 'output window, operand 0']
    %20 = vsyncpa [#allocation5], 0
    %s21 = scalar_lea.sflag [#allocation5], 1
    %22 = vsyncpa %s21, 0
    %23 = vsyncpa [#allocation8], 0
    %24 = vsyncpa [#allocation6], 0
    %s25 = scalar_lea.sflag [#allocation6], 1
    %26 = vsyncpa %s25, 0
    loop: start=0, step=1, limit=4
    $region2: #{tpu_custom_call.1} parent=1 // loop_pre_header
      _
    $region3: #{tpu_custom_call.1} parent=1 // loop_header
      %s28 = sphi 0, %s32
      %p29 = scmp.ge.s32.totalorder %s28, 4
      %s35 = sphi 0, %s47
      %s36 = sphi 0, %s43
      %s37 = sphi 0, %s35
      %s38 = sphi 0, %s36
      %s39 = sphi 0, %s37
      %s40 = sphi 0, %s38
      %s50 = sphi 0, %s52
      %s53 = sphi 0, %s50
      %s54 = sphi 0, %s53
      %s70 = sphi 0, %s54
      %s74 = sphi 0, %s74
      %s76 = sphi 0, %s74
      %s77 = sphi 0, %s76
      %s91 = sphi 0, %s77
      %s95 = sphi 0, %s95
      %s97 = sphi 0, %s95
      %s98 = sphi 0, %s97
      %s112 = sphi 0, %s98
      %s116 = sphi 0, %s116
      %s118 = sphi 0, %s116
      %s119 = sphi 0, %s118
      %s133 = sphi 0, %s119
      %s137 = sphi 0, %s137
      %s139 = sphi 0, %s137
      %s140 = sphi 0, %s139
      %s154 = sphi 0, %s140
      %s158 = sphi 0, %s158
      %s160 = sphi 0, %s158
      %s161 = sphi 0, %s160
      %s175 = sphi 0, %s161
      %s179 = sphi 0, %s179
      %s181 = sphi 0, %s179
      %s182 = sphi 0, %s181
      %s196 = sphi 0, %s182
      %s200 = sphi 0, %s200
      %s202 = sphi 0, %s200
      %s203 = sphi 0, %s202
      %s217 = sphi 0, %s203
      %s221 = sphi 0, %s221
      %s223 = sphi 0, %s221
      %s224 = sphi 0, %s223
      %s238 = sphi 0, %s224
      %s242 = sphi 0, %s242
      %s244 = sphi 0, %s242
      %s245 = sphi 0, %s244
      %s259 = sphi 0, %s245
      %s263 = sphi 0, %s263
      %s265 = sphi 0, %s263
      %s266 = sphi 0, %s265
      %s280 = sphi 0, %s266
      %s284 = sphi 0, %s284
      %s286 = sphi 0, %s284
      %s287 = sphi 0, %s286
      %s301 = sphi 0, %s287
      %s305 = sphi 0, %s305
      %s307 = sphi 0, %s305
      %s308 = sphi 0, %s307
      %s322 = sphi 0, %s308
      %s326 = sphi 0, %s326
      %s328 = sphi 0, %s326
      %s329 = sphi 0, %s328
      %s343 = sphi 0, %s329
      %s347 = sphi 0, %s347
      %s349 = sphi 0, %s347
      %s350 = sphi 0, %s349
      %s364 = sphi 0, %s350
      %s372 = sphi 0, %s374
      %s375 = sphi 0, %s372
      %s376 = sphi 0, %s375
      %s392 = sphi 0, %s376
    $region4: #{tpu_custom_call.1} parent=1 // loop_header_branch
      %31 = sbr.rel (%p29) target = $region8
    $region5: #{tpu_custom_call.1} parent=1 // loop_body
      %s33 = ssub.s32 %s28, 1
      %s34 = ssub.s32 %s28, 2
      %s41 = sadd.s32 1, %s36
      %p42 = scmp.ge.s32.totalorder %s41, 1
      %s43 = scalar_select %p42, 0, %s41
      %s44 = sadd.s32 1, %s35
      %s45 = scalar_select %p42, %s44, %s35
      %p46 = scmp.ge.s32.totalorder %s45, 2
      %s47 = scalar_select %p46, 0, %s45
      %s48 = ssub.s32 %s35, %s47
      %p49 = scmp.eq.s32.totalorder %s48, 0
      %s51 = sadd.s32 %s50, 1
      %s52 = scalar_select %p49, %s50, %s51
      %p55 = pneg %p49
      %p56 = scmp.eq.s32.totalorder %s28, 1
      %p57 = por %p55, %p56
      %p58 = scmp.ne.s32.totalorder %s50, %s53
      %p59 = scmp.eq.s32.totalorder %s28, 0
      %p60 = por %p58, %p59
      %p61 = scmp.ne.s32.totalorder %s50, %s53
      %p62 = scmp.eq.s32.totalorder %s33, 1
      %p63 = por %p61, %p62
      %p64 = scmp.ne.s32.totalorder %s53, %s54
      %p65 = scmp.eq.s32.totalorder %s33, 0
      %p66 = por %p64, %p65
      %p67 = scmp.ne.s32.totalorder %s53, %s54
      %p68 = scmp.eq.s32.totalorder %s34, 1
      %p69 = por %p67, %p68
      %p71 = scmp.ne.s32.totalorder %s54, %s70
      %p72 = scmp.eq.s32.totalorder %s34, 0
      %p73 = por %p71, %p72
      %s75 = sadd.s32 %s74, 1
      %p78 = scmp.eq.s32.totalorder %s28, 1
      %p79 = scmp.ne.s32.totalorder %s74, %s76
      %p80 = scmp.eq.s32.totalorder %s28, 0
      %p81 = por %p79, %p80
      %p82 = scmp.ne.s32.totalorder %s74, %s76
      %p83 = scmp.eq.s32.totalorder %s33, 1
      %p84 = por %p82, %p83
      %p85 = scmp.ne.s32.totalorder %s76, %s77
      %p86 = scmp.eq.s32.totalorder %s33, 0
      %p87 = por %p85, %p86
      %p88 = scmp.ne.s32.totalorder %s76, %s77
      %p89 = scmp.eq.s32.totalorder %s34, 1
      %p90 = por %p88, %p89
      %p92 = scmp.ne.s32.totalorder %s77, %s91
      %p93 = scmp.eq.s32.totalorder %s34, 0
      %p94 = por %p92, %p93
      %s96 = sadd.s32 %s95, 1
      %p99 = scmp.eq.s32.totalorder %s28, 1
      %p100 = scmp.ne.s32.totalorder %s95, %s97
      %p101 = scmp.eq.s32.totalorder %s28, 0
      %p102 = por %p100, %p101
      %p103 = scmp.ne.s32.totalorder %s95, %s97
      %p104 = scmp.eq.s32.totalorder %s33, 1
      %p105 = por %p103, %p104
      %p106 = scmp.ne.s32.totalorder %s97, %s98
      %p107 = scmp.eq.s32.totalorder %s33, 0
      %p108 = por %p106, %p107
      %p109 = scmp.ne.s32.totalorder %s97, %s98
      %p110 = scmp.eq.s32.totalorder %s34, 1
      %p111 = por %p109, %p110
      %p113 = scmp.ne.s32.totalorder %s98, %s112
      %p114 = scmp.eq.s32.totalorder %s34, 0
      %p115 = por %p113, %p114
      %s117 = sadd.s32 %s116, 1
      %p120 = scmp.eq.s32.totalorder %s28, 1
      %p121 = scmp.ne.s32.totalorder %s116, %s118
      %p122 = scmp.eq.s32.totalorder %s28, 0
      %p123 = por %p121, %p122
      %p124 = scmp.ne.s32.totalorder %s116, %s118
      %p125 = scmp.eq.s32.totalorder %s33, 1
      %p126 = por %p124, %p125
      %p127 = scmp.ne.s32.totalorder %s118, %s119
      %p128 = scmp.eq.s32.totalorder %s33, 0
      %p129 = por %p127, %p128
      %p130 = scmp.ne.s32.totalorder %s118, %s119
      %p131 = scmp.eq.s32.totalorder %s34, 1
      %p132 = por %p130, %p131
      %p134 = scmp.ne.s32.totalorder %s119, %s133
      %p135 = scmp.eq.s32.totalorder %s34, 0
      %p136 = por %p134, %p135
      %s138 = sadd.s32 %s137, 1
      %p141 = scmp.eq.s32.totalorder %s28, 1
      %p142 = scmp.ne.s32.totalorder %s137, %s139
      %p143 = scmp.eq.s32.totalorder %s28, 0
      %p144 = por %p142, %p143
      %p145 = scmp.ne.s32.totalorder %s137, %s139
      %p146 = scmp.eq.s32.totalorder %s33, 1
      %p147 = por %p145, %p146
      %p148 = scmp.ne.s32.totalorder %s139, %s140
      %p149 = scmp.eq.s32.totalorder %s33, 0
      %p150 = por %p148, %p149
      %p151 = scmp.ne.s32.totalorder %s139, %s140
      %p152 = scmp.eq.s32.totalorder %s34, 1
      %p153 = por %p151, %p152
      %p155 = scmp.ne.s32.totalorder %s140, %s154
      %p156 = scmp.eq.s32.totalorder %s34, 0
      %p157 = por %p155, %p156
      %s159 = sadd.s32 %s158, 1
      %p162 = scmp.eq.s32.totalorder %s28, 1
      %p163 = scmp.ne.s32.totalorder %s158, %s160
      %p164 = scmp.eq.s32.totalorder %s28, 0
      %p165 = por %p163, %p164
      %p166 = scmp.ne.s32.totalorder %s158, %s160
      %p167 = scmp.eq.s32.totalorder %s33, 1
      %p168 = por %p166, %p167
      %p169 = scmp.ne.s32.totalorder %s160, %s161
      %p170 = scmp.eq.s32.totalorder %s33, 0
      %p171 = por %p169, %p170
      %p172 = scmp.ne.s32.totalorder %s160, %s161
      %p173 = scmp.eq.s32.totalorder %s34, 1
      %p174 = por %p172, %p173
      %p176 = scmp.ne.s32.totalorder %s161, %s175
      %p177 = scmp.eq.s32.totalorder %s34, 0
      %p178 = por %p176, %p177
      %s180 = sadd.s32 %s179, 1
      %p183 = scmp.eq.s32.totalorder %s28, 1
      %p184 = scmp.ne.s32.totalorder %s179, %s181
      %p185 = scmp.eq.s32.totalorder %s28, 0
      %p186 = por %p184, %p185
      %p187 = scmp.ne.s32.totalorder %s179, %s181
      %p188 = scmp.eq.s32.totalorder %s33, 1
      %p189 = por %p187, %p188
      %p190 = scmp.ne.s32.totalorder %s181, %s182
      %p191 = scmp.eq.s32.totalorder %s33, 0
      %p192 = por %p190, %p191
      %p193 = scmp.ne.s32.totalorder %s181, %s182
      %p194 = scmp.eq.s32.totalorder %s34, 1
      %p195 = por %p193, %p194
      %p197 = scmp.ne.s32.totalorder %s182, %s196
      %p198 = scmp.eq.s32.totalorder %s34, 0
      %p199 = por %p197, %p198
      %s201 = sadd.s32 %s200, 1
      %p204 = scmp.eq.s32.totalorder %s28, 1
      %p205 = scmp.ne.s32.totalorder %s200, %s202
      %p206 = scmp.eq.s32.totalorder %s28, 0
      %p207 = por %p205, %p206
      %p208 = scmp.ne.s32.totalorder %s200, %s202
      %p209 = scmp.eq.s32.totalorder %s33, 1
      %p210 = por %p208, %p209
      %p211 = scmp.ne.s32.totalorder %s202, %s203
      %p212 = scmp.eq.s32.totalorder %s33, 0
      %p213 = por %p211, %p212
      %p214 = scmp.ne.s32.totalorder %s202, %s203
      %p215 = scmp.eq.s32.totalorder %s34, 1
      %p216 = por %p214, %p215
      %p218 = scmp.ne.s32.totalorder %s203, %s217
      %p219 = scmp.eq.s32.totalorder %s34, 0
      %p220 = por %p218, %p219
      %s222 = sadd.s32 %s221, 1
      %p225 = scmp.eq.s32.totalorder %s28, 1
      %p226 = scmp.ne.s32.totalorder %s221, %s223
      %p227 = scmp.eq.s32.totalorder %s28, 0
      %p228 = por %p226, %p227
      %p229 = scmp.ne.s32.totalorder %s221, %s223
      %p230 = scmp.eq.s32.totalorder %s33, 1
      %p231 = por %p229, %p230
      %p232 = scmp.ne.s32.totalorder %s223, %s224
      %p233 = scmp.eq.s32.totalorder %s33, 0
      %p234 = por %p232, %p233
      %p235 = scmp.ne.s32.totalorder %s223, %s224
      %p236 = scmp.eq.s32.totalorder %s34, 1
      %p237 = por %p235, %p236
      %p239 = scmp.ne.s32.totalorder %s224, %s238
      %p240 = scmp.eq.s32.totalorder %s34, 0
      %p241 = por %p239, %p240
      %s243 = sadd.s32 %s242, 1
      %p246 = scmp.eq.s32.totalorder %s28, 1
      %p247 = scmp.ne.s32.totalorder %s242, %s244
      %p248 = scmp.eq.s32.totalorder %s28, 0
      %p249 = por %p247, %p248
      %p250 = scmp.ne.s32.totalorder %s242, %s244
      %p251 = scmp.eq.s32.totalorder %s33, 1
      %p252 = por %p250, %p251
      %p253 = scmp.ne.s32.totalorder %s244, %s245
      %p254 = scmp.eq.s32.totalorder %s33, 0
      %p255 = por %p253, %p254
      %p256 = scmp.ne.s32.totalorder %s244, %s245
      %p257 = scmp.eq.s32.totalorder %s34, 1
      %p258 = por %p256, %p257
      %p260 = scmp.ne.s32.totalorder %s245, %s259
      %p261 = scmp.eq.s32.totalorder %s34, 0
      %p262 = por %p260, %p261
      %s264 = sadd.s32 %s263, 1
      %p267 = scmp.eq.s32.totalorder %s28, 1
      %p268 = scmp.ne.s32.totalorder %s263, %s265
      %p269 = scmp.eq.s32.totalorder %s28, 0
      %p270 = por %p268, %p269
      %p271 = scmp.ne.s32.totalorder %s263, %s265
      %p272 = scmp.eq.s32.totalorder %s33, 1
      %p273 = por %p271, %p272
      %p274 = scmp.ne.s32.totalorder %s265, %s266
      %p275 = scmp.eq.s32.totalorder %s33, 0
      %p276 = por %p274, %p275
      %p277 = scmp.ne.s32.totalorder %s265, %s266
      %p278 = scmp.eq.s32.totalorder %s34, 1
      %p279 = por %p277, %p278
      %p281 = scmp.ne.s32.totalorder %s266, %s280
      %p282 = scmp.eq.s32.totalorder %s34, 0
      %p283 = por %p281, %p282
      %s285 = sadd.s32 %s284, 1
      %p288 = scmp.eq.s32.totalorder %s28, 1
      %p289 = scmp.ne.s32.totalorder %s284, %s286
      %p290 = scmp.eq.s32.totalorder %s28, 0
      %p291 = por %p289, %p290
      %p292 = scmp.ne.s32.totalorder %s284, %s286
      %p293 = scmp.eq.s32.totalorder %s33, 1
      %p294 = por %p292, %p293
      %p295 = scmp.ne.s32.totalorder %s286, %s287
      %p296 = scmp.eq.s32.totalorder %s33, 0
      %p297 = por %p295, %p296
      %p298 = scmp.ne.s32.totalorder %s286, %s287
      %p299 = scmp.eq.s32.totalorder %s34, 1
      %p300 = por %p298, %p299
      %p302 = scmp.ne.s32.totalorder %s287, %s301
      %p303 = scmp.eq.s32.totalorder %s34, 0
      %p304 = por %p302, %p303
      %s306 = sadd.s32 %s305, 1
      %p309 = scmp.eq.s32.totalorder %s28, 1
      %p310 = scmp.ne.s32.totalorder %s305, %s307
      %p311 = scmp.eq.s32.totalorder %s28, 0
      %p312 = por %p310, %p311
      %p313 = scmp.ne.s32.totalorder %s305, %s307
      %p314 = scmp.eq.s32.totalorder %s33, 1
      %p315 = por %p313, %p314
      %p316 = scmp.ne.s32.totalorder %s307, %s308
      %p317 = scmp.eq.s32.totalorder %s33, 0
      %p318 = por %p316, %p317
      %p319 = scmp.ne.s32.totalorder %s307, %s308
      %p320 = scmp.eq.s32.totalorder %s34, 1
      %p321 = por %p319, %p320
      %p323 = scmp.ne.s32.totalorder %s308, %s322
      %p324 = scmp.eq.s32.totalorder %s34, 0
      %p325 = por %p323, %p324
      %s327 = sadd.s32 %s326, 1
      %p330 = scmp.eq.s32.totalorder %s28, 1
      %p331 = scmp.ne.s32.totalorder %s326, %s328
      %p332 = scmp.eq.s32.totalorder %s28, 0
      %p333 = por %p331, %p332
      %p334 = scmp.ne.s32.totalorder %s326, %s328
      %p335 = scmp.eq.s32.totalorder %s33, 1
      %p336 = por %p334, %p335
      %p337 = scmp.ne.s32.totalorder %s328, %s329
      %p338 = scmp.eq.s32.totalorder %s33, 0
      %p339 = por %p337, %p338
      %p340 = scmp.ne.s32.totalorder %s328, %s329
      %p341 = scmp.eq.s32.totalorder %s34, 1
      %p342 = por %p340, %p341
      %p344 = scmp.ne.s32.totalorder %s329, %s343
      %p345 = scmp.eq.s32.totalorder %s34, 0
      %p346 = por %p344, %p345
      %s348 = sadd.s32 %s347, 1
      %p351 = scmp.eq.s32.totalorder %s28, 1
      %p352 = scmp.ne.s32.totalorder %s347, %s349
      %p353 = scmp.eq.s32.totalorder %s28, 0
      %p354 = por %p352, %p353
      %p355 = scmp.ne.s32.totalorder %s347, %s349
      %p356 = scmp.eq.s32.totalorder %s33, 1
      %p357 = por %p355, %p356
      %p358 = scmp.ne.s32.totalorder %s349, %s350
      %p359 = scmp.eq.s32.totalorder %s33, 0
      %p360 = por %p358, %p359
      %p361 = scmp.ne.s32.totalorder %s349, %s350
      %p362 = scmp.eq.s32.totalorder %s34, 1
      %p363 = por %p361, %p362
      %p365 = scmp.ne.s32.totalorder %s350, %s364
      %p366 = scmp.eq.s32.totalorder %s34, 0
      %p367 = por %p365, %p366
      %s368 = ssub.s32 %s35, %s47
      %s369 = ssub.s32 %s36, %s43
      %s370 = sor.u32 %s368, %s369
      %p371 = scmp.eq.s32.totalorder %s370, 0
      %s373 = sadd.s32 %s372, 1
      %s374 = scalar_select %p371, %s372, %s373
      %p377 = pneg %p371
      %p378 = scmp.eq.s32.totalorder %s28, 1
      %p379 = por %p377, %p378
      %p380 = scmp.ne.s32.totalorder %s372, %s375
      %p381 = scmp.eq.s32.totalorder %s28, 0
      %p382 = por %p380, %p381
      %p383 = scmp.ne.s32.totalorder %s372, %s375
      %p384 = scmp.eq.s32.totalorder %s33, 1
      %p385 = por %p383, %p384
      %p386 = scmp.ne.s32.totalorder %s375, %s376
      %p387 = scmp.eq.s32.totalorder %s33, 0
      %p388 = por %p386, %p387
      %p389 = scmp.ne.s32.totalorder %s375, %s376
      %p390 = scmp.eq.s32.totalorder %s34, 1
      %p391 = por %p389, %p390
      %p393 = scmp.ne.s32.totalorder %s376, %s392
      %p394 = scmp.eq.s32.totalorder %s34, 0
      %p395 = por %p393, %p394
      %p396 = scmp.le.s32.totalorder 1, %s28
      %p397 = scmp.lt.s32.totalorder %s28, 3
      %p398 = pnand %p396, %p397
      %p399 = pneg %p398
      // Predicated region
      $region9: #{tpu_custom_call.1} parent=5 // pred_check
        _
      $region10: #{tpu_custom_call.1} parent=5 // pred_check_branch
        %401 = sbr.rel (%p398) target = $region12
      $region11: #{tpu_custom_call.1} parent=5 // pred_region
        %s402 = ssub.s32 %s28, 1
        // Predicated region
        $region13: #{tpu_custom_call.1} parent=11 // pred_check
          %p403 = pneg %p87
        $region14: #{tpu_custom_call.1} parent=11 // pred_check_branch
          %405 = sbr.rel (%p403) target = $region16
        $region15: #{tpu_custom_call.1} parent=11 // pred_region
          _
        $region16: #{tpu_custom_call.1} parent=11 // pred_fallthru
          _
        // Predicated region
        $region17: #{tpu_custom_call.1} parent=11 // pred_check
          %p406 = pneg %p108
        $region18: #{tpu_custom_call.1} parent=11 // pred_check_branch
          %408 = sbr.rel (%p406) target = $region20
        $region19: #{tpu_custom_call.1} parent=11 // pred_region
          _
        $region20: #{tpu_custom_call.1} parent=11 // pred_fallthru
          _
        // Predicated region
        $region21: #{tpu_custom_call.1} parent=11 // pred_check
          %p409 = pneg %p129
        $region22: #{tpu_custom_call.1} parent=11 // pred_check_branch
          %411 = sbr.rel (%p409) target = $region24
        $region23: #{tpu_custom_call.1} parent=11 // pred_region
          _
        $region24: #{tpu_custom_call.1} parent=11 // pred_fallthru
          _
        // Predicated region
        $region25: #{tpu_custom_call.1} parent=11 // pred_check
          %p412 = pneg %p150
        $region26: #{tpu_custom_call.1} parent=11 // pred_check_branch
          %414 = sbr.rel (%p412) target = $region28
        $region27: #{tpu_custom_call.1} parent=11 // pred_region
          _
        $region28: #{tpu_custom_call.1} parent=11 // pred_fallthru
          _
        // Predicated region
        $region29: #{tpu_custom_call.1} parent=11 // pred_check
          %p415 = pneg %p171
        $region30: #{tpu_custom_call.1} parent=11 // pred_check_branch
          %417 = sbr.rel (%p415) target = $region32
        $region31: #{tpu_custom_call.1} parent=11 // pred_region
          _
        $region32: #{tpu_custom_call.1} parent=11 // pred_fallthru
          _
        // Predicated region
        $region33: #{tpu_custom_call.1} parent=11 // pred_check
          %p418 = pneg %p192
        $region34: #{tpu_custom_call.1} parent=11 // pred_check_branch
          %420 = sbr.rel (%p418) target = $region36
        $region35: #{tpu_custom_call.1} parent=11 // pred_region
          _
        $region36: #{tpu_custom_call.1} parent=11 // pred_fallthru
          _
        // Predicated region
        $region37: #{tpu_custom_call.1} parent=11 // pred_check
          %p421 = pneg %p213
        $region38: #{tpu_custom_call.1} parent=11 // pred_check_branch
          %423 = sbr.rel (%p421) target = $region40
        $region39: #{tpu_custom_call.1} parent=11 // pred_region
          _
        $region40: #{tpu_custom_call.1} parent=11 // pred_fallthru
          _
        // Predicated region
        $region41: #{tpu_custom_call.1} parent=11 // pred_check
          %p424 = pneg %p234
        $region42: #{tpu_custom_call.1} parent=11 // pred_check_branch
          %426 = sbr.rel (%p424) target = $region44
        $region43: #{tpu_custom_call.1} parent=11 // pred_region
          _
        $region44: #{tpu_custom_call.1} parent=11 // pred_fallthru
          _
        // Predicated region
        $region45: #{tpu_custom_call.1} parent=11 // pred_check
          %p427 = pneg %p255
        $region46: #{tpu_custom_call.1} parent=11 // pred_check_branch
          %429 = sbr.rel (%p427) target = $region48
        $region47: #{tpu_custom_call.1} parent=11 // pred_region
          %431 = vsyncadd [#allocation8], 0
          %s432 = sshll.u32 %s9, 4
          %s433 = int_to_ptr.hbm [resolvable:$true] %s432
          %s434 = sshll.u32 [#allocation7], 4
          %s435 = int_to_ptr.vmem [resolvable:$true] %s434
          %440 = dma.hbm_to_vmem [thread:$0]  %s433, 512, %s435, [#allocation8], 128, 128, 8
        $region48: #{tpu_custom_call.1} parent=11 // pred_fallthru
          _
        // Predicated region
        $region49: #{tpu_custom_call.1} parent=11 // pred_check
          %p441 = pneg %p276
        $region50: #{tpu_custom_call.1} parent=11 // pred_check_branch
          %443 = sbr.rel (%p441) target = $region52
        $region51: #{tpu_custom_call.1} parent=11 // pred_region
          _
        $region52: #{tpu_custom_call.1} parent=11 // pred_fallthru
          _
        // Predicated region
        $region53: #{tpu_custom_call.1} parent=11 // pred_check
          %p444 = pneg %p297
        $region54: #{tpu_custom_call.1} parent=11 // pred_check_branch
          %446 = sbr.rel (%p444) target = $region56
        $region55: #{tpu_custom_call.1} parent=11 // pred_region
          _
        $region56: #{tpu_custom_call.1} parent=11 // pred_fallthru
          _
        // Predicated region
        $region57: #{tpu_custom_call.1} parent=11 // pred_check
          %p447 = pneg %p318
        $region58: #{tpu_custom_call.1} parent=11 // pred_check_branch
          %449 = sbr.rel (%p447) target = $region60
        $region59: #{tpu_custom_call.1} parent=11 // pred_region
          _
        $region60: #{tpu_custom_call.1} parent=11 // pred_fallthru
          _
        // Predicated region
        $region61: #{tpu_custom_call.1} parent=11 // pred_check
          %p450 = pneg %p339
        $region62: #{tpu_custom_call.1} parent=11 // pred_check_branch
          %452 = sbr.rel (%p450) target = $region64
        $region63: #{tpu_custom_call.1} parent=11 // pred_region
          _
        $region64: #{tpu_custom_call.1} parent=11 // pred_fallthru
          _
        // Predicated region
        $region65: #{tpu_custom_call.1} parent=11 // pred_check
          %p453 = pneg %p360
        $region66: #{tpu_custom_call.1} parent=11 // pred_check_branch
          %455 = sbr.rel (%p453) target = $region68
        $region67: #{tpu_custom_call.1} parent=11 // pred_region
          _
        $region68: #{tpu_custom_call.1} parent=11 // pred_fallthru
          _
      $region12: #{tpu_custom_call.1} parent=5 // pred_fallthru
        _
      %p456 = scmp.lt.s32.totalorder %s28, 2
      // Predicated region
      $region69: #{tpu_custom_call.1} parent=5 // pred_check
        %p457 = pneg %p456
      $region70: #{tpu_custom_call.1} parent=5 // pred_check_branch
        %459 = sbr.rel (%p457) target = $region72
      $region71: #{tpu_custom_call.1} parent=5 // pred_region
        // Predicated region
        $region73: #{tpu_custom_call.1} parent=71 // pred_check
          %p460 = pneg %p60
        $region74: #{tpu_custom_call.1} parent=71 // pred_check_branch
          %462 = sbr.rel (%p460) target = $region76
        $region75: #{tpu_custom_call.1} parent=71 // pred_region
          %s463 = sand.u32 %s50, 1
          %s464 = scalar_lea.sflag [#allocation5], %s463
          %s465 = sand.u32 %s50, 1
          %s466 = smul.addr %s465, 8
          %s467 = scalar_lea.vmem [#allocation4], %s466
          %469 = vsyncadd %s464, 0
          %s470 = smul.addr %s35, 8
          %s471 = scalar_lea.hbm %s0, %s470
          %s473 = sshll.u32 %s471, 4
          %s474 = int_to_ptr.hbm [resolvable:$true] %s473
          %s475 = sshll.u32 %s467, 4
          %s476 = int_to_ptr.vmem [resolvable:$true] %s475
          %478 = dma.hbm_to_vmem [thread:$0]  %s474, 128, %s476, %s464
        $region76: #{tpu_custom_call.1} parent=71 // pred_fallthru
          _
      $region72: #{tpu_custom_call.1} parent=5 // pred_fallthru
        _
      %p479 = scmp.le.s32.totalorder 1, %s28
      %p480 = scmp.lt.s32.totalorder %s28, 3
      %p481 = pnand %p479, %p480
      %p482 = pneg %p481
      // Predicated region
      $region77: #{tpu_custom_call.1} parent=5 // pred_check
        _
      $region78: #{tpu_custom_call.1} parent=5 // pred_check_branch
        %484 = sbr.rel (%p481) target = $region80
      $region79: #{tpu_custom_call.1} parent=5 // pred_region
        %s485 = ssub.s32 %s28, 1
        %s486 = sand.u32 %s53, 1
        %s487 = scalar_lea.sflag [#allocation5], %s486
        %s488 = sand.u32 %s53, 1
        %s489 = smul.addr %s488, 8
        %s490 = scalar_lea.vmem [#allocation4], %s489
        // Predicated region
        $region81: #{tpu_custom_call.1} parent=79 // pred_check
          %p491 = pneg %p66
        $region82: #{tpu_custom_call.1} parent=79 // pred_check_branch
          %493 = sbr.rel (%p491) target = $region84
        $region83: #{tpu_custom_call.1} parent=79 // pred_region
          %495 = dma.done %s487, 128
        $region84: #{tpu_custom_call.1} parent=79 // pred_fallthru
          _
        // Predicated region
        $region85: #{tpu_custom_call.1} parent=79 // pred_check
          %p496 = pneg %p255
        $region86: #{tpu_custom_call.1} parent=79 // pred_check_branch
          %498 = sbr.rel (%p496) target = $region88
        $region87: #{tpu_custom_call.1} parent=79 // pred_region
          %500 = dma.done [#allocation8], 512
        $region88: #{tpu_custom_call.1} parent=79 // pred_fallthru
          _
        %s501 = sand.u32 %s53, 1
        %s502 = scalar_lea.sflag [#allocation5], %s501
        %s503 = sand.u32 %s53, 1
        %s504 = smul.addr %s503, 8
        %s505 = scalar_lea.vmem [#allocation4], %s504
        %p506 = pneg %p66
        %p507 = pneg %p63
        %p508 = pneg %p87
        %p509 = pneg %p84
        %p510 = pneg %p108
        %p511 = pneg %p105
        %p512 = pneg %p129
        %p513 = pneg %p126
        %p514 = pneg %p150
        %p515 = pneg %p147
        %p516 = pneg %p171
        %p517 = pneg %p168
        %p518 = pneg %p192
        %p519 = pneg %p189
        %p520 = pneg %p213
        %p521 = pneg %p210
        %p522 = pneg %p234
        %p523 = pneg %p231
        %p524 = pneg %p255
        %p525 = pneg %p252
        %p526 = pneg %p276
        %p527 = pneg %p273
        %p528 = pneg %p297
        %p529 = pneg %p294
        %p530 = pneg %p318
        %p531 = pneg %p315
        %p532 = pneg %p339
        %p533 = pneg %p336
        %p534 = pneg %p360
        %p535 = pneg %p357
        %p536 = pneg %p388
        %p537 = pneg %p385
        %s538 = sand.u32 %s375, 1
        %s539 = scalar_lea.sflag [#allocation6], %s538
        %s540 = sand.u32 %s375, 1
        %s541 = smul.addr %s540, 8
        %s542 = scalar_lea.vmem [#allocation9], %s541
        %p543 = scmp.eq.s32.totalorder %s38, 0
        // Predicated region
        $region89: #{tpu_custom_call.1} parent=79 // pred_check
          %p544 = pneg %p543
        $region90: #{tpu_custom_call.1} parent=79 // pred_check_branch
          %546 = sbr.rel (%p544) target = $region92
        $region91: #{tpu_custom_call.1} parent=79 // pred_region
          %v547 = vld [vmem:[%s490] sm:$0xff]
          %v548 = vld [vmem:[%s3] sm:$0xff]
          %v549 = vld [vmem:[%s3 + $0x8] sm:$0xff]
          %v550 = vld [vmem:[%s3 + $0x10] sm:$0xff]
          %v551 = vld [vmem:[%s3 + $0x18] sm:$0xff]
          %v552 = vld [vmem:[%s4] sm:$0x1]
          %v554 = vperm.slane %v552, 0
          %vm556 = vcmask 261120
          %v558 = vsel %vm556, %v547, 0
          %560 = vmatpush.msra.mxu0 0.0
          %561 = vmatpush.msra.mxu0 0.0
          %562 = vmatpush.msra.mxu0 0.0
          %563 = vmatpush.msra.mxu0 0.0
          %564 = vmatpush.msra.mxu0 0.0
          %565 = vmatpush.msra.mxu0 0.0
          %566 = vmatpush.msra.mxu0 0.0
          %567 = vmatpush.msra.mxu0 0.0
          %568 = vmatpush.msra.mxu0 0.0
          %569 = vmatpush.msra.mxu0 0.0
          %570 = vmatpush.msra.mxu0 0.0
          %571 = vmatpush.msra.mxu0 0.0
          %572 = vmatpush.msra.mxu0 %v551
          %573 = vmatpush.msra.mxu0 %v550
          %574 = vmatpush.msra.mxu0 %v549
          %575 = vmatpush.msra.mxu0 %v548
          %576 = vmatmul.f32.gmra.mxu0 %v558
          %v577 = vpop.f32.mrf.mxu0
          %v578 = vadd.f32 %v554, %v577
          %579 = vdwg.mxu0
          %vm580 = vcmask 523264
          %581 = vst.msk [vmem:[#allocation2] sm:$0xff] %vm580, %v578
        $region92: #{tpu_custom_call.1} parent=79 // pred_fallthru
          _
        %s582 = smul.u32 %s38, 8
        %s583 = scalar_lea.vmem %s490, %s582 [#allocation4]
        %v584 = vld [vmem:[%s583] sm:$0xff]
        %v585 = vld [vmem:[%s1] sm:$0xff]
        %v586 = vld [vmem:[%s1 + $0x8] sm:$0xff]
        %v587 = vld [vmem:[%s1 + $0x10] sm:$0xff]
        %v588 = vld [vmem:[%s1 + $0x18] sm:$0xff]
        %v589 = vld [vmem:[%s2] sm:$0x1]
        %v591 = vperm.slane %v589, 0
        %vm593 = vcmask 261120
        %v595 = vsel %vm593, %v584, 0
        %597 = vmatpush.msra.mxu0 0.0
        %598 = vmatpush.msra.mxu0 0.0
        %599 = vmatpush.msra.mxu0 0.0
        %600 = vmatpush.msra.mxu0 0.0
        %601 = vmatpush.msra.mxu0 0.0
        %602 = vmatpush.msra.mxu0 0.0
        %603 = vmatpush.msra.mxu0 0.0
        %604 = vmatpush.msra.mxu0 0.0
        %605 = vmatpush.msra.mxu0 0.0
        %606 = vmatpush.msra.mxu0 0.0
        %607 = vmatpush.msra.mxu0 0.0
        %608 = vmatpush.msra.mxu0 0.0
        %609 = vmatpush.msra.mxu0 %v588
        %610 = vmatpush.msra.mxu0 %v587
        %611 = vmatpush.msra.mxu0 %v586
        %612 = vmatpush.msra.mxu0 %v585
        %613 = vmatmul.f32.gmra.mxu0 %v595
        %v614 = vpop.f32.mrf.mxu0
        %v615 = vadd.f32 %v591, %v614
        %616 = vdwg.mxu0
        %v617 = vld [vmem:[#allocation2] sm:$0xff]
        %vm618 = vcmask 64512
        %v620 = vsel %vm618, %v615, 0
        %v623 = vsel %vm618, %v617, 0
        %625 = vmatpush.xpose.msra.mxu0 0.0
        %626 = vmatpush.xpose.msra.mxu0 0.0
        %627 = vmatpush.xpose.msra.mxu0 0.0
        %628 = vmatpush.xpose.msra.mxu0 0.0
        %629 = vmatpush.xpose.msra.mxu0 0.0
        %630 = vmatpush.xpose.msra.mxu0 0.0
        %631 = vmatpush.xpose.msra.mxu0 0.0
        %632 = vmatpush.xpose.msra.mxu0 0.0
        %633 = vmatpush.xpose.msra.mxu0 0.0
        %634 = vmatpush.xpose.msra.mxu0 0.0
        %635 = vmatpush.xpose.msra.mxu0 0.0
        %636 = vmatpush.xpose.msra.mxu0 0.0
        %637 = vmatpush.xpose.msra.mxu0 0.0
        %638 = vmatpush.xpose.msra.mxu0 0.0
        %639 = vmatpush.xpose.msra.mxu0 0.0
        %640 = vmatpush.xpose.msra.mxu0 %v623
        %641 = vmatmul.f32.gmra.mxu0 %v620
        %v642 = vpop.f32.mrf.mxu0
        %v643 = vadd.f32 0.0, %v642
        %644 = vdwg.mxu0
        %v645 = vsel %vm618, %v643, -inf
        %646 = vmax.xlane.f32.xlu0 %v645
        %v647 = vpop.xlane.xlu0 %646
        %v648 = vsub.f32 %v643, %v647
        %v649 = vmul.f32 %v648, 1.442695
        %v650 = vpow.pop %v649
        %v651 = vsel %vm618, %v650, 0.0
        %652 = vadd.xlane.f32.xlu0 %v651
        %v653 = vpop.xlane.xlu0 %652
        %654 = vrot.lane.b32.xlu0 %v617, 96
        %v655 = vpop.permute.xlu0 %654
        %v658 = vsel %vm618, %v650, 0
        %660 = vmatpush.msra.mxu0 0.0
        %661 = vmatpush.msra.mxu0 0.0
        %662 = vmatpush.msra.mxu0 0.0
        %663 = vmatpush.msra.mxu0 0.0
        %664 = vmatpush.msra.mxu0 0.0
        %665 = vmatpush.msra.mxu0 0.0
        %666 = vmatpush.msra.mxu0 0.0
        %667 = vmatpush.msra.mxu0 0.0
        %668 = vmatpush.msra.mxu0 0.0
        %669 = vmatpush.msra.mxu0 0.0
        %670 = vmatpush.msra.mxu0 0.0
        %671 = vmatpush.msra.mxu0 0.0
        %672 = vmatpush.msra.mxu0 0.0
        %673 = vmatpush.msra.mxu0 0.0
        %674 = vmatpush.msra.mxu0 0.0
        %675 = vmatpush.msra.mxu0 %v655
        %676 = vmatmul.f32.gmra.mxu0 %v658
        %v677 = vpop.f32.mrf.mxu0
        %v678 = vadd.f32 0.0, %v677
        %679 = vdwg.mxu0
        %v680 = vrcp.pop %v653
        %v681 = vmul.f32 %v653, %v680
        %v682 = vsub.f32 1.0, %v681
        %v683 = vmul.f32 %v680, %v682
        %v684 = vadd.f32 %v680, %v683
        %vm685 = vweird.f32 %v653
        %vm686 = vweird.f32 %v680
        %vm687 = vmor %vm685, %vm686
        %v688 = vsel %vm687, %v680, %v684
        %v689 = vand.u32 2147483647, %v653
        %vm690 = vcmp.eq.f32.partialorder %v689, 8.507059e+37
        %v691 = vand.u32 %v653, 2147483648
        %v692 = vor.u32 1.1754944e-38, %v691
        %v693 = vsel %vm690, %v692, %v688
        %v694 = vmul.f32 %v678, %v693
        %695 = vst.msk [vmem:[#allocation3] sm:$0xff] %vm618, %v694
        %v696 = vld [vmem:[#allocation2] sm:$0xff]
        %697 = vrot.lane.b32.xlu0 %v615, 120
        %v698 = vpop.permute.xlu0 %697
        %700 = vrot.lane.b32.xlu0 %v696, 120
        %v701 = vpop.permute.xlu0 %700
        %v702 = vsel %vm618, %v698, 0
        %v704 = vsel %vm618, %v701, 0
        %706 = vmatpush.xpose.msra.mxu0 0.0
        %707 = vmatpush.xpose.msra.mxu0 0.0
        %708 = vmatpush.xpose.msra.mxu0 0.0
        %709 = vmatpush.xpose.msra.mxu0 0.0
        %710 = vmatpush.xpose.msra.mxu0 0.0
        %711 = vmatpush.xpose.msra.mxu0 0.0
        %712 = vmatpush.xpose.msra.mxu0 0.0
        %713 = vmatpush.xpose.msra.mxu0 0.0
        %714 = vmatpush.xpose.msra.mxu0 0.0
        %715 = vmatpush.xpose.msra.mxu0 0.0
        %716 = vmatpush.xpose.msra.mxu0 0.0
        %717 = vmatpush.xpose.msra.mxu0 0.0
        %718 = vmatpush.xpose.msra.mxu0 0.0
        %719 = vmatpush.xpose.msra.mxu0 0.0
        %720 = vmatpush.xpose.msra.mxu0 0.0
        %721 = vmatpush.xpose.msra.mxu0 %v704
        %722 = vmatmul.f32.gmra.mxu0 %v702
        %v723 = vpop.f32.mrf.mxu0
        %v724 = vadd.f32 0.0, %v723
        %725 = vdwg.mxu0
        %v726 = vsel %vm618, %v724, -inf
        %727 = vmax.xlane.f32.xlu0 %v726
        %v728 = vpop.xlane.xlu0 %727
        %v729 = vsub.f32 %v724, %v728
        %v730 = vmul.f32 %v729, 1.442695
        %v731 = vpow.pop %v730
        %v732 = vsel %vm618, %v731, 0.0
        %733 = vadd.xlane.f32.xlu0 %v732
        %v734 = vpop.xlane.xlu0 %733
        %735 = vrot.lane.b32.xlu0 %v696, 88
        %v736 = vpop.permute.xlu0 %735
        %v739 = vsel %vm618, %v731, 0
        %741 = vmatpush.msra.mxu0 0.0
        %742 = vmatpush.msra.mxu0 0.0
        %743 = vmatpush.msra.mxu0 0.0
        %744 = vmatpush.msra.mxu0 0.0
        %745 = vmatpush.msra.mxu0 0.0
        %746 = vmatpush.msra.mxu0 0.0
        %747 = vmatpush.msra.mxu0 0.0
        %748 = vmatpush.msra.mxu0 0.0
        %749 = vmatpush.msra.mxu0 0.0
        %750 = vmatpush.msra.mxu0 0.0
        %751 = vmatpush.msra.mxu0 0.0
        %752 = vmatpush.msra.mxu0 0.0
        %753 = vmatpush.msra.mxu0 0.0
        %754 = vmatpush.msra.mxu0 0.0
        %755 = vmatpush.msra.mxu0 0.0
        %756 = vmatpush.msra.mxu0 %v736
        %757 = vmatmul.f32.gmra.mxu0 %v739
        %v758 = vpop.f32.mrf.mxu0
        %v759 = vadd.f32 0.0, %v758
        %760 = vdwg.mxu0
        %v761 = vrcp.pop %v734
        %v762 = vmul.f32 %v734, %v761
        %v763 = vsub.f32 1.0, %v762
        %v764 = vmul.f32 %v761, %v763
        %v765 = vadd.f32 %v761, %v764
        %vm766 = vweird.f32 %v734
        %vm767 = vweird.f32 %v761
        %vm768 = vmor %vm766, %vm767
        %v769 = vsel %vm768, %v761, %v765
        %v770 = vand.u32 2147483647, %v734
        %vm771 = vcmp.eq.f32.partialorder %v770, 8.507059e+37
        %v772 = vand.u32 %v734, 2147483648
        %v773 = vor.u32 1.1754944e-38, %v772
        %v774 = vsel %vm771, %v773, %v769
        %v775 = vmul.f32 %v759, %v774
        %777 = vrot.lane.b32.xlu0 %v775, 8
        %v778 = vpop.permute.xlu0 %777
        %vm780 = vcmask 130112
        %781 = vst.msk [vmem:[#allocation3] sm:$0xff] %vm780, %v778
        %v782 = vld [vmem:[#allocation2] sm:$0xff]
        %783 = vrot.lane.b32.xlu0 %v615, 112
        %v784 = vpop.permute.xlu0 %783
        %786 = vrot.lane.b32.xlu0 %v782, 112
        %v787 = vpop.permute.xlu0 %786
        %v788 = vsel %vm618, %v784, 0
        %v790 = vsel %vm618, %v787, 0
        %792 = vmatpush.xpose.msra.mxu0 0.0
        %793 = vmatpush.xpose.msra.mxu0 0.0
        %794 = vmatpush.xpose.msra.mxu0 0.0
        %795 = vmatpush.xpose.msra.mxu0 0.0
        %796 = vmatpush.xpose.msra.mxu0 0.0
        %797 = vmatpush.xpose.msra.mxu0 0.0
        %798 = vmatpush.xpose.msra.mxu0 0.0
        %799 = vmatpush.xpose.msra.mxu0 0.0
        %800 = vmatpush.xpose.msra.mxu0 0.0
        %801 = vmatpush.xpose.msra.mxu0 0.0
        %802 = vmatpush.xpose.msra.mxu0 0.0
        %803 = vmatpush.xpose.msra.mxu0 0.0
        %804 = vmatpush.xpose.msra.mxu0 0.0
        %805 = vmatpush.xpose.msra.mxu0 0.0
        %806 = vmatpush.xpose.msra.mxu0 0.0
        %807 = vmatpush.xpose.msra.mxu0 %v790
        %808 = vmatmul.f32.gmra.mxu0 %v788
        %v809 = vpop.f32.mrf.mxu0
        %v810 = vadd.f32 0.0, %v809
        %811 = vdwg.mxu0
        %v812 = vsel %vm618, %v810, -inf
        %813 = vmax.xlane.f32.xlu0 %v812
        %v814 = vpop.xlane.xlu0 %813
        %v815 = vsub.f32 %v810, %v814
        %v816 = vmul.f32 %v815, 1.442695
        %v817 = vpow.pop %v816
        %v818 = vsel %vm618, %v817, 0.0
        %819 = vadd.xlane.f32.xlu0 %v818
        %v820 = vpop.xlane.xlu0 %819
        %821 = vrot.lane.b32.xlu0 %v782, 80
        %v822 = vpop.permute.xlu0 %821
        %v825 = vsel %vm618, %v817, 0
        %827 = vmatpush.msra.mxu0 0.0
        %828 = vmatpush.msra.mxu0 0.0
        %829 = vmatpush.msra.mxu0 0.0
        %830 = vmatpush.msra.mxu0 0.0
        %831 = vmatpush.msra.mxu0 0.0
        %832 = vmatpush.msra.mxu0 0.0
        %833 = vmatpush.msra.mxu0 0.0
        %834 = vmatpush.msra.mxu0 0.0
        %835 = vmatpush.msra.mxu0 0.0
        %836 = vmatpush.msra.mxu0 0.0
        %837 = vmatpush.msra.mxu0 0.0
        %838 = vmatpush.msra.mxu0 0.0
        %839 = vmatpush.msra.mxu0 0.0
        %840 = vmatpush.msra.mxu0 0.0
        %841 = vmatpush.msra.mxu0 0.0
        %842 = vmatpush.msra.mxu0 %v822
        %843 = vmatmul.f32.gmra.mxu0 %v825
        %v844 = vpop.f32.mrf.mxu0
        %v845 = vadd.f32 0.0, %v844
        %846 = vdwg.mxu0
        %v847 = vrcp.pop %v820
        %v848 = vmul.f32 %v820, %v847
        %v849 = vsub.f32 1.0, %v848
        %v850 = vmul.f32 %v847, %v849
        %v851 = vadd.f32 %v847, %v850
        %vm852 = vweird.f32 %v820
        %vm853 = vweird.f32 %v847
        %vm854 = vmor %vm852, %vm853
        %v855 = vsel %vm854, %v847, %v851
        %v856 = vand.u32 2147483647, %v820
        %vm857 = vcmp.eq.f32.partialorder %v856, 8.507059e+37
        %v858 = vand.u32 %v820, 2147483648
        %v859 = vor.u32 1.1754944e-38, %v858
        %v860 = vsel %vm857, %v859, %v855
        %v861 = vmul.f32 %v845, %v860
        %863 = vrot.lane.b32.xlu0 %v861, 16
        %v864 = vpop.permute.xlu0 %863
        %vm866 = vcmask 195712
        %867 = vst.msk [vmem:[#allocation3] sm:$0xff] %vm866, %v864
        %v868 = vld [vmem:[#allocation2] sm:$0xff]
        %869 = vrot.lane.b32.xlu0 %v615, 104
        %v870 = vpop.permute.xlu0 %869
        %872 = vrot.lane.b32.xlu0 %v868, 104
        %v873 = vpop.permute.xlu0 %872
        %v874 = vsel %vm618, %v870, 0
        %v876 = vsel %vm618, %v873, 0
        %878 = vmatpush.xpose.msra.mxu0 0.0
        %879 = vmatpush.xpose.msra.mxu0 0.0
        %880 = vmatpush.xpose.msra.mxu0 0.0
        %881 = vmatpush.xpose.msra.mxu0 0.0
        %882 = vmatpush.xpose.msra.mxu0 0.0
        %883 = vmatpush.xpose.msra.mxu0 0.0
        %884 = vmatpush.xpose.msra.mxu0 0.0
        %885 = vmatpush.xpose.msra.mxu0 0.0
        %886 = vmatpush.xpose.msra.mxu0 0.0
        %887 = vmatpush.xpose.msra.mxu0 0.0
        %888 = vmatpush.xpose.msra.mxu0 0.0
        %889 = vmatpush.xpose.msra.mxu0 0.0
        %890 = vmatpush.xpose.msra.mxu0 0.0
        %891 = vmatpush.xpose.msra.mxu0 0.0
        %892 = vmatpush.xpose.msra.mxu0 0.0
        %893 = vmatpush.xpose.msra.mxu0 %v876
        %894 = vmatmul.f32.gmra.mxu0 %v874
        %v895 = vpop.f32.mrf.mxu0
        %v896 = vadd.f32 0.0, %v895
        %897 = vdwg.mxu0
        %v898 = vsel %vm618, %v896, -inf
        %899 = vmax.xlane.f32.xlu0 %v898
        %v900 = vpop.xlane.xlu0 %899
        %v901 = vsub.f32 %v896, %v900
        %v902 = vmul.f32 %v901, 1.442695
        %v903 = vpow.pop %v902
        %v904 = vsel %vm618, %v903, 0.0
        %905 = vadd.xlane.f32.xlu0 %v904
        %v906 = vpop.xlane.xlu0 %905
        %907 = vrot.lane.b32.xlu0 %v868, 72
        %v908 = vpop.permute.xlu0 %907
        %v911 = vsel %vm618, %v903, 0
        %913 = vmatpush.msra.mxu0 0.0
        %914 = vmatpush.msra.mxu0 0.0
        %915 = vmatpush.msra.mxu0 0.0
        %916 = vmatpush.msra.mxu0 0.0
        %917 = vmatpush.msra.mxu0 0.0
        %918 = vmatpush.msra.mxu0 0.0
        %919 = vmatpush.msra.mxu0 0.0
        %920 = vmatpush.msra.mxu0 0.0
        %921 = vmatpush.msra.mxu0 0.0
        %922 = vmatpush.msra.mxu0 0.0
        %923 = vmatpush.msra.mxu0 0.0
        %924 = vmatpush.msra.mxu0 0.0
        %925 = vmatpush.msra.mxu0 0.0
        %926 = vmatpush.msra.mxu0 0.0
        %927 = vmatpush.msra.mxu0 0.0
        %928 = vmatpush.msra.mxu0 %v908
        %929 = vmatmul.f32.gmra.mxu0 %v911
        %v930 = vpop.f32.mrf.mxu0
        %v931 = vadd.f32 0.0, %v930
        %932 = vdwg.mxu0
        %v933 = vrcp.pop %v906
        %v934 = vmul.f32 %v906, %v933
        %v935 = vsub.f32 1.0, %v934
        %v936 = vmul.f32 %v933, %v935
        %v937 = vadd.f32 %v933, %v936
        %vm938 = vweird.f32 %v906
        %vm939 = vweird.f32 %v933
        %vm940 = vmor %vm938, %vm939
        %v941 = vsel %vm940, %v933, %v937
        %v942 = vand.u32 2147483647, %v906
        %vm943 = vcmp.eq.f32.partialorder %v942, 8.507059e+37
        %v944 = vand.u32 %v906, 2147483648
        %v945 = vor.u32 1.1754944e-38, %v944
        %v946 = vsel %vm943, %v945, %v941
        %v947 = vmul.f32 %v931, %v946
        %949 = vrot.lane.b32.xlu0 %v947, 24
        %v950 = vpop.permute.xlu0 %949
        %vm952 = vcmask 261312
        %953 = vst.msk [vmem:[#allocation3] sm:$0xff] %vm952, %v950
        %v954 = vld [vmem:[#allocation3] sm:$0xff]
        %v955 = vld [vmem:[%s5] sm:$0xff]
        %v956 = vld [vmem:[%s5 + $0x8] sm:$0xff]
        %v957 = vld [vmem:[%s5 + $0x10] sm:$0xff]
        %v958 = vld [vmem:[%s5 + $0x18] sm:$0xff]
        %v959 = vld [vmem:[%s6] sm:$0x1]
        %v961 = vperm.slane %v959, 0
        %v964 = vsel %vm593, %v954, 0
        %966 = vmatpush.msra.mxu0 0.0
        %967 = vmatpush.msra.mxu0 0.0
        %968 = vmatpush.msra.mxu0 0.0
        %969 = vmatpush.msra.mxu0 0.0
        %970 = vmatpush.msra.mxu0 0.0
        %971 = vmatpush.msra.mxu0 0.0
        %972 = vmatpush.msra.mxu0 0.0
        %973 = vmatpush.msra.mxu0 0.0
        %974 = vmatpush.msra.mxu0 0.0
        %975 = vmatpush.msra.mxu0 0.0
        %976 = vmatpush.msra.mxu0 0.0
        %977 = vmatpush.msra.mxu0 0.0
        %978 = vmatpush.msra.mxu0 %v958
        %979 = vmatpush.msra.mxu0 %v957
        %980 = vmatpush.msra.mxu0 %v956
        %981 = vmatpush.msra.mxu0 %v955
        %982 = vmatmul.f32.gmra.mxu0 %v964
        %v983 = vpop.f32.mrf.mxu0
        %v984 = vadd.f32 %v961, %v983
        %985 = vdwg.mxu0
        %v986 = vadd.f32 %v584, %v984
        %v987 = vsel %vm593, %v986, 0.0
        %988 = vadd.xlane.f32.xlu0 %v987
        %v989 = vpop.xlane.xlu0 %988
        %v990 = vrcp.pop 32.0
        %v991 = vmul.f32 32.0, %v990
        %v992 = vsub.f32 1.0, %v991
        %v993 = vmul.f32 %v990, %v992
        %v994 = vadd.f32 %v990, %v993
        %vm995 = vweird.f32 %v990
        %v996 = vsel %vm995, %v990, %v994
        %v997 = vmul.f32 %v989, %v996
        %v998 = vsub.f32 %v986, %v997
        %v999 = vmul.f32 %v998, %v998
        %v1000 = vsel %vm593, %v999, 0.0
        %1001 = vadd.xlane.f32.xlu0 %v1000
        %v1002 = vpop.xlane.xlu0 %1001
        %v1003 = vmul.f32 %v1002, %v996
        %v1004 = vadd.f32 %v1003, 1e-05
        %v1005 = vrsqrt.pop %v1004
        %v1006 = vmul.f32 %v1005, %v1004
        %v1007 = vmul.f32 %v1006, %v1005
        %v1008 = vmul.f32 0.5, %v1007
        %v1009 = vsub.f32 1.5, %v1008
        %v1010 = vmul.f32 %v1005, %v1009
        %vm1011 = vweird.f32 %v1004
        %vm1012 = vweird.f32 %v1005
        %vm1013 = vmor %vm1011, %vm1012
        %v1014 = vsel %vm1013, %v1005, %v1010
        %v1015 = vmul.f32 %v998, %v1014
        %v1016 = vld [vmem:[%s7] sm:$0x1]
        %v1018 = vperm.slane %v1016, 0
        %v1020 = vmul.f32 %v1015, %v1018
        %v1021 = vld [vmem:[%s8] sm:$0x1]
        %v1023 = vperm.slane %v1021, 0
        %v1025 = vadd.f32 %v1020, %v1023
        %v1026 = vld [vmem:[#allocation7] sm:$0xff]
        %v1027 = vld [vmem:[#allocation7 + $0x8] sm:$0xff]
        %v1028 = vld [vmem:[#allocation7 + $0x10] sm:$0xff]
        %v1029 = vld [vmem:[#allocation7 + $0x18] sm:$0xff]
        %v1030 = vld [vmem:[%s10] sm:$0x1]
        %v1032 = vperm.slane %v1030, 0
        %v1035 = vsel %vm593, %v1025, 0
        %1037 = vmatpush.msra.mxu0 0.0
        %1038 = vmatpush.msra.mxu0 0.0
        %1039 = vmatpush.msra.mxu0 0.0
        %1040 = vmatpush.msra.mxu0 0.0
        %1041 = vmatpush.msra.mxu0 0.0
        %1042 = vmatpush.msra.mxu0 0.0
        %1043 = vmatpush.msra.mxu0 0.0
        %1044 = vmatpush.msra.mxu0 0.0
        %1045 = vmatpush.msra.mxu0 0.0
        %1046 = vmatpush.msra.mxu0 0.0
        %1047 = vmatpush.msra.mxu0 0.0
        %1048 = vmatpush.msra.mxu0 0.0
        %1049 = vmatpush.msra.mxu0 %v1029
        %1050 = vmatpush.msra.mxu0 %v1028
        %1051 = vmatpush.msra.mxu0 %v1027
        %1052 = vmatpush.msra.mxu0 %v1026
        %1053 = vmatmul.f32.gmra.mxu0 %v1035
        %v1054 = vpop.f32.mrf.mxu0
        %v1055 = vadd.f32 %v1032, %v1054
        %1056 = vdwg.mxu0
        %v1057 = vmax.f32 %v1055, 0.0
        %v1058 = vld [vmem:[%s11] sm:$0xff]
        %v1059 = vld [vmem:[%s11 + $0x8] sm:$0xff]
        %v1060 = vld [vmem:[%s11 + $0x10] sm:$0xff]
        %v1061 = vld [vmem:[%s11 + $0x18] sm:$0xff]
        %v1062 = vld [vmem:[%s11 + $0x20] sm:$0xff]
        %v1063 = vld [vmem:[%s11 + $0x28] sm:$0xff]
        %v1064 = vld [vmem:[%s11 + $0x30] sm:$0xff]
        %v1065 = vld [vmem:[%s11 + $0x38] sm:$0xff]
        %v1066 = vld [vmem:[%s12] sm:$0x1]
        %v1068 = vperm.slane %v1066, 0
        %vm1070 = vcmask 523264
        %v1072 = vsel %vm1070, %v1057, 0
        %1074 = vmatpush.msra.mxu0 0.0
        %1075 = vmatpush.msra.mxu0 0.0
        %1076 = vmatpush.msra.mxu0 0.0
        %1077 = vmatpush.msra.mxu0 0.0
        %1078 = vmatpush.msra.mxu0 0.0
        %1079 = vmatpush.msra.mxu0 0.0
        %1080 = vmatpush.msra.mxu0 0.0
        %1081 = vmatpush.msra.mxu0 0.0
        %1082 = vmatpush.msra.mxu0 %v1065
        %1083 = vmatpush.msra.mxu0 %v1064
        %1084 = vmatpush.msra.mxu0 %v1063
        %1085 = vmatpush.msra.mxu0 %v1062
        %1086 = vmatpush.msra.mxu0 %v1061
        %1087 = vmatpush.msra.mxu0 %v1060
        %1088 = vmatpush.msra.mxu0 %v1059
        %1089 = vmatpush.msra.mxu0 %v1058
        %1090 = vmatmul.f32.gmra.mxu0 %v1072
        %v1091 = vpop.f32.mrf.mxu0
        %v1092 = vadd.f32 %v1068, %v1091
        %1093 = vdwg.mxu0
        %v1094 = vadd.f32 %v1025, %v1092
        %v1095 = vsel %vm593, %v1094, 0.0
        %1096 = vadd.xlane.f32.xlu0 %v1095
        %v1097 = vpop.xlane.xlu0 %1096
        %v1098 = vmul.f32 %v1097, %v996
        %v1099 = vsub.f32 %v1094, %v1098
        %v1100 = vmul.f32 %v1099, %v1099
        %v1101 = vsel %vm593, %v1100, 0.0
        %1102 = vadd.xlane.f32.xlu0 %v1101
        %v1103 = vpop.xlane.xlu0 %1102
        %v1104 = vmul.f32 %v1103, %v996
        %v1105 = vadd.f32 %v1104, 1e-05
        %v1106 = vrsqrt.pop %v1105
        %v1107 = vmul.f32 %v1106, %v1105
        %v1108 = vmul.f32 %v1107, %v1106
        %v1109 = vmul.f32 0.5, %v1108
        %v1110 = vsub.f32 1.5, %v1109
        %v1111 = vmul.f32 %v1106, %v1110
        %vm1112 = vweird.f32 %v1105
        %vm1113 = vweird.f32 %v1106
        %vm1114 = vmor %vm1112, %vm1113
        %v1115 = vsel %vm1114, %v1106, %v1111
        %v1116 = vmul.f32 %v1099, %v1115
        %v1117 = vld [vmem:[%s13] sm:$0x1]
        %v1119 = vperm.slane %v1117, 0
        %v1121 = vmul.f32 %v1116, %v1119
        %v1122 = vld [vmem:[%s14] sm:$0x1]
        %v1124 = vperm.slane %v1122, 0
        %v1126 = vadd.f32 %v1121, %v1124
        %1127 = vst.msk [vmem:[%s542] sm:$0xff] %vm593, %v1126
        %s1128 = sand.u32 %s375, 1
        %s1129 = scalar_lea.sflag [#allocation6], %s1128
        %s1130 = sand.u32 %s375, 1
        %s1131 = smul.addr %s1130, 8
        %s1132 = scalar_lea.vmem [#allocation9], %s1131
        // Predicated region
        $region93: #{tpu_custom_call.1} parent=79 // pred_check
          %p1133 = pneg %p385
        $region94: #{tpu_custom_call.1} parent=79 // pred_check_branch
          %1135 = sbr.rel (%p1133) target = $region96
        $region95: #{tpu_custom_call.1} parent=79 // pred_region
          %1137 = vsyncadd %s1129, 0
          %s1138 = sadd.s32 %s38, %s37
          %s1139 = smul.addr %s1138, 8
          %s1140 = scalar_lea.hbm %s15, %s1139
          %s1142 = sshll.u32 %s1132, 4
          %s1143 = int_to_ptr.vmem [resolvable:$true] %s1142
          %s1144 = sshll.u32 %s1140, 4
          %s1145 = int_to_ptr.hbm [resolvable:$true] %s1144
          %1147 = dma.vmem_to_hbm [thread:$0]  %s1143, 128, %s1145, %s1129
        $region96: #{tpu_custom_call.1} parent=79 // pred_fallthru
          _
      $region80: #{tpu_custom_call.1} parent=5 // pred_fallthru
        _
      %p1148 = scmp.le.s32.totalorder 2, %s28
      // Predicated region
      $region97: #{tpu_custom_call.1} parent=5 // pred_check
        %p1149 = pneg %p1148
      $region98: #{tpu_custom_call.1} parent=5 // pred_check_branch
        %1151 = sbr.rel (%p1149) target = $region100
      $region99: #{tpu_custom_call.1} parent=5 // pred_region
        %s1152 = ssub.s32 %s28, 2
        // Predicated region
        $region101: #{tpu_custom_call.1} parent=99 // pred_check
          %p1153 = pneg %p391
        $region102: #{tpu_custom_call.1} parent=99 // pred_check_branch
          %1155 = sbr.rel (%p1153) target = $region104
        $region103: #{tpu_custom_call.1} parent=99 // pred_region
          %s1156 = sand.u32 %s376, 1
          %s1157 = scalar_lea.sflag [#allocation6], %s1156
          %s1158 = sand.u32 %s376, 1
          %s1159 = smul.addr %s1158, 8
          %s1160 = scalar_lea.vmem [#allocation9], %s1159
          %1162 = dma.done %s1157, 128
        $region104: #{tpu_custom_call.1} parent=99 // pred_fallthru
          _
      $region100: #{tpu_custom_call.1} parent=5 // pred_fallthru
        _
    $region6: #{tpu_custom_call.1} parent=1 // loop_footer
      %s32 = sadd.s32 1, %s28
    $region7: #{tpu_custom_call.1} parent=1 // loop_footer_branch
      %27 = sbr.rel target = $region3
    $region8: #{tpu_custom_call.1} parent=1 // loop_exit
      _
    %1163 = vsyncpa [#allocation5], 1
    %s1164 = scalar_lea.sflag [#allocation5], 1
    %1165 = vsyncpa %s1164, 1
    %1166 = vsyncpa [#allocation8], 1
    %1167 = vsyncpa [#allocation6], 1
    %s1168 = scalar_lea.sflag [#allocation6], 1
    %1169 = vsyncpa %s1168, 1

</llo_original>
